<compile_context>
chip_gen: v6e
topology: v6e:2x2x1
jax: 0.10.0
libtpu: 0.0.40
codegen_flags: <defaults>
</compile_context>

<pallas_src>
import jax
import jax.numpy as jnp
from jax.experimental import pallas as pl
from jax.experimental.pallas import tpu as pltpu

BN_EPS = 1e-5
HIDDEN = 128  # GRU hidden size


def _pick_div(n, target, multiple=1):
    """Largest divisor of n that is <= target and a multiple of `multiple`.

    Falls back to n itself (a block equal to the full dim is always legal)."""
    if n <= target:
        return n
    for t in range(min(target, n), 0, -1):
        if n % t == 0 and t % multiple == 0:
            return t
    return n


def _im2col(x_blc, K):
    """(B, L, Cin) -> (B, L, K*Cin) with 'same' (zero) padding, tap-major."""
    B, L, Cin = x_blc.shape
    pad = (K - 1) // 2
    xp = jnp.pad(x_blc, ((0, 0), (pad, pad), (0, 0)))
    return jnp.concatenate([xp[:, d:d + L, :] for d in range(K)], axis=-1)


# ----------------------------------------------------------------------------
# Kernel 1: fused conv branches (global/mid/fine1/fine2) + folded-BN + ReLU
#           + pool(2) + both 1x1 fusion layers (folded BN, ReLU, residuals).
# Channel layout of the fused conv slab: [g 0:256 | f1 256:320 | f2 320:384 | m 384:512]
# ----------------------------------------------------------------------------
def _conv_fusion_kernel(xe_ref, xo_ref, wc_ref, bc_ref,
                        w1_ref, b1_ref, w2_ref, b2_ref, o_ref):
    wc = wc_ref[...]            # (KCp, 512) bf16, BN scale folded in
    bc = bc_ref[...]            # (1, 512)  f32,  conv bias * scale + shift

    def conv_relu(x):           # one ~64-deep MXU matmul for all four branches
        y = jnp.dot(x, wc, preferred_element_type=jnp.float32) + bc
        return jnp.maximum(y, 0.0)

    ye = conv_relu(xe_ref[0])   # conv output at even time steps (TLh, 512)
    yo = conv_relu(xo_ref[0])   # conv output at odd time steps  (TLh, 512)

    # pool(k=2, s=2): avg for g/m branches, max for f1/f2 branches.
    g = 0.5 * (ye[:, 0:256] + yo[:, 0:256])            # (TLh, 256)
    m = 0.5 * (ye[:, 384:512] + yo[:, 384:512])        # (TLh, 128)
    f = jnp.maximum(ye[:, 256:384], yo[:, 256:384])    # (TLh, 128)

    # fusion_layer1 input = cat([f1, f2, m]) == [f | m]; split into 2 row blocks.
    y1 = (jnp.dot(f.astype(jnp.bfloat16), w1_ref[0:128, :],
                  preferred_element_type=jnp.float32)
          + jnp.dot(m.astype(jnp.bfloat16), w1_ref[128:256, :],
                    preferred_element_type=jnp.float32)
          + b1_ref[...])
    y1 = jnp.maximum(y1, 0.0) + m                      # + m_skip
    # fusion_layer2 input = cat([y1, g]).
    y2 = (jnp.dot(y1.astype(jnp.bfloat16), w2_ref[0:128, :],
                  preferred_element_type=jnp.float32)
          + jnp.dot(g.astype(jnp.bfloat16), w2_ref[128:384, :],
                    preferred_element_type=jnp.float32)
          + b2_ref[...])
    o_ref[0] = jnp.maximum(y2, 0.0) + g                # + g_skip


def conv_fusion(x_blc, conv_params, fusion_params, *, time_tile=1024):
    # x_blc: (B, L, Cin); output: (B, L/2, 256).
    B, L, Cin = x_blc.shape
    assert L % 2 == 0
    Wc, bc = conv_params
    w1, b1, w2, b2 = fusion_params
    KCp = Wc.shape[0]                          # padded contraction depth
    x_im = _im2col(x_blc, 15)                  # (B, L, 15*Cin)
    KC = x_im.shape[-1]
    if KCp != KC:
        x_im = jnp.pad(x_im, ((0, 0), (0, 0), (0, KCp - KC)))
    x_im = x_im.astype(jnp.bfloat16)           # halves the duplicated slab DMA
    xe = x_im[:, 0::2, :]                      # even time steps (B, L/2, KCp)
    xo = x_im[:, 1::2, :]                      # odd time steps
    Lh = L // 2
    # Cap TLh <= 512 so ~6 live (TLh,512) f32 temporaries stay well under the
    # scoped VMEM default on every generation (incl. v7x's 64 MiB physical).
    TLh = _pick_div(Lh, time_tile // 2, multiple=8)
    rep2 = lambda b, t: (0, 0)
    return pl.pallas_call(
        _conv_fusion_kernel,
        out_shape=jax.ShapeDtypeStruct((B, Lh, 256), jnp.float32),
        grid=(B, Lh // TLh),
        in_specs=[
            pl.BlockSpec((1, TLh, KCp), lambda b, t: (b, t, 0)),
            pl.BlockSpec((1, TLh, KCp), lambda b, t: (b, t, 0)),
            pl.BlockSpec((KCp, 512), rep2),
            pl.BlockSpec((1, 512), rep2),
            pl.BlockSpec((256, 128), rep2),
            pl.BlockSpec((1, 128), rep2),
            pl.BlockSpec((384, 256), rep2),
            pl.BlockSpec((1, 256), rep2),
        ],
        out_specs=pl.BlockSpec((1, TLh, 256), lambda b, t: (b, t, 0)),
        compiler_params=pltpu.CompilerParams(
            dimension_semantics=("parallel", "parallel")),
    )(xe, xo, Wc, bc, w1, b1, w2, b2)


# ----------------------------------------------------------------------------
# Kernel 2: one full bidirectional GRU layer (PyTorch gate order r, z, n).
# Both directions run inside the SAME serial loop (stacked, T steps total), the
# input projection is fused per step (no gi HBM round trip) and the hidden
# state lives in VMEM scratch across "arbitrary" time tiles.
# ----------------------------------------------------------------------------
def _gru_kernel(xf_ref, xb_ref, wih_ref, bih_ref, whh_ref, bhh_ref,
                of_ref, ob_ref, h_scr):
    # xf_ref: (TT, B, Din) forward tile j (time-forward order)
    # xb_ref: (TT, B, Din) tile nT-1-j    (iterated backwards in-kernel)
    # wih_ref: (Din, 6H) bf16 [fwd 3H | bwd 3H];  whh_ref: (2, H, 3H) bf16
    TT, B, Din = xf_ref.shape
    H = whh_ref.shape[1]

    @pl.when(pl.program_id(0) == 0)
    def _():                                    # h0 = 0 for both directions
        h_scr[...] = jnp.zeros_like(h_scr)

    # Loop-invariant weights (loaded once, kept resident by the compiler).
    wih_f = wih_ref[:, 0:3 * H]
    wih_b = wih_ref[:, 3 * H:6 * H]
    bih_f = bih_ref[:, 0:3 * H]
    bih_b = bih_ref[:, 3 * H:6 * H]
    whh_f = whh_ref[0]
    whh_b = whh_ref[1]
    bhh_f = bhh_ref[0]
    bhh_b = bhh_ref[1]

    def cell(x_t, h, wih_d, bih_d, whh_d, bhh_d):
        # Input projection fused into the step (MXU otherwise idle here).
        gi = jnp.dot(x_t, wih_d, preferred_element_type=jnp.float32) + bih_d
        gh = jnp.dot(h.astype(jnp.bfloat16), whh_d,
                     preferred_element_type=jnp.float32) + bhh_d
        r = jax.nn.sigmoid(gi[:, 0:H] + gh[:, 0:H])
        z = jax.nn.sigmoid(gi[:, H:2 * H] + gh[:, H:2 * H])
        n = jnp.tanh(gi[:, 2 * H:3 * H] + r * gh[:, 2 * H:3 * H])
        return (1.0 - z) * n + z * h

    @pl.loop(0, TT)
    def _(tl):
        tb = TT - 1 - tl                        # backward walks its tile reversed
        xf_t = xf_ref[pl.ds(tl, 1)].reshape(B, Din).astype(jnp.bfloat16)
        xb_t = xb_ref[pl.ds(tb, 1)].reshape(B, Din).astype(jnp.bfloat16)
        hf = cell(xf_t, h_scr[0], wih_f, bih_f, whh_f, bhh_f)
        hb = cell(xb_t, h_scr[1], wih_b, bih_b, whh_b, bhh_b)
        h_scr[0] = hf
        h_scr[1] = hb
        of_ref[pl.ds(tl, 1)] = hf.reshape(1, B, H)
        ob_ref[pl.ds(tb, 1)] = hb.reshape(1, B, H)


def gru_layer(x_tbc, layer_params, *, time_tile=256):
    # x_tbc: (T, B, Din) time-major.  Returns (T, B, 2H).
    wih_cat, bih_cat, whh_s, bhh_s = layer_params
    T, B, Din = x_tbc.shape
    H = whh_s.shape[1]
    TT = _pick_div(T, time_tile)
    nT = T // TT
    of, ob = pl.pallas_call(
        _gru_kernel,
        out_shape=(jax.ShapeDtypeStruct((T, B, H), jnp.float32),
                   jax.ShapeDtypeStruct((T, B, H), jnp.float32)),
        grid=(nT,),
        in_specs=[
            pl.BlockSpec((TT, B, Din), lambda j: (j, 0, 0)),             # fwd tile
            pl.BlockSpec((TT, B, Din), lambda j: (nT - 1 - j, 0, 0)),    # bwd tile
            pl.BlockSpec((Din, 6 * H), lambda j: (0, 0)),
            pl.BlockSpec((1, 6 * H), lambda j: (0, 0)),
            pl.BlockSpec((2, H, 3 * H), lambda j: (0, 0, 0)),
            pl.BlockSpec((2, 1, 3 * H), lambda j: (0, 0, 0)),
        ],
        out_specs=(pl.BlockSpec((TT, B, H), lambda j: (j, 0, 0)),
                   pl.BlockSpec((TT, B, H), lambda j: (nT - 1 - j, 0, 0))),
        scratch_shapes=[pltpu.VMEM((2, B, H), jnp.float32)],
        compiler_params=pltpu.CompilerParams(
            dimension_semantics=("arbitrary",)),
    )(x_tbc, x_tbc, wih_cat, bih_cat, whh_s, bhh_s)
    return jnp.concatenate([of, ob], axis=-1)


# ----------------------------------------------------------------------------
# Kernel 3: fc -> tanh -> (dropout = id in eval) -> last_layer (lane-padded).
# ----------------------------------------------------------------------------
def _head_kernel(x_ref, wfc_ref, bfc_ref, wout_ref, bout_ref, o_ref):
    h = jnp.tanh(jnp.dot(x_ref[...], wfc_ref[...],
                         preferred_element_type=jnp.float32) + bfc_ref[...])
    o_ref[...] = jnp.dot(h, wout_ref[...],
                         preferred_element_type=jnp.float32) + bout_ref[...]


def head_forward(x, head_params, out_ch):
    wfc, bfc, wout_p, bout_p = head_params   # wout_p/bout_p padded to 128 lanes
    N, Din = x.shape
    Np = ((N + 7) // 8) * 8
    if Np != N:
        x = jnp.pad(x, ((0, Np - N), (0, 0)))
    out = pl.pallas_call(
        _head_kernel,
        out_shape=jax.ShapeDtypeStruct((Np, wout_p.shape[1]), jnp.float32),
    )(x, wfc, bfc, wout_p, bout_p)
    return out[:N, :out_ch]


# ----------------------------------------------------------------------------
# Deterministic parameter construction (shapes from GI_NN.__init__),
# with BatchNorm (eval) folded into the conv / 1x1 fusion weights.
# ----------------------------------------------------------------------------
def make_bn(key, C):
    k1, k2, k3, k4 = jax.random.split(key, 4)
    gamma = 1.0 + 0.1 * jax.random.normal(k1, (C,))
    beta = 0.1 * jax.random.normal(k2, (C,))
    mean = 0.1 * jax.random.normal(k3, (C,))
    var = 1.0 + 0.1 * jax.random.uniform(k4, (C,))
    scale = (gamma / jnp.sqrt(var + BN_EPS)).astype(jnp.float32)
    shift = (beta - mean * scale).astype(jnp.float32)
    return scale, shift


def make_conv_torch(key, Cin, Cout, K):
    k1, k2, k3 = jax.random.split(key, 3)
    w = (jax.random.normal(k1, (Cout, Cin, K)) / jnp.sqrt(Cin * K)).astype(jnp.float32)
    b = (0.1 * jax.random.normal(k2, (Cout,))).astype(jnp.float32)
    scale, shift = make_bn(k3, Cout)
    return w, b, scale, shift


def place_conv(w_torch, Kmax=15):
    # Embed a (Cout, Cin, K) 'same'-padded conv into a (Kmax*Cin, Cout) im2col
    # weight with the Kmax-tap window centered (zeros for unused taps).
    Cout, Cin, K = w_torch.shape
    off = (Kmax - 1) // 2 - (K - 1) // 2
    w_kc = jnp.transpose(w_torch, (2, 1, 0)).reshape(K * Cin, Cout)
    big = jnp.zeros((Kmax * Cin, Cout), jnp.float32)
    return big.at[off * Cin:(off + K) * Cin, :].set(w_kc)


def make_gru_layer_params(key, Din, H):
    kf, kb = jax.random.split(key)

    def one_dir(k):
        k1, k2, k3, k4 = jax.random.split(k, 4)
        s = 1.0 / float(H) ** 0.5
        wih = jax.random.uniform(k1, (3 * H, Din), minval=-s, maxval=s)  # torch layout
        whh = jax.random.uniform(k2, (3 * H, H), minval=-s, maxval=s)
        bih = jax.random.uniform(k3, (3 * H,), minval=-s, maxval=s)
        bhh = jax.random.uniform(k4, (3 * H,), minval=-s, maxval=s)
        return wih.T, whh.T, bih, bhh

    wf, hf, bif, bhf = one_dir(kf)
    wb, hb, bib, bhb = one_dir(kb)
    wih_cat = jnp.concatenate([wf, wb], axis=1).astype(jnp.bfloat16)     # (Din, 6H)
    bih_cat = jnp.concatenate([bif, bib]).reshape(1, 6 * H).astype(jnp.float32)
    whh_s = jnp.stack([hf, hb]).astype(jnp.bfloat16)                     # (2, H, 3H)
    bhh_s = jnp.stack([bhf.reshape(1, 3 * H),
                       bhb.reshape(1, 3 * H)]).astype(jnp.float32)       # (2, 1, 3H)
    return (wih_cat, bih_cat, whh_s, bhh_s)


def build_params(key, input_size, output_channels, anchors):
    ks = jax.random.split(key, 24)
    params = {"anchors": anchors, "out_ch": output_channels}

    # Conv branches (torch layout), fused into one (15*Cin, 512) im2col weight.
    # Channel order of the fused slab: [g | f1 | f2 | m].  BN folded.
    wg, bg, sg, tg = make_conv_torch(ks[0], input_size, 256, 15)
    wf1, bf1, sf1, tf1 = make_conv_torch(ks[1], input_size, 64, 5)
    wf2, bf2, sf2, tf2 = make_conv_torch(ks[2], input_size, 64, 3)
    wm, bm, sm, tm_ = make_conv_torch(ks[3], input_size, 128, 7)
    Wc = jnp.concatenate([place_conv(wg), place_conv(wf1),
                          place_conv(wf2), place_conv(wm)], axis=1)       # (15*Cin, 512)
    bc = jnp.concatenate([bg, bf1, bf2, bm])
    sc = jnp.concatenate([sg, sf1, sf2, sm])
    tc = jnp.concatenate([tg, tf1, tf2, tm_])
    Wc = Wc * sc[None, :]                         # fold BN scale into weights
    bc = bc * sc + tc                             # fold conv bias + BN shift
    KC = Wc.shape[0]
    KCp = ((KC + 7) // 8) * 8                     # pad contraction to sublane multiple
    if KCp != KC:
        Wc = jnp.pad(Wc, ((0, KCp - KC), (0, 0)))
    params["conv"] = (Wc.astype(jnp.bfloat16), bc.reshape(1, 512).astype(jnp.float32))

    # fusion_layer1: Conv1d(256->128, k=1)+BN; fusion_layer2: Conv1d(384->256, k=1)+BN.
    w1 = (jax.random.normal(ks[4], (128, 256, 1)) / jnp.sqrt(256.0)).astype(jnp.float32)
    b1 = (0.1 * jax.random.normal(ks[5], (128,))).astype(jnp.float32)
    s1, t1 = make_bn(ks[6], 128)
    w2 = (jax.random.normal(ks[7], (256, 384, 1)) / jnp.sqrt(384.0)).astype(jnp.float32)
    b2 = (0.1 * jax.random.normal(ks[8], (256,))).astype(jnp.float32)
    s2, t2 = make_bn(ks[9], 256)
    w1f = (w1[:, :, 0].T * s1[None, :]).astype(jnp.bfloat16)              # (256, 128)
    b1f = (b1 * s1 + t1).reshape(1, 128).astype(jnp.float32)
    w2f = (w2[:, :, 0].T * s2[None, :]).astype(jnp.bfloat16)              # (384, 256)
    b2f = (b2 * s2 + t2).reshape(1, 256).astype(jnp.float32)
    params["fusion"] = (w1f, b1f, w2f, b2f)

    # GRU(256, 128, num_layers=4, bidirectional) — every layer input is 256.
    params["gru"] = [make_gru_layer_params(ks[10 + i], 256, HIDDEN) for i in range(4)]

    # fc: Linear(256, 64); last_layer: Linear(64, output_channels) padded to 128 lanes.
    wfc = (jax.random.normal(ks[14], (64, 256)) / jnp.sqrt(256.0)).astype(jnp.float32)
    bfc = (0.1 * jax.random.normal(ks[15], (64,))).astype(jnp.float32)
    wout = (jax.random.normal(ks[16], (output_channels, 64)) / jnp.sqrt(64.0)).astype(jnp.float32)
    bout = (0.1 * jax.random.normal(ks[17], (output_channels,))).astype(jnp.float32)
    wout_p = jnp.zeros((64, 128), jnp.float32).at[:, :output_channels].set(wout.T)
    bout_p = jnp.zeros((1, 128), jnp.float32).at[0, :output_channels].set(bout)
    params["head"] = (wfc.T, bfc.reshape(1, -1), wout_p, bout_p)
    return params


# ----------------------------------------------------------------------------
# Forward pass (eval mode).
# ----------------------------------------------------------------------------
def gi_nn_forward(params, x):
    # x: (B, input_size, SEQ_LEN)  — PyTorch NCL layout.
    B, Cin, L = x.shape
    xt = jnp.transpose(x, (0, 2, 1))                                  # (B, L, Cin)

    combined = conv_fusion(xt, params["conv"], params["fusion"])      # (B, L/2, 256)

    h = jnp.transpose(combined, (1, 0, 2))                            # (T, B, 256)
    for layer_params in params["gru"]:
        h = gru_layer(h, layer_params)                                # (T, B, 256)

    A = params["anchors"]
    out_ch = params["out_ch"]
    T = h.shape[0]
    hA = h[T - A:]                                                    # (A, B, 256)
    bsel = jnp.transpose(hA, (1, 0, 2)).reshape(B * A, 2 * HIDDEN)    # (B*A, 256)
    z = head_forward(bsel, params["head"], out_ch).reshape(B, A, out_ch)
    return z   # matches the (no-op) eval-branch slice z[:, -A:, :] in PyTorch


if __name__ == "__main__":
    B, INPUT_SIZE, SEQ_LEN = 2, 4, 16
    OUTPUT_CHANNELS, ANCHORS = 3, 4

    key = jax.random.PRNGKey(0)
    pkey, xkey = jax.random.split(key)
    params = build_params(pkey, INPUT_SIZE, OUTPUT_CHANNELS, ANCHORS)
    x = jax.random.normal(xkey, (B, INPUT_SIZE, SEQ_LEN), jnp.float32)

    fwd = jax.jit(lambda inp: gi_nn_forward(params, inp))
    z = jax.block_until_ready(fwd(x))
    assert z.shape == (B, ANCHORS, OUTPUT_CHANNELS), z.shape
    assert bool(jnp.all(jnp.isfinite(z)))
    print("KERNEL_OK")
</pallas_src>

<mosaic_0001>
module attributes {stable_mosaic.version = 11 : i64} {
  func.func @_gru_kernel(%arg0: i32, %arg1: memref<8x2x256xf32, #tpu.memory_space<vmem>>, %arg2: memref<8x2x256xf32, #tpu.memory_space<vmem>>, %arg3: memref<256x768xbf16, #tpu.memory_space<vmem>>, %arg4: memref<1x768xf32, #tpu.memory_space<vmem>>, %arg5: memref<2x128x384xbf16, #tpu.memory_space<vmem>>, %arg6: memref<2x1x384xf32, #tpu.memory_space<vmem>>, %arg7: memref<8x2x128xf32, #tpu.memory_space<vmem>>, %arg8: memref<8x2x128xf32, #tpu.memory_space<vmem>>, %arg9: memref<2x2x128xf32, #tpu.memory_space<vmem>>) attributes {dimension_semantics = [#tpu.dimension_semantics<arbitrary>], iteration_bounds = array<i64: 1>, scalar_prefetch = 0 : i64, scratch_operands = 1 : i64, tpu.core_type = #tpu.core_type<tc>, window_params = [{transform_indices = @transform_0, window_bounds = array<i64: 8, 2, 256>}, {transform_indices = @transform_1, window_bounds = array<i64: 8, 2, 256>}, {pipeline_mode = #tpu.pipeline_mode<synchronous>, transform_indices = @transform_2, window_bounds = array<i64: 256, 768>}, {pipeline_mode = #tpu.pipeline_mode<synchronous>, transform_indices = @transform_3, window_bounds = array<i64: 1, 768>}, {pipeline_mode = #tpu.pipeline_mode<synchronous>, transform_indices = @transform_4, window_bounds = array<i64: 2, 128, 384>}, {pipeline_mode = #tpu.pipeline_mode<synchronous>, transform_indices = @transform_5, window_bounds = array<i64: 2, 1, 384>}, {transform_indices = @transform_6, window_bounds = array<i64: 8, 2, 128>}, {transform_indices = @transform_7, window_bounds = array<i64: 8, 2, 128>}]} {
    %c0_i32 = arith.constant 0 : i32
    %0 = arith.cmpi eq, %arg0, %c0_i32 : i32
    %1 = arith.extui %0 : i1 to i32
    %c0_i32_0 = arith.constant 0 : i32
    %2 = arith.cmpi ne, %1, %c0_i32_0 : i32
    scf.if %2 {
      %cst = arith.constant 0.000000e+00 : f32
      %16 = vector.broadcast %cst : f32 to vector<2x2x128xf32>
      %c0_20 = arith.constant 0 : index
      %c0_21 = arith.constant 0 : index
      %c0_22 = arith.constant 0 : index
      %17 = vector.load %arg9[%c0_20, %c0_21, %c0_22] : memref<2x2x128xf32, #tpu.memory_space<vmem>>, vector<2x2x128xf32>
      tpu.vector_store %arg9[%c0_20, %c0_21, %c0_22], %16 {strides = array<i32>} : memref<2x2x128xf32, #tpu.memory_space<vmem>>, vector<2x2x128xf32>,
    } else {
    }
    %c0 = arith.constant 0 : index
    %c0_1 = arith.constant 0 : index
    %3 = vector.load %arg3[%c0, %c0_1] : memref<256x768xbf16, #tpu.memory_space<vmem>>, vector<256x384xbf16>
    %c0_2 = arith.constant 0 : index
    %c384 = arith.constant 384 : index
    %4 = vector.load %arg3[%c0_2, %c384] : memref<256x768xbf16, #tpu.memory_space<vmem>>, vector<256x384xbf16>
    %c0_3 = arith.constant 0 : index
    %c0_4 = arith.constant 0 : index
    %5 = vector.load %arg4[%c0_3, %c0_4] : memref<1x768xf32, #tpu.memory_space<vmem>>, vector<1x384xf32>
    %c0_5 = arith.constant 0 : index
    %c384_6 = arith.constant 384 : index
    %6 = vector.load %arg4[%c0_5, %c384_6] : memref<1x768xf32, #tpu.memory_space<vmem>>, vector<1x384xf32>
    %c0_7 = arith.constant 0 : index
    %c0_8 = arith.constant 0 : index
    %c0_9 = arith.constant 0 : index
    %7 = vector.load %arg5[%c0_7, %c0_8, %c0_9] : memref<2x128x384xbf16, #tpu.memory_space<vmem>>, vector<1x128x384xbf16>
    %8 = vector.shape_cast %7 : vector<1x128x384xbf16> to vector<128x384xbf16>
    %c1 = arith.constant 1 : index
    %c0_10 = arith.constant 0 : index
    %c0_11 = arith.constant 0 : index
    %9 = vector.load %arg5[%c1, %c0_10, %c0_11] : memref<2x128x384xbf16, #tpu.memory_space<vmem>>, vector<1x128x384xbf16>
    %10 = vector.shape_cast %9 : vector<1x128x384xbf16> to vector<128x384xbf16>
    %c0_12 = arith.constant 0 : index
    %c0_13 = arith.constant 0 : index
    %c0_14 = arith.constant 0 : index
    %11 = vector.load %arg6[%c0_12, %c0_13, %c0_14] : memref<2x1x384xf32, #tpu.memory_space<vmem>>, vector<1x1x384xf32>
    %12 = vector.shape_cast %11 : vector<1x1x384xf32> to vector<1x384xf32>
    %c1_15 = arith.constant 1 : index
    %c0_16 = arith.constant 0 : index
    %c0_17 = arith.constant 0 : index
    %13 = vector.load %arg6[%c1_15, %c0_16, %c0_17] : memref<2x1x384xf32, #tpu.memory_space<vmem>>, vector<1x1x384xf32>
    %14 = vector.shape_cast %13 : vector<1x1x384xf32> to vector<1x384xf32>
    %c0_i32_18 = arith.constant 0 : i32
    %c8_i32 = arith.constant 8 : i32
    %15 = arith.addi %c0_i32_18, %c8_i32 : i32
    %c1_i32 = arith.constant 1 : i32
    scf.for %arg10 = %c0_i32_18 to %15 step %c1_i32  : i32 {
      %c1_i32_20 = arith.constant 1 : i32
      %16 = arith.muli %arg10, %c1_i32_20 : i32
      %c0_i32_21 = arith.constant 0 : i32
      %17 = arith.addi %c0_i32_21, %16 : i32
      %c7_i32 = arith.constant 7 : i32
      %18 = arith.subi %c7_i32, %17 : i32
      %19 = arith.index_cast %17 : i32 to index
      %c0_22 = arith.constant 0 : index
      %c0_23 = arith.constant 0 : index
      %20 = vector.load %arg1[%19, %c0_22, %c0_23] : memref<8x2x256xf32, #tpu.memory_space<vmem>>, vector<1x2x256xf32>
      %21 = vector.shape_cast %20 : vector<1x2x256xf32> to vector<2x256xf32>
      %22 = arith.truncf %21 : vector<2x256xf32> to vector<2x256xbf16>
      %23 = arith.index_cast %18 : i32 to index
      %c0_24 = arith.constant 0 : index
      %c0_25 = arith.constant 0 : index
      %24 = vector.load %arg2[%23, %c0_24, %c0_25] : memref<8x2x256xf32, #tpu.memory_space<vmem>>, vector<1x2x256xf32>
      %25 = vector.shape_cast %24 : vector<1x2x256xf32> to vector<2x256xf32>
      %26 = arith.truncf %25 : vector<2x256xf32> to vector<2x256xbf16>
      %c0_26 = arith.constant 0 : index
      %c0_27 = arith.constant 0 : index
      %c0_28 = arith.constant 0 : index
      %27 = vector.load %arg9[%c0_26, %c0_27, %c0_28] : memref<2x2x128xf32, #tpu.memory_space<vmem>>, vector<1x2x128xf32>
      %28 = vector.shape_cast %27 : vector<1x2x128xf32> to vector<2x128xf32>
      %cst = arith.constant dense<0.000000e+00> : vector<2x384xf32>
      %29 = tpu.matmul %22, %3, %cst {dimension_numbers = #tpu.dot_dimension_numbers<[1], [0], [0], [1], [0, 0, 1, 1], [], []>} : vector<2x256xbf16>, vector<256x384xbf16>, vector<2x384xf32> -> vector<2x384xf32>
      %30 = vector.broadcast %5 : vector<1x384xf32> to vector<2x384xf32>
      %31 = arith.addf %29, %30 : vector<2x384xf32>
      %32 = arith.truncf %28 : vector<2x128xf32> to vector<2x128xbf16>
      %cst_29 = arith.constant dense<0.000000e+00> : vector<2x384xf32>
      %33 = tpu.matmul %32, %8, %cst_29 {dimension_numbers = #tpu.dot_dimension_numbers<[1], [0], [0], [1], [0, 0, 1, 1], [], []>} : vector<2x128xbf16>, vector<128x384xbf16>, vector<2x384xf32> -> vector<2x384xf32>
      %34 = vector.broadcast %12 : vector<1x384xf32> to vector<2x384xf32>
      %35 = arith.addf %33, %34 : vector<2x384xf32>
      %36 = vector.extract_strided_slice %31 {offsets = [0, 0], sizes = [2, 128], strides = [1, 1]} : vector<2x384xf32> to vector<2x128xf32>
      %37 = vector.extract_strided_slice %35 {offsets = [0, 0], sizes = [2, 128], strides = [1, 1]} : vector<2x384xf32> to vector<2x128xf32>
      %38 = arith.addf %36, %37 : vector<2x128xf32>
      %39 = arith.negf %38 : vector<2x128xf32>
      %40 = math.exp %39 : vector<2x128xf32>
      %cst_30 = arith.constant 1.000000e+00 : f32
      %41 = vector.broadcast %cst_30 : f32 to vector<2x128xf32>
      %42 = arith.addf %41, %40 : vector<2x128xf32>
      %43 = arith.divf %41, %42 : vector<2x128xf32>
      %44 = vector.extract_strided_slice %31 {offsets = [0, 128], sizes = [2, 128], strides = [1, 1]} : vector<2x384xf32> to vector<2x128xf32>
      %45 = vector.extract_strided_slice %35 {offsets = [0, 128], sizes = [2, 128], strides = [1, 1]} : vector<2x384xf32> to vector<2x128xf32>
      %46 = arith.addf %44, %45 : vector<2x128xf32>
      %47 = arith.negf %46 : vector<2x128xf32>
      %48 = math.exp %47 : vector<2x128xf32>
      %cst_31 = arith.constant 1.000000e+00 : f32
      %49 = vector.broadcast %cst_31 : f32 to vector<2x128xf32>
      %50 = arith.addf %49, %48 : vector<2x128xf32>
      %51 = arith.divf %49, %50 : vector<2x128xf32>
      %52 = vector.extract_strided_slice %31 {offsets = [0, 256], sizes = [2, 128], strides = [1, 1]} : vector<2x384xf32> to vector<2x128xf32>
      %53 = vector.extract_strided_slice %35 {offsets = [0, 256], sizes = [2, 128], strides = [1, 1]} : vector<2x384xf32> to vector<2x128xf32>
      %54 = arith.mulf %43, %53 : vector<2x128xf32>
      %55 = arith.addf %52, %54 : vector<2x128xf32>
      %56 = math.tanh %55 : vector<2x128xf32>
      %cst_32 = arith.constant 1.000000e+00 : f32
      %57 = vector.broadcast %cst_32 : f32 to vector<2x128xf32>
      %58 = arith.subf %57, %51 : vector<2x128xf32>
      %59 = arith.mulf %58, %56 : vector<2x128xf32>
      %60 = arith.mulf %51, %28 : vector<2x128xf32>
      %61 = arith.addf %59, %60 : vector<2x128xf32>
      %c1_33 = arith.constant 1 : index
      %c0_34 = arith.constant 0 : index
      %c0_35 = arith.constant 0 : index
      %62 = vector.load %arg9[%c1_33, %c0_34, %c0_35] : memref<2x2x128xf32, #tpu.memory_space<vmem>>, vector<1x2x128xf32>
      %63 = vector.shape_cast %62 : vector<1x2x128xf32> to vector<2x128xf32>
      %cst_36 = arith.constant dense<0.000000e+00> : vector<2x384xf32>
      %64 = tpu.matmul %26, %4, %cst_36 {dimension_numbers = #tpu.dot_dimension_numbers<[1], [0], [0], [1], [0, 0, 1, 1], [], []>} : vector<2x256xbf16>, vector<256x384xbf16>, vector<2x384xf32> -> vector<2x384xf32>
      %65 = vector.broadcast %6 : vector<1x384xf32> to vector<2x384xf32>
      %66 = arith.addf %64, %65 : vector<2x384xf32>
      %67 = arith.truncf %63 : vector<2x128xf32> to vector<2x128xbf16>
      %cst_37 = arith.constant dense<0.000000e+00> : vector<2x384xf32>
      %68 = tpu.matmul %67, %10, %cst_37 {dimension_numbers = #tpu.dot_dimension_numbers<[1], [0], [0], [1], [0, 0, 1, 1], [], []>} : vector<2x128xbf16>, vector<128x384xbf16>, vector<2x384xf32> -> vector<2x384xf32>
      %69 = vector.broadcast %14 : vector<1x384xf32> to vector<2x384xf32>
      %70 = arith.addf %68, %69 : vector<2x384xf32>
      %71 = vector.extract_strided_slice %66 {offsets = [0, 0], sizes = [2, 128], strides = [1, 1]} : vector<2x384xf32> to vector<2x128xf32>
      %72 = vector.extract_strided_slice %70 {offsets = [0, 0], sizes = [2, 128], strides = [1, 1]} : vector<2x384xf32> to vector<2x128xf32>
      %73 = arith.addf %71, %72 : vector<2x128xf32>
      %74 = arith.negf %73 : vector<2x128xf32>
      %75 = math.exp %74 : vector<2x128xf32>
      %cst_38 = arith.constant 1.000000e+00 : f32
      %76 = vector.broadcast %cst_38 : f32 to vector<2x128xf32>
      %77 = arith.addf %76, %75 : vector<2x128xf32>
      %78 = arith.divf %76, %77 : vector<2x128xf32>
      %79 = vector.extract_strided_slice %66 {offsets = [0, 128], sizes = [2, 128], strides = [1, 1]} : vector<2x384xf32> to vector<2x128xf32>
      %80 = vector.extract_strided_slice %70 {offsets = [0, 128], sizes = [2, 128], strides = [1, 1]} : vector<2x384xf32> to vector<2x128xf32>
      %81 = arith.addf %79, %80 : vector<2x128xf32>
      %82 = arith.negf %81 : vector<2x128xf32>
      %83 = math.exp %82 : vector<2x128xf32>
      %cst_39 = arith.constant 1.000000e+00 : f32
      %84 = vector.broadcast %cst_39 : f32 to vector<2x128xf32>
      %85 = arith.addf %84, %83 : vector<2x128xf32>
      %86 = arith.divf %84, %85 : vector<2x128xf32>
      %87 = vector.extract_strided_slice %66 {offsets = [0, 256], sizes = [2, 128], strides = [1, 1]} : vector<2x384xf32> to vector<2x128xf32>
      %88 = vector.extract_strided_slice %70 {offsets = [0, 256], sizes = [2, 128], strides = [1, 1]} : vector<2x384xf32> to vector<2x128xf32>
      %89 = arith.mulf %78, %88 : vector<2x128xf32>
      %90 = arith.addf %87, %89 : vector<2x128xf32>
      %91 = math.tanh %90 : vector<2x128xf32>
      %cst_40 = arith.constant 1.000000e+00 : f32
      %92 = vector.broadcast %cst_40 : f32 to vector<2x128xf32>
      %93 = arith.subf %92, %86 : vector<2x128xf32>
      %94 = arith.mulf %93, %91 : vector<2x128xf32>
      %95 = arith.mulf %86, %63 : vector<2x128xf32>
      %96 = arith.addf %94, %95 : vector<2x128xf32>
      %c0_41 = arith.constant 0 : index
      %c0_42 = arith.constant 0 : index
      %c0_43 = arith.constant 0 : index
      %97 = vector.load %arg9[%c0_41, %c0_42, %c0_43] : memref<2x2x128xf32, #tpu.memory_space<vmem>>, vector<1x2x128xf32>
      %98 = vector.shape_cast %97 : vector<1x2x128xf32> to vector<2x128xf32>
      %99 = vector.shape_cast %61 : vector<2x128xf32> to vector<1x2x128xf32>
      tpu.vector_store %arg9[%c0_41, %c0_42, %c0_43], %99 {strides = array<i32>} : memref<2x2x128xf32, #tpu.memory_space<vmem>>, vector<1x2x128xf32>,
      %c1_44 = arith.constant 1 : index
      %c0_45 = arith.constant 0 : index
      %c0_46 = arith.constant 0 : index
      %100 = vector.load %arg9[%c1_44, %c0_45, %c0_46] : memref<2x2x128xf32, #tpu.memory_space<vmem>>, vector<1x2x128xf32>
      %101 = vector.shape_cast %100 : vector<1x2x128xf32> to vector<2x128xf32>
      %102 = vector.shape_cast %96 : vector<2x128xf32> to vector<1x2x128xf32>
      tpu.vector_store %arg9[%c1_44, %c0_45, %c0_46], %102 {strides = array<i32>} : memref<2x2x128xf32, #tpu.memory_space<vmem>>, vector<1x2x128xf32>,
      %103 = vector.shape_cast %61 : vector<2x128xf32> to vector<1x2x128xf32>
      %104 = arith.index_cast %17 : i32 to index
      %c0_47 = arith.constant 0 : index
      %c0_48 = arith.constant 0 : index
      %105 = vector.load %arg7[%104, %c0_47, %c0_48] : memref<8x2x128xf32, #tpu.memory_space<vmem>>, vector<1x2x128xf32>
      tpu.vector_store %arg7[%104, %c0_47, %c0_48], %103 {strides = array<i32>} : memref<8x2x128xf32, #tpu.memory_space<vmem>>, vector<1x2x128xf32>,
      %106 = vector.shape_cast %96 : vector<2x128xf32> to vector<1x2x128xf32>
      %107 = arith.index_cast %18 : i32 to index
      %c0_49 = arith.constant 0 : index
      %c0_50 = arith.constant 0 : index
      %108 = vector.load %arg8[%107, %c0_49, %c0_50] : memref<8x2x128xf32, #tpu.memory_space<vmem>>, vector<1x2x128xf32>
      tpu.vector_store %arg8[%107, %c0_49, %c0_50], %106 {strides = array<i32>} : memref<8x2x128xf32, #tpu.memory_space<vmem>>, vector<1x2x128xf32>,
    }
    %c8_i32_19 = arith.constant 8 : i32
    return
  }
  func.func @transform_0(%arg0: i32) -> (i32, i32, i32) {
    %c0_i32 = arith.constant 0 : i32
    %c0_i32_0 = arith.constant 0 : i32
    %c0_i32_1 = arith.constant 0 : i32
    return %arg0, %c0_i32, %c0_i32_0 : i32, i32, i32
  }
  func.func @transform_1(%arg0: i32) -> (i32, i32, i32) {
    %c0_i32 = arith.constant 0 : i32
    %0 = arith.subi %c0_i32, %arg0 : i32
    %c0_i32_0 = arith.constant 0 : i32
    %c0_i32_1 = arith.constant 0 : i32
    %c0_i32_2 = arith.constant 0 : i32
    return %0, %c0_i32_0, %c0_i32_1 : i32, i32, i32
  }
  func.func @transform_2(%arg0: i32) -> (i32, i32) {
    %c0_i32 = arith.constant 0 : i32
    %c0_i32_0 = arith.constant 0 : i32
    %c0_i32_1 = arith.constant 0 : i32
    return %c0_i32, %c0_i32_0 : i32, i32
  }
  func.func @transform_3(%arg0: i32) -> (i32, i32) {
    %c0_i32 = arith.constant 0 : i32
    %c0_i32_0 = arith.constant 0 : i32
    %c0_i32_1 = arith.constant 0 : i32
    return %c0_i32, %c0_i32_0 : i32, i32
  }
  func.func @transform_4(%arg0: i32) -> (i32, i32, i32) {
    %c0_i32 = arith.constant 0 : i32
    %c0_i32_0 = arith.constant 0 : i32
    %c0_i32_1 = arith.constant 0 : i32
    %c0_i32_2 = arith.constant 0 : i32
    return %c0_i32, %c0_i32_0, %c0_i32_1 : i32, i32, i32
  }
  func.func @transform_5(%arg0: i32) -> (i32, i32, i32) {
    %c0_i32 = arith.constant 0 : i32
    %c0_i32_0 = arith.constant 0 : i32
    %c0_i32_1 = arith.constant 0 : i32
    %c0_i32_2 = arith.constant 0 : i32
    return %c0_i32, %c0_i32_0, %c0_i32_1 : i32, i32, i32
  }
  func.func @transform_6(%arg0: i32) -> (i32, i32, i32) {
    %c0_i32 = arith.constant 0 : i32
    %c0_i32_0 = arith.constant 0 : i32
    %c0_i32_1 = arith.constant 0 : i32
    return %arg0, %c0_i32, %c0_i32_0 : i32, i32, i32
  }
  func.func @transform_7(%arg0: i32) -> (i32, i32, i32) {
    %c0_i32 = arith.constant 0 : i32
    %0 = arith.subi %c0_i32, %arg0 : i32
    %c0_i32_0 = arith.constant 0 : i32
    %c0_i32_1 = arith.constant 0 : i32
    %c0_i32_2 = arith.constant 0 : i32
    return %0, %c0_i32_0, %c0_i32_1 : i32, i32, i32
  }
}

module attributes {stable_mosaic.version = 11 : i64} {
  func.func @_gru_kernel(%arg0: i32, %arg1: memref<8x2x256xf32, #tpu.memory_space<vmem>>, %arg2: memref<8x2x256xf32, #tpu.memory_space<vmem>>, %arg3: memref<256x768xbf16, #tpu.memory_space<vmem>>, %arg4: memref<1x768xf32, #tpu.memory_space<vmem>>, %arg5: memref<2x128x384xbf16, #tpu.memory_space<vmem>>, %arg6: memref<2x1x384xf32, #tpu.memory_space<vmem>>, %arg7: memref<8x2x128xf32, #tpu.memory_space<vmem>>, %arg8: memref<8x2x128xf32, #tpu.memory_space<vmem>>, %arg9: memref<2x2x128xf32, #tpu.memory_space<vmem>>) attributes {dimension_semantics = [#tpu.dimension_semantics<arbitrary>], iteration_bounds = array<i64: 1>, scalar_prefetch = 0 : i64, scratch_operands = 1 : i64, tpu.core_type = #tpu.core_type<tc>, window_params = [{transform_indices = @transform_0, window_bounds = array<i64: 8, 2, 256>}, {transform_indices = @transform_1, window_bounds = array<i64: 8, 2, 256>}, {pipeline_mode = #tpu.pipeline_mode<synchronous>, transform_indices = @transform_2, window_bounds = array<i64: 256, 768>}, {pipeline_mode = #tpu.pipeline_mode<synchronous>, transform_indices = @transform_3, window_bounds = array<i64: 1, 768>}, {pipeline_mode = #tpu.pipeline_mode<synchronous>, transform_indices = @transform_4, window_bounds = array<i64: 2, 128, 384>}, {pipeline_mode = #tpu.pipeline_mode<synchronous>, transform_indices = @transform_5, window_bounds = array<i64: 2, 1, 384>}, {transform_indices = @transform_6, window_bounds = array<i64: 8, 2, 128>}, {transform_indices = @transform_7, window_bounds = array<i64: 8, 2, 128>}]} {
    %c0_i32 = arith.constant 0 : i32
    %0 = arith.cmpi eq, %arg0, %c0_i32 : i32
    %1 = arith.extui %0 : i1 to i32
    %c0_i32_0 = arith.constant 0 : i32
    %2 = arith.cmpi ne, %1, %c0_i32_0 : i32
    scf.if %2 {
      %cst = arith.constant 0.000000e+00 : f32
      %16 = vector.broadcast %cst : f32 to vector<2x2x128xf32>
      %c0_20 = arith.constant 0 : index
      %c0_21 = arith.constant 0 : index
      %c0_22 = arith.constant 0 : index
      %17 = vector.load %arg9[%c0_20, %c0_21, %c0_22] : memref<2x2x128xf32, #tpu.memory_space<vmem>>, vector<2x2x128xf32>
      tpu.vector_store %arg9[%c0_20, %c0_21, %c0_22], %16 {strides = array<i32>} : memref<2x2x128xf32, #tpu.memory_space<vmem>>, vector<2x2x128xf32>,
    } else {
    }
    %c0 = arith.constant 0 : index
    %c0_1 = arith.constant 0 : index
    %3 = vector.load %arg3[%c0, %c0_1] : memref<256x768xbf16, #tpu.memory_space<vmem>>, vector<256x384xbf16>
    %c0_2 = arith.constant 0 : index
    %c384 = arith.constant 384 : index
    %4 = vector.load %arg3[%c0_2, %c384] : memref<256x768xbf16, #tpu.memory_space<vmem>>, vector<256x384xbf16>
    %c0_3 = arith.constant 0 : index
    %c0_4 = arith.constant 0 : index
    %5 = vector.load %arg4[%c0_3, %c0_4] : memref<1x768xf32, #tpu.memory_space<vmem>>, vector<1x384xf32>
    %c0_5 = arith.constant 0 : index
    %c384_6 = arith.constant 384 : index
    %6 = vector.load %arg4[%c0_5, %c384_6] : memref<1x768xf32, #tpu.memory_space<vmem>>, vector<1x384xf32>
    %c0_7 = arith.constant 0 : index
    %c0_8 = arith.constant 0 : index
    %c0_9 = arith.constant 0 : index
    %7 = vector.load %arg5[%c0_7, %c0_8, %c0_9] : memref<2x128x384xbf16, #tpu.memory_space<vmem>>, vector<1x128x384xbf16>
    %8 = vector.shape_cast %7 : vector<1x128x384xbf16> to vector<128x384xbf16>
    %c1 = arith.constant 1 : index
    %c0_10 = arith.constant 0 : index
    %c0_11 = arith.constant 0 : index
    %9 = vector.load %arg5[%c1, %c0_10, %c0_11] : memref<2x128x384xbf16, #tpu.memory_space<vmem>>, vector<1x128x384xbf16>
    %10 = vector.shape_cast %9 : vector<1x128x384xbf16> to vector<128x384xbf16>
    %c0_12 = arith.constant 0 : index
    %c0_13 = arith.constant 0 : index
    %c0_14 = arith.constant 0 : index
    %11 = vector.load %arg6[%c0_12, %c0_13, %c0_14] : memref<2x1x384xf32, #tpu.memory_space<vmem>>, vector<1x1x384xf32>
    %12 = vector.shape_cast %11 : vector<1x1x384xf32> to vector<1x384xf32>
    %c1_15 = arith.constant 1 : index
    %c0_16 = arith.constant 0 : index
    %c0_17 = arith.constant 0 : index
    %13 = vector.load %arg6[%c1_15, %c0_16, %c0_17] : memref<2x1x384xf32, #tpu.memory_space<vmem>>, vector<1x1x384xf32>
    %14 = vector.shape_cast %13 : vector<1x1x384xf32> to vector<1x384xf32>
    %c0_i32_18 = arith.constant 0 : i32
    %c8_i32 = arith.constant 8 : i32
    %15 = arith.addi %c0_i32_18, %c8_i32 : i32
    %c1_i32 = arith.constant 1 : i32
    scf.for %arg10 = %c0_i32_18 to %15 step %c1_i32  : i32 {
      %c1_i32_20 = arith.constant 1 : i32
      %16 = arith.muli %arg10, %c1_i32_20 : i32
      %c0_i32_21 = arith.constant 0 : i32
      %17 = arith.addi %c0_i32_21, %16 : i32
      %c7_i32 = arith.constant 7 : i32
      %18 = arith.subi %c7_i32, %17 : i32
      %19 = arith.index_cast %17 : i32 to index
      %c0_22 = arith.constant 0 : index
      %c0_23 = arith.constant 0 : index
      %20 = vector.load %arg1[%19, %c0_22, %c0_23] : memref<8x2x256xf32, #tpu.memory_space<vmem>>, vector<1x2x256xf32>
      %21 = vector.shape_cast %20 : vector<1x2x256xf32> to vector<2x256xf32>
      %22 = arith.truncf %21 : vector<2x256xf32> to vector<2x256xbf16>
      %23 = arith.index_cast %18 : i32 to index
      %c0_24 = arith.constant 0 : index
      %c0_25 = arith.constant 0 : index
      %24 = vector.load %arg2[%23, %c0_24, %c0_25] : memref<8x2x256xf32, #tpu.memory_space<vmem>>, vector<1x2x256xf32>
      %25 = vector.shape_cast %24 : vector<1x2x256xf32> to vector<2x256xf32>
      %26 = arith.truncf %25 : vector<2x256xf32> to vector<2x256xbf16>
      %c0_26 = arith.constant 0 : index
      %c0_27 = arith.constant 0 : index
      %c0_28 = arith.constant 0 : index
      %27 = vector.load %arg9[%c0_26, %c0_27, %c0_28] : memref<2x2x128xf32, #tpu.memory_space<vmem>>, vector<1x2x128xf32>
      %28 = vector.shape_cast %27 : vector<1x2x128xf32> to vector<2x128xf32>
      %cst = arith.constant dense<0.000000e+00> : vector<2x384xf32>
      %29 = tpu.matmul %22, %3, %cst {dimension_numbers = #tpu.dot_dimension_numbers<[1], [0], [0], [1], [0, 0, 1, 1], [], []>} : vector<2x256xbf16>, vector<256x384xbf16>, vector<2x384xf32> -> vector<2x384xf32>
      %30 = vector.broadcast %5 : vector<1x384xf32> to vector<2x384xf32>
      %31 = arith.addf %29, %30 : vector<2x384xf32>
      %32 = arith.truncf %28 : vector<2x128xf32> to vector<2x128xbf16>
      %cst_29 = arith.constant dense<0.000000e+00> : vector<2x384xf32>
      %33 = tpu.matmul %32, %8, %cst_29 {dimension_numbers = #tpu.dot_dimension_numbers<[1], [0], [0], [1], [0, 0, 1, 1], [], []>} : vector<2x128xbf16>, vector<128x384xbf16>, vector<2x384xf32> -> vector<2x384xf32>
      %34 = vector.broadcast %12 : vector<1x384xf32> to vector<2x384xf32>
      %35 = arith.addf %33, %34 : vector<2x384xf32>
      %36 = vector.extract_strided_slice %31 {offsets = [0, 0], sizes = [2, 128], strides = [1, 1]} : vector<2x384xf32> to vector<2x128xf32>
      %37 = vector.extract_strided_slice %35 {offsets = [0, 0], sizes = [2, 128], strides = [1, 1]} : vector<2x384xf32> to vector<2x128xf32>
      %38 = arith.addf %36, %37 : vector<2x128xf32>
      %39 = arith.negf %38 : vector<2x128xf32>
      %40 = math.exp %39 : vector<2x128xf32>
      %cst_30 = arith.constant 1.000000e+00 : f32
      %41 = vector.broadcast %cst_30 : f32 to vector<2x128xf32>
      %42 = arith.addf %41, %40 : vector<2x128xf32>
      %43 = arith.divf %41, %42 : vector<2x128xf32>
      %44 = vector.extract_strided_slice %31 {offsets = [0, 128], sizes = [2, 128], strides = [1, 1]} : vector<2x384xf32> to vector<2x128xf32>
      %45 = vector.extract_strided_slice %35 {offsets = [0, 128], sizes = [2, 128], strides = [1, 1]} : vector<2x384xf32> to vector<2x128xf32>
      %46 = arith.addf %44, %45 : vector<2x128xf32>
      %47 = arith.negf %46 : vector<2x128xf32>
      %48 = math.exp %47 : vector<2x128xf32>
      %cst_31 = arith.constant 1.000000e+00 : f32
      %49 = vector.broadcast %cst_31 : f32 to vector<2x128xf32>
      %50 = arith.addf %49, %48 : vector<2x128xf32>
      %51 = arith.divf %49, %50 : vector<2x128xf32>
      %52 = vector.extract_strided_slice %31 {offsets = [0, 256], sizes = [2, 128], strides = [1, 1]} : vector<2x384xf32> to vector<2x128xf32>
      %53 = vector.extract_strided_slice %35 {offsets = [0, 256], sizes = [2, 128], strides = [1, 1]} : vector<2x384xf32> to vector<2x128xf32>
      %54 = arith.mulf %43, %53 : vector<2x128xf32>
      %55 = arith.addf %52, %54 : vector<2x128xf32>
      %56 = math.tanh %55 : vector<2x128xf32>
      %cst_32 = arith.constant 1.000000e+00 : f32
      %57 = vector.broadcast %cst_32 : f32 to vector<2x128xf32>
      %58 = arith.subf %57, %51 : vector<2x128xf32>
      %59 = arith.mulf %58, %56 : vector<2x128xf32>
      %60 = arith.mulf %51, %28 : vector<2x128xf32>
      %61 = arith.addf %59, %60 : vector<2x128xf32>
      %c1_33 = arith.constant 1 : index
      %c0_34 = arith.constant 0 : index
      %c0_35 = arith.constant 0 : index
      %62 = vector.load %arg9[%c1_33, %c0_34, %c0_35] : memref<2x2x128xf32, #tpu.memory_space<vmem>>, vector<1x2x128xf32>
      %63 = vector.shape_cast %62 : vector<1x2x128xf32> to vector<2x128xf32>
      %cst_36 = arith.constant dense<0.000000e+00> : vector<2x384xf32>
      %64 = tpu.matmul %26, %4, %cst_36 {dimension_numbers = #tpu.dot_dimension_numbers<[1], [0], [0], [1], [0, 0, 1, 1], [], []>} : vector<2x256xbf16>, vector<256x384xbf16>, vector<2x384xf32> -> vector<2x384xf32>
      %65 = vector.broadcast %6 : vector<1x384xf32> to vector<2x384xf32>
      %66 = arith.addf %64, %65 : vector<2x384xf32>
      %67 = arith.truncf %63 : vector<2x128xf32> to vector<2x128xbf16>
      %cst_37 = arith.constant dense<0.000000e+00> : vector<2x384xf32>
      %68 = tpu.matmul %67, %10, %cst_37 {dimension_numbers = #tpu.dot_dimension_numbers<[1], [0], [0], [1], [0, 0, 1, 1], [], []>} : vector<2x128xbf16>, vector<128x384xbf16>, vector<2x384xf32> -> vector<2x384xf32>
      %69 = vector.broadcast %14 : vector<1x384xf32> to vector<2x384xf32>
      %70 = arith.addf %68, %69 : vector<2x384xf32>
      %71 = vector.extract_strided_slice %66 {offsets = [0, 0], sizes = [2, 128], strides = [1, 1]} : vector<2x384xf32> to vector<2x128xf32>
      %72 = vector.extract_strided_slice %70 {offsets = [0, 0], sizes = [2, 128], strides = [1, 1]} : vector<2x384xf32> to vector<2x128xf32>
      %73 = arith.addf %71, %72 : vector<2x128xf32>
      %74 = arith.negf %73 : vector<2x128xf32>
      %75 = math.exp %74 : vector<2x128xf32>
      %cst_38 = arith.constant 1.000000e+00 : f32
      %76 = vector.broadcast %cst_38 : f32 to vector<2x128xf32>
      %77 = arith.addf %76, %75 : vector<2x128xf32>
      %78 = arith.divf %76, %77 : vector<2x128xf32>
      %79 = vector.extract_strided_slice %66 {offsets = [0, 128], sizes = [2, 128], strides = [1, 1]} : vector<2x384xf32> to vector<2x128xf32>
      %80 = vector.extract_strided_slice %70 {offsets = [0, 128], sizes = [2, 128], strides = [1, 1]} : vector<2x384xf32> to vector<2x128xf32>
      %81 = arith.addf %79, %80 : vector<2x128xf32>
      %82 = arith.negf %81 : vector<2x128xf32>
      %83 = math.exp %82 : vector<2x128xf32>
      %cst_39 = arith.constant 1.000000e+00 : f32
      %84 = vector.broadcast %cst_39 : f32 to vector<2x128xf32>
      %85 = arith.addf %84, %83 : vector<2x128xf32>
      %86 = arith.divf %84, %85 : vector<2x128xf32>
      %87 = vector.extract_strided_slice %66 {offsets = [0, 256], sizes = [2, 128], strides = [1, 1]} : vector<2x384xf32> to vector<2x128xf32>
      %88 = vector.extract_strided_slice %70 {offsets = [0, 256], sizes = [2, 128], strides = [1, 1]} : vector<2x384xf32> to vector<2x128xf32>
      %89 = arith.mulf %78, %88 : vector<2x128xf32>
      %90 = arith.addf %87, %89 : vector<2x128xf32>
      %91 = math.tanh %90 : vector<2x128xf32>
      %cst_40 = arith.constant 1.000000e+00 : f32
      %92 = vector.broadcast %cst_40 : f32 to vector<2x128xf32>
      %93 = arith.subf %92, %86 : vector<2x128xf32>
      %94 = arith.mulf %93, %91 : vector<2x128xf32>
      %95 = arith.mulf %86, %63 : vector<2x128xf32>
      %96 = arith.addf %94, %95 : vector<2x128xf32>
      %c0_41 = arith.constant 0 : index
      %c0_42 = arith.constant 0 : index
      %c0_43 = arith.constant 0 : index
      %97 = vector.load %arg9[%c0_41, %c0_42, %c0_43] : memref<2x2x128xf32, #tpu.memory_space<vmem>>, vector<1x2x128xf32>
      %98 = vector.shape_cast %97 : vector<1x2x128xf32> to vector<2x128xf32>
      %99 = vector.shape_cast %61 : vector<2x128xf32> to vector<1x2x128xf32>
      tpu.vector_store %arg9[%c0_41, %c0_42, %c0_43], %99 {strides = array<i32>} : memref<2x2x128xf32, #tpu.memory_space<vmem>>, vector<1x2x128xf32>,
      %c1_44 = arith.constant 1 : index
      %c0_45 = arith.constant 0 : index
      %c0_46 = arith.constant 0 : index
      %100 = vector.load %arg9[%c1_44, %c0_45, %c0_46] : memref<2x2x128xf32, #tpu.memory_space<vmem>>, vector<1x2x128xf32>
      %101 = vector.shape_cast %100 : vector<1x2x128xf32> to vector<2x128xf32>
      %102 = vector.shape_cast %96 : vector<2x128xf32> to vector<1x2x128xf32>
      tpu.vector_store %arg9[%c1_44, %c0_45, %c0_46], %102 {strides = array<i32>} : memref<2x2x128xf32, #tpu.memory_space<vmem>>, vector<1x2x128xf32>,
      %103 = vector.shape_cast %61 : vector<2x128xf32> to vector<1x2x128xf32>
      %104 = arith.index_cast %17 : i32 to index
      %c0_47 = arith.constant 0 : index
      %c0_48 = arith.constant 0 : index
      %105 = vector.load %arg7[%104, %c0_47, %c0_48] : memref<8x2x128xf32, #tpu.memory_space<vmem>>, vector<1x2x128xf32>
      tpu.vector_store %arg7[%104, %c0_47, %c0_48], %103 {strides = array<i32>} : memref<8x2x128xf32, #tpu.memory_space<vmem>>, vector<1x2x128xf32>,
      %106 = vector.shape_cast %96 : vector<2x128xf32> to vector<1x2x128xf32>
      %107 = arith.index_cast %18 : i32 to index
      %c0_49 = arith.constant 0 : index
      %c0_50 = arith.constant 0 : index
      %108 = vector.load %arg8[%107, %c0_49, %c0_50] : memref<8x2x128xf32, #tpu.memory_space<vmem>>, vector<1x2x128xf32>
      tpu.vector_store %arg8[%107, %c0_49, %c0_50], %106 {strides = array<i32>} : memref<8x2x128xf32, #tpu.memory_space<vmem>>, vector<1x2x128xf32>,
    }
    %c8_i32_19 = arith.constant 8 : i32
    return
  }
  func.func @transform_0(%arg0: i32) -> (i32, i32, i32) {
    %c0_i32 = arith.constant 0 : i32
    %c0_i32_0 = arith.constant 0 : i32
    %c0_i32_1 = arith.constant 0 : i32
    return %arg0, %c0_i32, %c0_i32_0 : i32, i32, i32
  }
  func.func @transform_1(%arg0: i32) -> (i32, i32, i32) {
    %c0_i32 = arith.constant 0 : i32
    %0 = arith.subi %c0_i32, %arg0 : i32
    %c0_i32_0 = arith.constant 0 : i32
    %c0_i32_1 = arith.constant 0 : i32
    %c0_i32_2 = arith.constant 0 : i32
    return %0, %c0_i32_0, %c0_i32_1 : i32, i32, i32
  }
  func.func @transform_2(%arg0: i32) -> (i32, i32) {
    %c0_i32 = arith.constant 0 : i32
    %c0_i32_0 = arith.constant 0 : i32
    %c0_i32_1 = arith.constant 0 : i32
    return %c0_i32, %c0_i32_0 : i32, i32
  }
  func.func @transform_3(%arg0: i32) -> (i32, i32) {
    %c0_i32 = arith.constant 0 : i32
    %c0_i32_0 = arith.constant 0 : i32
    %c0_i32_1 = arith.constant 0 : i32
    return %c0_i32, %c0_i32_0 : i32, i32
  }
  func.func @transform_4(%arg0: i32) -> (i32, i32, i32) {
    %c0_i32 = arith.constant 0 : i32
    %c0_i32_0 = arith.constant 0 : i32
    %c0_i32_1 = arith.constant 0 : i32
    %c0_i32_2 = arith.constant 0 : i32
    return %c0_i32, %c0_i32_0, %c0_i32_1 : i32, i32, i32
  }
  func.func @transform_5(%arg0: i32) -> (i32, i32, i32) {
    %c0_i32 = arith.constant 0 : i32
    %c0_i32_0 = arith.constant 0 : i32
    %c0_i32_1 = arith.constant 0 : i32
    %c0_i32_2 = arith.constant 0 : i32
    return %c0_i32, %c0_i32_0, %c0_i32_1 : i32, i32, i32
  }
  func.func @transform_6(%arg0: i32) -> (i32, i32, i32) {
    %c0_i32 = arith.constant 0 : i32
    %c0_i32_0 = arith.constant 0 : i32
    %c0_i32_1 = arith.constant 0 : i32
    return %arg0, %c0_i32, %c0_i32_0 : i32, i32, i32
  }
  func.func @transform_7(%arg0: i32) -> (i32, i32, i32) {
    %c0_i32 = arith.constant 0 : i32
    %0 = arith.subi %c0_i32, %arg0 : i32
    %c0_i32_0 = arith.constant 0 : i32
    %c0_i32_1 = arith.constant 0 : i32
    %c0_i32_2 = arith.constant 0 : i32
    return %0, %c0_i32_0, %c0_i32_1 : i32, i32, i32
  }
}

module attributes {stable_mosaic.version = 11 : i64} {
  func.func @_conv_fusion_kernel(%arg0: i32, %arg1: i32, %arg2: memref<1x8x64xbf16, #tpu.memory_space<vmem>>, %arg3: memref<1x8x64xbf16, #tpu.memory_space<vmem>>, %arg4: memref<64x512xbf16, #tpu.memory_space<vmem>>, %arg5: memref<1x512xf32, #tpu.memory_space<vmem>>, %arg6: memref<256x128xbf16, #tpu.memory_space<vmem>>, %arg7: memref<1x128xf32, #tpu.memory_space<vmem>>, %arg8: memref<384x256xbf16, #tpu.memory_space<vmem>>, %arg9: memref<1x256xf32, #tpu.memory_space<vmem>>, %arg10: memref<1x8x256xf32, #tpu.memory_space<vmem>>) attributes {dimension_semantics = [#tpu.dimension_semantics<parallel>, #tpu.dimension_semantics<parallel>], iteration_bounds = array<i64: 2, 1>, scalar_prefetch = 0 : i64, scratch_operands = 0 : i64, tpu.core_type = #tpu.core_type<tc>, window_params = [{transform_indices = @transform_0, window_bounds = array<i64: 1, 8, 64>}, {transform_indices = @transform_1, window_bounds = array<i64: 1, 8, 64>}, {pipeline_mode = #tpu.pipeline_mode<synchronous>, transform_indices = @transform_2, window_bounds = array<i64: 64, 512>}, {pipeline_mode = #tpu.pipeline_mode<synchronous>, transform_indices = @transform_3, window_bounds = array<i64: 1, 512>}, {pipeline_mode = #tpu.pipeline_mode<synchronous>, transform_indices = @transform_4, window_bounds = array<i64: 256, 128>}, {pipeline_mode = #tpu.pipeline_mode<synchronous>, transform_indices = @transform_5, window_bounds = array<i64: 1, 128>}, {pipeline_mode = #tpu.pipeline_mode<synchronous>, transform_indices = @transform_6, window_bounds = array<i64: 384, 256>}, {pipeline_mode = #tpu.pipeline_mode<synchronous>, transform_indices = @transform_7, window_bounds = array<i64: 1, 256>}, {transform_indices = @transform_8, window_bounds = array<i64: 1, 8, 256>}]} {
    %c0 = arith.constant 0 : index
    %c0_0 = arith.constant 0 : index
    %0 = vector.load %arg4[%c0, %c0_0] : memref<64x512xbf16, #tpu.memory_space<vmem>>, vector<64x512xbf16>
    %c0_1 = arith.constant 0 : index
    %c0_2 = arith.constant 0 : index
    %1 = vector.load %arg5[%c0_1, %c0_2] : memref<1x512xf32, #tpu.memory_space<vmem>>, vector<1x512xf32>
    %c0_3 = arith.constant 0 : index
    %c0_4 = arith.constant 0 : index
    %c0_5 = arith.constant 0 : index
    %2 = vector.load %arg2[%c0_3, %c0_4, %c0_5] : memref<1x8x64xbf16, #tpu.memory_space<vmem>>, vector<1x8x64xbf16>
    %3 = vector.shape_cast %2 : vector<1x8x64xbf16> to vector<8x64xbf16>
    %cst = arith.constant dense<0.000000e+00> : vector<8x512xf32>
    %4 = tpu.matmul %3, %0, %cst {dimension_numbers = #tpu.dot_dimension_numbers<[1], [0], [0], [1], [0, 0, 1, 1], [], []>} : vector<8x64xbf16>, vector<64x512xbf16>, vector<8x512xf32> -> vector<8x512xf32>
    %5 = vector.broadcast %1 : vector<1x512xf32> to vector<8x512xf32>
    %6 = arith.addf %4, %5 : vector<8x512xf32>
    %cst_6 = arith.constant 0.000000e+00 : f32
    %7 = vector.broadcast %cst_6 : f32 to vector<8x512xf32>
    %8 = arith.maximumf %6, %7 : vector<8x512xf32>
    %c0_7 = arith.constant 0 : index
    %c0_8 = arith.constant 0 : index
    %c0_9 = arith.constant 0 : index
    %9 = vector.load %arg3[%c0_7, %c0_8, %c0_9] : memref<1x8x64xbf16, #tpu.memory_space<vmem>>, vector<1x8x64xbf16>
    %10 = vector.shape_cast %9 : vector<1x8x64xbf16> to vector<8x64xbf16>
    %cst_10 = arith.constant dense<0.000000e+00> : vector<8x512xf32>
    %11 = tpu.matmul %10, %0, %cst_10 {dimension_numbers = #tpu.dot_dimension_numbers<[1], [0], [0], [1], [0, 0, 1, 1], [], []>} : vector<8x64xbf16>, vector<64x512xbf16>, vector<8x512xf32> -> vector<8x512xf32>
    %12 = vector.broadcast %1 : vector<1x512xf32> to vector<8x512xf32>
    %13 = arith.addf %11, %12 : vector<8x512xf32>
    %cst_11 = arith.constant 0.000000e+00 : f32
    %14 = vector.broadcast %cst_11 : f32 to vector<8x512xf32>
    %15 = arith.maximumf %13, %14 : vector<8x512xf32>
    %16 = vector.extract_strided_slice %8 {offsets = [0, 0], sizes = [8, 256], strides = [1, 1]} : vector<8x512xf32> to vector<8x256xf32>
    %17 = vector.extract_strided_slice %15 {offsets = [0, 0], sizes = [8, 256], strides = [1, 1]} : vector<8x512xf32> to vector<8x256xf32>
    %18 = arith.addf %16, %17 : vector<8x256xf32>
    %cst_12 = arith.constant 5.000000e-01 : f32
    %19 = vector.broadcast %cst_12 : f32 to vector<8x256xf32>
    %20 = arith.mulf %19, %18 : vector<8x256xf32>
    %21 = vector.extract_strided_slice %8 {offsets = [0, 384], sizes = [8, 128], strides = [1, 1]} : vector<8x512xf32> to vector<8x128xf32>
    %22 = vector.extract_strided_slice %15 {offsets = [0, 384], sizes = [8, 128], strides = [1, 1]} : vector<8x512xf32> to vector<8x128xf32>
    %23 = arith.addf %21, %22 : vector<8x128xf32>
    %cst_13 = arith.constant 5.000000e-01 : f32
    %24 = vector.broadcast %cst_13 : f32 to vector<8x128xf32>
    %25 = arith.mulf %24, %23 : vector<8x128xf32>
    %26 = vector.extract_strided_slice %8 {offsets = [0, 256], sizes = [8, 128], strides = [1, 1]} : vector<8x512xf32> to vector<8x128xf32>
    %27 = vector.extract_strided_slice %15 {offsets = [0, 256], sizes = [8, 128], strides = [1, 1]} : vector<8x512xf32> to vector<8x128xf32>
    %28 = arith.maximumf %26, %27 : vector<8x128xf32>
    %29 = arith.truncf %28 : vector<8x128xf32> to vector<8x128xbf16>
    %c0_14 = arith.constant 0 : index
    %c0_15 = arith.constant 0 : index
    %30 = vector.load %arg6[%c0_14, %c0_15] : memref<256x128xbf16, #tpu.memory_space<vmem>>, vector<128x128xbf16>
    %cst_16 = arith.constant dense<0.000000e+00> : vector<8x128xf32>
    %31 = tpu.matmul %29, %30, %cst_16 {dimension_numbers = #tpu.dot_dimension_numbers<[1], [0], [0], [1], [0, 0, 1, 1], [], []>} : vector<8x128xbf16>, vector<128x128xbf16>, vector<8x128xf32> -> vector<8x128xf32>
    %32 = arith.truncf %25 : vector<8x128xf32> to vector<8x128xbf16>
    %c128 = arith.constant 128 : index
    %c0_17 = arith.constant 0 : index
    %33 = vector.load %arg6[%c128, %c0_17] : memref<256x128xbf16, #tpu.memory_space<vmem>>, vector<128x128xbf16>
    %cst_18 = arith.constant dense<0.000000e+00> : vector<8x128xf32>
    %34 = tpu.matmul %32, %33, %cst_18 {dimension_numbers = #tpu.dot_dimension_numbers<[1], [0], [0], [1], [0, 0, 1, 1], [], []>} : vector<8x128xbf16>, vector<128x128xbf16>, vector<8x128xf32> -> vector<8x128xf32>
    %35 = arith.addf %31, %34 : vector<8x128xf32>
    %c0_19 = arith.constant 0 : index
    %c0_20 = arith.constant 0 : index
    %36 = vector.load %arg7[%c0_19, %c0_20] : memref<1x128xf32, #tpu.memory_space<vmem>>, vector<1x128xf32>
    %37 = vector.broadcast %36 : vector<1x128xf32> to vector<8x128xf32>
    %38 = arith.addf %35, %37 : vector<8x128xf32>
    %cst_21 = arith.constant 0.000000e+00 : f32
    %39 = vector.broadcast %cst_21 : f32 to vector<8x128xf32>
    %40 = arith.maximumf %38, %39 : vector<8x128xf32>
    %41 = arith.addf %40, %25 : vector<8x128xf32>
    %42 = arith.truncf %41 : vector<8x128xf32> to vector<8x128xbf16>
    %c0_22 = arith.constant 0 : index
    %c0_23 = arith.constant 0 : index
    %43 = vector.load %arg8[%c0_22, %c0_23] : memref<384x256xbf16, #tpu.memory_space<vmem>>, vector<128x256xbf16>
    %cst_24 = arith.constant dense<0.000000e+00> : vector<8x256xf32>
    %44 = tpu.matmul %42, %43, %cst_24 {dimension_numbers = #tpu.dot_dimension_numbers<[1], [0], [0], [1], [0, 0, 1, 1], [], []>} : vector<8x128xbf16>, vector<128x256xbf16>, vector<8x256xf32> -> vector<8x256xf32>
    %45 = arith.truncf %20 : vector<8x256xf32> to vector<8x256xbf16>
    %c128_25 = arith.constant 128 : index
    %c0_26 = arith.constant 0 : index
    %46 = vector.load %arg8[%c128_25, %c0_26] : memref<384x256xbf16, #tpu.memory_space<vmem>>, vector<256x256xbf16>
    %cst_27 = arith.constant dense<0.000000e+00> : vector<8x256xf32>
    %47 = tpu.matmul %45, %46, %cst_27 {dimension_numbers = #tpu.dot_dimension_numbers<[1], [0], [0], [1], [0, 0, 1, 1], [], []>} : vector<8x256xbf16>, vector<256x256xbf16>, vector<8x256xf32> -> vector<8x256xf32>
    %48 = arith.addf %44, %47 : vector<8x256xf32>
    %c0_28 = arith.constant 0 : index
    %c0_29 = arith.constant 0 : index
    %49 = vector.load %arg9[%c0_28, %c0_29] : memref<1x256xf32, #tpu.memory_space<vmem>>, vector<1x256xf32>
    %50 = vector.broadcast %49 : vector<1x256xf32> to vector<8x256xf32>
    %51 = arith.addf %48, %50 : vector<8x256xf32>
    %cst_30 = arith.constant 0.000000e+00 : f32
    %52 = vector.broadcast %cst_30 : f32 to vector<8x256xf32>
    %53 = arith.maximumf %51, %52 : vector<8x256xf32>
    %54 = arith.addf %53, %20 : vector<8x256xf32>
    %c0_31 = arith.constant 0 : index
    %c0_32 = arith.constant 0 : index
    %c0_33 = arith.constant 0 : index
    %55 = vector.load %arg10[%c0_31, %c0_32, %c0_33] : memref<1x8x256xf32, #tpu.memory_space<vmem>>, vector<1x8x256xf32>
    %56 = vector.shape_cast %55 : vector<1x8x256xf32> to vector<8x256xf32>
    %57 = vector.shape_cast %54 : vector<8x256xf32> to vector<1x8x256xf32>
    tpu.vector_store %arg10[%c0_31, %c0_32, %c0_33], %57 {strides = array<i32>} : memref<1x8x256xf32, #tpu.memory_space<vmem>>, vector<1x8x256xf32>,
    return
  }
  func.func @transform_0(%arg0: i32, %arg1: i32) -> (i32, i32, i32) {
    %c0_i32 = arith.constant 0 : i32
    %c0_i32_0 = arith.constant 0 : i32
    return %arg0, %arg1, %c0_i32 : i32, i32, i32
  }
  func.func @transform_1(%arg0: i32, %arg1: i32) -> (i32, i32, i32) {
    %c0_i32 = arith.constant 0 : i32
    %c0_i32_0 = arith.constant 0 : i32
    return %arg0, %arg1, %c0_i32 : i32, i32, i32
  }
  func.func @transform_2(%arg0: i32, %arg1: i32) -> (i32, i32) {
    %c0_i32 = arith.constant 0 : i32
    %c0_i32_0 = arith.constant 0 : i32
    %c0_i32_1 = arith.constant 0 : i32
    return %c0_i32, %c0_i32_0 : i32, i32
  }
  func.func @transform_3(%arg0: i32, %arg1: i32) -> (i32, i32) {
    %c0_i32 = arith.constant 0 : i32
    %c0_i32_0 = arith.constant 0 : i32
    %c0_i32_1 = arith.constant 0 : i32
    return %c0_i32, %c0_i32_0 : i32, i32
  }
  func.func @transform_4(%arg0: i32, %arg1: i32) -> (i32, i32) {
    %c0_i32 = arith.constant 0 : i32
    %c0_i32_0 = arith.constant 0 : i32
    %c0_i32_1 = arith.constant 0 : i32
    return %c0_i32, %c0_i32_0 : i32, i32
  }
  func.func @transform_5(%arg0: i32, %arg1: i32) -> (i32, i32) {
    %c0_i32 = arith.constant 0 : i32
    %c0_i32_0 = arith.constant 0 : i32
    %c0_i32_1 = arith.constant 0 : i32
    return %c0_i32, %c0_i32_0 : i32, i32
  }
  func.func @transform_6(%arg0: i32, %arg1: i32) -> (i32, i32) {
    %c0_i32 = arith.constant 0 : i32
    %c0_i32_0 = arith.constant 0 : i32
    %c0_i32_1 = arith.constant 0 : i32
    return %c0_i32, %c0_i32_0 : i32, i32
  }
  func.func @transform_7(%arg0: i32, %arg1: i32) -> (i32, i32) {
    %c0_i32 = arith.constant 0 : i32
    %c0_i32_0 = arith.constant 0 : i32
    %c0_i32_1 = arith.constant 0 : i32
    return %c0_i32, %c0_i32_0 : i32, i32
  }
  func.func @transform_8(%arg0: i32, %arg1: i32) -> (i32, i32, i32) {
    %c0_i32 = arith.constant 0 : i32
    %c0_i32_0 = arith.constant 0 : i32
    return %arg0, %arg1, %c0_i32 : i32, i32, i32
  }
}

module attributes {stable_mosaic.version = 11 : i64} {
  func.func @_head_kernel(%arg0: memref<8x256xf32, #tpu.memory_space<vmem>>, %arg1: memref<256x64xf32, #tpu.memory_space<vmem>>, %arg2: memref<1x64xf32, #tpu.memory_space<vmem>>, %arg3: memref<64x128xf32, #tpu.memory_space<vmem>>, %arg4: memref<1x128xf32, #tpu.memory_space<vmem>>, %arg5: memref<8x128xf32, #tpu.memory_space<vmem>>) attributes {dimension_semantics = [], scalar_prefetch = 0 : i64, scratch_operands = 0 : i64, tpu.core_type = #tpu.core_type<tc>} {
    %c0 = arith.constant 0 : index
    %c0_0 = arith.constant 0 : index
    %0 = vector.load %arg0[%c0, %c0_0] : memref<8x256xf32, #tpu.memory_space<vmem>>, vector<8x256xf32>
    %c0_1 = arith.constant 0 : index
    %c0_2 = arith.constant 0 : index
    %1 = vector.load %arg1[%c0_1, %c0_2] : memref<256x64xf32, #tpu.memory_space<vmem>>, vector<256x64xf32>
    %cst = arith.constant dense<0.000000e+00> : vector<8x64xf32>
    %2 = tpu.matmul %0, %1, %cst {dimension_numbers = #tpu.dot_dimension_numbers<[1], [0], [0], [1], [0, 0, 1, 1], [], []>} : vector<8x256xf32>, vector<256x64xf32>, vector<8x64xf32> -> vector<8x64xf32>
    %c0_3 = arith.constant 0 : index
    %c0_4 = arith.constant 0 : index
    %3 = vector.load %arg2[%c0_3, %c0_4] : memref<1x64xf32, #tpu.memory_space<vmem>>, vector<1x64xf32>
    %4 = vector.broadcast %3 : vector<1x64xf32> to vector<8x64xf32>
    %5 = arith.addf %2, %4 : vector<8x64xf32>
    %6 = math.tanh %5 : vector<8x64xf32>
    %c0_5 = arith.constant 0 : index
    %c0_6 = arith.constant 0 : index
    %7 = vector.load %arg3[%c0_5, %c0_6] : memref<64x128xf32, #tpu.memory_space<vmem>>, vector<64x128xf32>
    %cst_7 = arith.constant dense<0.000000e+00> : vector<8x128xf32>
    %8 = tpu.matmul %6, %7, %cst_7 {dimension_numbers = #tpu.dot_dimension_numbers<[1], [0], [0], [1], [0, 0, 1, 1], [], []>} : vector<8x64xf32>, vector<64x128xf32>, vector<8x128xf32> -> vector<8x128xf32>
    %c0_8 = arith.constant 0 : index
    %c0_9 = arith.constant 0 : index
    %9 = vector.load %arg4[%c0_8, %c0_9] : memref<1x128xf32, #tpu.memory_space<vmem>>, vector<1x128xf32>
    %10 = vector.broadcast %9 : vector<1x128xf32> to vector<8x128xf32>
    %11 = arith.addf %8, %10 : vector<8x128xf32>
    %c0_10 = arith.constant 0 : index
    %c0_11 = arith.constant 0 : index
    %12 = vector.load %arg5[%c0_10, %c0_11] : memref<8x128xf32, #tpu.memory_space<vmem>>, vector<8x128xf32>
    tpu.vector_store %arg5[%c0_10, %c0_11], %11 {strides = array<i32>} : memref<8x128xf32, #tpu.memory_space<vmem>>, vector<8x128xf32>,
    return
  }
}

</mosaic_0001>

<llo_original>
// kernel: _lambda_.11
$region0: #{_lambda_.11}
  #allocation0 [shape = 'u32[]', space=smem, size = 0x4, offset = 0x4, fixed_abs, tag = 'smem constant byte address 0x4 - core index']
  #allocation1 [shape = 'u32[144,128]{1,0:T(1,128)}', space=vmem, size = 0x12000, scoped, tag = 'internal scratch']
  %s0 = inlined_call_operand.vmem [shape: f32[8,256], index: 0, kind: input, shape index: {}]
  %s1 = inlined_call_operand.vmem [shape: f32[256,64], index: 1, kind: input, shape index: {}]
  %s2 = inlined_call_operand.vmem [shape: f32[1,64], index: 2, kind: input, shape index: {}]
  %s3 = inlined_call_operand.vmem [shape: f32[64,128], index: 3, kind: input, shape index: {}]
  %s4 = inlined_call_operand.vmem [shape: f32[1,128], index: 4, kind: input, shape index: {}]
  %s5 = inlined_call_operand.vmem [shape: f32[8,128], index: 5, kind: output, shape index: {}]
  %s6 = sld [smem:[#allocation0]]
  $region30: #{_lambda_.11} parent=0
    _
  %s8 = ssub.s32 1, %s6
  %s9 = scalar_select 0, %s8, %s6
  // Predicated region
  $region2: #{_lambda_.11} parent=0 // pred_check
    _
  $region3: #{_lambda_.11} parent=0 // pred_check_branch
    %11 = sbr.rel (0) target = $region5
  $region4: #{_lambda_.11} parent=0 // pred_region
    _
  $region5: #{_lambda_.11} parent=0 // pred_fallthru
    _
  // Predicated region
  $region6: #{_lambda_.11} parent=0 // pred_check
    _
  $region7: #{_lambda_.11} parent=0 // pred_check_branch
    %13 = sbr.rel (0) target = $region9
  $region8: #{_lambda_.11} parent=0 // pred_region
    _
  $region9: #{_lambda_.11} parent=0 // pred_fallthru
    _
  // Predicated region
  $region10: #{_lambda_.11} parent=0 // pred_check
    _
  $region11: #{_lambda_.11} parent=0 // pred_check_branch
    %15 = sbr.rel (0) target = $region13
  $region12: #{_lambda_.11} parent=0 // pred_region
    _
  $region13: #{_lambda_.11} parent=0 // pred_fallthru
    _
  // Predicated region
  $region14: #{_lambda_.11} parent=0 // pred_check
    _
  $region15: #{_lambda_.11} parent=0 // pred_check_branch
    %17 = sbr.rel (0) target = $region17
  $region16: #{_lambda_.11} parent=0 // pred_region
    _
  $region17: #{_lambda_.11} parent=0 // pred_fallthru
    _
  // Predicated region
  $region18: #{_lambda_.11} parent=0 // pred_check
    _
  $region19: #{_lambda_.11} parent=0 // pred_check_branch
    %19 = sbr.rel (0) target = $region21
  $region20: #{_lambda_.11} parent=0 // pred_region
    _
  $region21: #{_lambda_.11} parent=0 // pred_fallthru
    _
  %v20 = vld [vmem:[%s0] sm:$0xff]
  %v21 = vld [vmem:[%s0 + $0x8] sm:$0xff]
  %v22 = vld [vmem:[%s1] sm:$0xff]
  %v23 = vld [vmem:[%s1 + $0x8] sm:$0xff]
  %v24 = vld [vmem:[%s1 + $0x10] sm:$0xff]
  %v25 = vld [vmem:[%s1 + $0x18] sm:$0xff]
  %v26 = vld [vmem:[%s1 + $0x20] sm:$0xff]
  %v27 = vld [vmem:[%s1 + $0x28] sm:$0xff]
  %v28 = vld [vmem:[%s1 + $0x30] sm:$0xff]
  %v29 = vld [vmem:[%s1 + $0x38] sm:$0xff]
  %v30 = vld [vmem:[%s1 + $0x40] sm:$0xff]
  %v31 = vld [vmem:[%s1 + $0x48] sm:$0xff]
  %v32 = vld [vmem:[%s1 + $0x50] sm:$0xff]
  %v33 = vld [vmem:[%s1 + $0x58] sm:$0xff]
  %v34 = vld [vmem:[%s1 + $0x60] sm:$0xff]
  %v35 = vld [vmem:[%s1 + $0x68] sm:$0xff]
  %v36 = vld [vmem:[%s1 + $0x70] sm:$0xff]
  %v37 = vld [vmem:[%s1 + $0x78] sm:$0xff]
  %v38 = vld [vmem:[%s1 + $0x80] sm:$0xff]
  %v39 = vld [vmem:[%s1 + $0x88] sm:$0xff]
  %v40 = vld [vmem:[%s1 + $0x90] sm:$0xff]
  %v41 = vld [vmem:[%s1 + $0x98] sm:$0xff]
  %v42 = vld [vmem:[%s1 + $0xa0] sm:$0xff]
  %v43 = vld [vmem:[%s1 + $0xa8] sm:$0xff]
  %v44 = vld [vmem:[%s1 + $0xb0] sm:$0xff]
  %v45 = vld [vmem:[%s1 + $0xb8] sm:$0xff]
  %v46 = vld [vmem:[%s1 + $0xc0] sm:$0xff]
  %v47 = vld [vmem:[%s1 + $0xc8] sm:$0xff]
  %v48 = vld [vmem:[%s1 + $0xd0] sm:$0xff]
  %v49 = vld [vmem:[%s1 + $0xd8] sm:$0xff]
  %v50 = vld [vmem:[%s1 + $0xe0] sm:$0xff]
  %v51 = vld [vmem:[%s1 + $0xe8] sm:$0xff]
  %v52 = vld [vmem:[%s1 + $0xf0] sm:$0xff]
  %v53 = vld [vmem:[%s1 + $0xf8] sm:$0xff]
  %v54 = vld [vmem:[%s2] sm:$0x1]
  %v56 = vlaneseq
  %v57 = vshrl.u32 %v56, 7
  %v58 = vsub.s32 0, %v57
  %v59 = vrot.slane %v54, %v58
  %61 = vmatprep.subr.mxu0 0.0
  %62 = vmatpush1.msra.mxu0 %v37
  %63 = vmatprep.subr.mxu0 0.0
  %64 = vmatpush1.msra.mxu0 %v36
  %65 = vmatprep.subr.mxu0 0.0
  %66 = vmatpush1.msra.mxu0 %v35
  %67 = vmatprep.subr.mxu0 0.0
  %68 = vmatpush1.msra.mxu0 %v34
  %69 = vmatprep.subr.mxu0 0.0
  %70 = vmatpush1.msra.mxu0 %v33
  %71 = vmatprep.subr.mxu0 0.0
  %72 = vmatpush1.msra.mxu0 %v32
  %73 = vmatprep.subr.mxu0 0.0
  %74 = vmatpush1.msra.mxu0 %v31
  %75 = vmatprep.subr.mxu0 0.0
  %76 = vmatpush1.msra.mxu0 %v30
  %77 = vmatprep.subr.mxu0 0.0
  %78 = vmatpush1.msra.mxu0 %v29
  %79 = vmatprep.subr.mxu0 0.0
  %80 = vmatpush1.msra.mxu0 %v28
  %81 = vmatprep.subr.mxu0 0.0
  %82 = vmatpush1.msra.mxu0 %v27
  %83 = vmatprep.subr.mxu0 0.0
  %84 = vmatpush1.msra.mxu0 %v26
  %85 = vmatprep.subr.mxu0 0.0
  %86 = vmatpush1.msra.mxu0 %v25
  %87 = vmatprep.subr.mxu0 0.0
  %88 = vmatpush1.msra.mxu0 %v24
  %89 = vmatprep.subr.mxu0 0.0
  %90 = vmatpush1.msra.mxu0 %v23
  %91 = vmatprep.subr.mxu0 0.0
  %92 = vmatpush1.msra.mxu0 %v22
  %93 = vmatprep.subr.mxu0 0.0
  %94 = vmatpush2.msra.mxu0 %v53
  %95 = vmatprep.subr.mxu0 0.0
  %96 = vmatpush2.msra.mxu0 %v52
  %97 = vmatprep.subr.mxu0 0.0
  %98 = vmatpush2.msra.mxu0 %v51
  %99 = vmatprep.subr.mxu0 0.0
  %100 = vmatpush2.msra.mxu0 %v50
  %101 = vmatprep.subr.mxu0 0.0
  %102 = vmatpush2.msra.mxu0 %v49
  %103 = vmatprep.subr.mxu0 0.0
  %104 = vmatpush2.msra.mxu0 %v48
  %105 = vmatprep.subr.mxu0 0.0
  %106 = vmatpush2.msra.mxu0 %v47
  %107 = vmatprep.subr.mxu0 0.0
  %108 = vmatpush2.msra.mxu0 %v46
  %109 = vmatprep.subr.mxu0 0.0
  %110 = vmatpush2.msra.mxu0 %v45
  %111 = vmatprep.subr.mxu0 0.0
  %112 = vmatpush2.msra.mxu0 %v44
  %113 = vmatprep.subr.mxu0 0.0
  %114 = vmatpush2.msra.mxu0 %v43
  %115 = vmatprep.subr.mxu0 0.0
  %116 = vmatpush2.msra.mxu0 %v42
  %117 = vmatprep.subr.mxu0 0.0
  %118 = vmatpush2.msra.mxu0 %v41
  %119 = vmatprep.subr.mxu0 0.0
  %120 = vmatpush2.msra.mxu0 %v40
  %121 = vmatprep.subr.mxu0 0.0
  %122 = vmatpush2.msra.mxu0 %v39
  %123 = vmatprep.subr.mxu0 0.0
  %124 = vmatpush2.msra.mxu0 %v38
  %125 = vmatprep.mubr.f32.mxu0 %v21
  %126 = vmatmul.mubr.f32.gmra.mxu0 %v20
  %v127 = vpop.f32.mrf.mxu0
  %v128 = vadd.f32 %v59, %v127
  %v129 = vpop.f32.mrf.mxu0
  %130 = vdwg.mxu0
  %v131 = vtanh.pop %v128
  %v132 = vld [vmem:[%s3] sm:$0xff]
  %v133 = vld [vmem:[%s3 + $0x8] sm:$0xff]
  %v134 = vld [vmem:[%s3 + $0x10] sm:$0xff]
  %v135 = vld [vmem:[%s3 + $0x18] sm:$0xff]
  %v136 = vld [vmem:[%s3 + $0x20] sm:$0xff]
  %v137 = vld [vmem:[%s3 + $0x28] sm:$0xff]
  %v138 = vld [vmem:[%s3 + $0x30] sm:$0xff]
  %v139 = vld [vmem:[%s3 + $0x38] sm:$0xff]
  %v140 = vld [vmem:[%s4] sm:$0x1]
  %v142 = vlaneseq
  %v143 = vshrl.u32 %v142, 7
  %v144 = vsub.s32 0, %v143
  %v145 = vrot.slane %v140, %v144
  %vm147 = vcmask 523264
  %v149 = vsel %vm147, %v131, 0
  %151 = vmatprep.subr.mxu0 0.0
  %152 = vmatpush1.msra.mxu0 0.0
  %153 = vmatprep.subr.mxu0 0.0
  %154 = vmatpush1.msra.mxu0 0.0
  %155 = vmatprep.subr.mxu0 0.0
  %156 = vmatpush1.msra.mxu0 0.0
  %157 = vmatprep.subr.mxu0 0.0
  %158 = vmatpush1.msra.mxu0 0.0
  %159 = vmatprep.subr.mxu0 0.0
  %160 = vmatpush1.msra.mxu0 0.0
  %161 = vmatprep.subr.mxu0 0.0
  %162 = vmatpush1.msra.mxu0 0.0
  %163 = vmatprep.subr.mxu0 0.0
  %164 = vmatpush1.msra.mxu0 0.0
  %165 = vmatprep.subr.mxu0 0.0
  %166 = vmatpush1.msra.mxu0 0.0
  %167 = vmatprep.subr.mxu0 0.0
  %168 = vmatpush1.msra.mxu0 %v139
  %169 = vmatprep.subr.mxu0 0.0
  %170 = vmatpush1.msra.mxu0 %v138
  %171 = vmatprep.subr.mxu0 0.0
  %172 = vmatpush1.msra.mxu0 %v137
  %173 = vmatprep.subr.mxu0 0.0
  %174 = vmatpush1.msra.mxu0 %v136
  %175 = vmatprep.subr.mxu0 0.0
  %176 = vmatpush1.msra.mxu0 %v135
  %177 = vmatprep.subr.mxu0 0.0
  %178 = vmatpush1.msra.mxu0 %v134
  %179 = vmatprep.subr.mxu0 0.0
  %180 = vmatpush1.msra.mxu0 %v133
  %181 = vmatprep.subr.mxu0 0.0
  %182 = vmatpush1.msra.mxu0 %v132
  %183 = vmatprep.subr.mxu0 0.0
  %184 = vmatpush2.msra.mxu0 0.0
  %185 = vmatprep.subr.mxu0 0.0
  %186 = vmatpush2.msra.mxu0 0.0
  %187 = vmatprep.subr.mxu0 0.0
  %188 = vmatpush2.msra.mxu0 0.0
  %189 = vmatprep.subr.mxu0 0.0
  %190 = vmatpush2.msra.mxu0 0.0
  %191 = vmatprep.subr.mxu0 0.0
  %192 = vmatpush2.msra.mxu0 0.0
  %193 = vmatprep.subr.mxu0 0.0
  %194 = vmatpush2.msra.mxu0 0.0
  %195 = vmatprep.subr.mxu0 0.0
  %196 = vmatpush2.msra.mxu0 0.0
  %197 = vmatprep.subr.mxu0 0.0
  %198 = vmatpush2.msra.mxu0 0.0
  %199 = vmatprep.subr.mxu0 0.0
  %200 = vmatpush2.msra.mxu0 0.0
  %201 = vmatprep.subr.mxu0 0.0
  %202 = vmatpush2.msra.mxu0 0.0
  %203 = vmatprep.subr.mxu0 0.0
  %204 = vmatpush2.msra.mxu0 0.0
  %205 = vmatprep.subr.mxu0 0.0
  %206 = vmatpush2.msra.mxu0 0.0
  %207 = vmatprep.subr.mxu0 0.0
  %208 = vmatpush2.msra.mxu0 0.0
  %209 = vmatprep.subr.mxu0 0.0
  %210 = vmatpush2.msra.mxu0 0.0
  %211 = vmatprep.subr.mxu0 0.0
  %212 = vmatpush2.msra.mxu0 0.0
  %213 = vmatprep.subr.mxu0 0.0
  %214 = vmatpush2.msra.mxu0 0.0
  %215 = vmatprep.mubr.f32.mxu0 0.0
  %216 = vmatmul.mubr.f32.gmra.mxu0 %v149
  %v217 = vpop.f32.mrf.mxu0
  %v218 = vadd.f32 %v145, %v217
  %v219 = vpop.f32.mrf.mxu0
  %220 = vdwg.mxu0
  %221 = vst [vmem:[%s5] sm:$0xff] %v218
  // Predicated region
  $region22: #{_lambda_.11} parent=0 // pred_check
    _
  $region23: #{_lambda_.11} parent=0 // pred_check_branch
    %223 = sbr.rel (0) target = $region25
  $region24: #{_lambda_.11} parent=0 // pred_region
    _
  $region25: #{_lambda_.11} parent=0 // pred_fallthru
    _
  // Predicated region
  $region26: #{_lambda_.11} parent=0 // pred_check
    _
  $region27: #{_lambda_.11} parent=0 // pred_check_branch
    %225 = sbr.rel (0) target = $region29
  $region28: #{_lambda_.11} parent=0 // pred_region
    _
  $region29: #{_lambda_.11} parent=0 // pred_fallthru
    _

// kernel: _lambda_.6
$region0: #{_lambda_.6}
  #allocation0 [shape = 'u32[]', space=smem, size = 0x4, offset = 0x4, fixed_abs, tag = 'smem constant byte address 0x4 - core index']
  #allocation1 [shape = 'u32[144,128]{1,0:T(1,128)}', space=vmem, size = 0x12000, scoped, tag = 'internal scratch']
  %s0 = inlined_call_operand.vmem [shape: bf16[2,8,64], index: 0, kind: input, shape index: {}]
  %s1 = inlined_call_operand.vmem [shape: bf16[2,8,64], index: 1, kind: input, shape index: {}]
  %s2 = inlined_call_operand.hbm [shape: bf16[64,512], index: 2, kind: input, shape index: {}]
  %s3 = inlined_call_operand.hbm [shape: f32[1,512], index: 3, kind: input, shape index: {}]
  %s4 = inlined_call_operand.vmem [shape: bf16[256,128], index: 4, kind: input, shape index: {}]
  %s5 = inlined_call_operand.vmem [shape: f32[1,128], index: 5, kind: input, shape index: {}]
  %s6 = inlined_call_operand.vmem [shape: bf16[384,256], index: 6, kind: input, shape index: {}]
  %s7 = inlined_call_operand.vmem [shape: f32[1,256], index: 7, kind: input, shape index: {}]
  %s8 = inlined_call_operand.vmem [shape: f32[2,8,256], index: 8, kind: output, shape index: {}]
  %s9 = sld [smem:[#allocation0]]
  $region73: #{_lambda_.6} parent=0
    _
  %s11 = ssub.s32 1, %s9
  %s12 = scalar_select 0, %s11, %s9
  $region1: #{_lambda_.6} parent=0
    #allocation2 [shape = 'u8[65536]{0}', space=vmem, size = 0x10000, scoped, tag = 'input window, operand 2, single buffered']
    #allocation3 [shape = 's32[2]{0}', space=sflag, size = 0x8, scoped, tag = 'scoped memory for _lambda_.6']
    #allocation4 [shape = 'u8[2048]{0}', space=vmem, size = 0x800, scoped, tag = 'input window, operand 3, single buffered']
    #allocation5 [shape = 's32[1]{0}', space=sflag, size = 0x4, scoped, tag = 'scoped memory for _lambda_.6']
    %13 = vsyncpa [#allocation3], 0
    %14 = vsyncpa [#allocation5], 0
    loop: start=0, step=1, limit=4
    $region2: #{_lambda_.6} parent=1 // loop_pre_header
      _
    $region3: #{_lambda_.6} parent=1 // loop_header
      %s16 = sphi 0, %s20
      %p17 = scmp.ge.s32.totalorder %s16, 4
      %s23 = sphi 0, %s35
      %s24 = sphi 0, %s31
      %s25 = sphi 0, %s23
      %s26 = sphi 0, %s24
      %s27 = sphi 0, %s25
      %s28 = sphi 0, %s26
      %s40 = sphi 0, %s42
      %s43 = sphi 0, %s40
      %s44 = sphi 0, %s43
      %s60 = sphi 0, %s44
      %s68 = sphi 0, %s70
      %s71 = sphi 0, %s68
      %s72 = sphi 0, %s71
      %s88 = sphi 0, %s72
      %s92 = sphi 0, %s92
      %s94 = sphi 0, %s92
      %s95 = sphi 0, %s94
      %s109 = sphi 0, %s95
      %s113 = sphi 0, %s113
      %s115 = sphi 0, %s113
      %s116 = sphi 0, %s115
      %s130 = sphi 0, %s116
      %s134 = sphi 0, %s134
      %s136 = sphi 0, %s134
      %s137 = sphi 0, %s136
      %s151 = sphi 0, %s137
      %s155 = sphi 0, %s155
      %s157 = sphi 0, %s155
      %s158 = sphi 0, %s157
      %s172 = sphi 0, %s158
      %s176 = sphi 0, %s176
      %s178 = sphi 0, %s176
      %s179 = sphi 0, %s178
      %s193 = sphi 0, %s179
      %s197 = sphi 0, %s197
      %s199 = sphi 0, %s197
      %s200 = sphi 0, %s199
      %s214 = sphi 0, %s200
      %s222 = sphi 0, %s224
      %s225 = sphi 0, %s222
      %s226 = sphi 0, %s225
      %s242 = sphi 0, %s226
    $region4: #{_lambda_.6} parent=1 // loop_header_branch
      %19 = sbr.rel (%p17) target = $region8
    $region5: #{_lambda_.6} parent=1 // loop_body
      %s21 = ssub.s32 %s16, 1
      %s22 = ssub.s32 %s16, 2
      %s29 = sadd.s32 1, %s24
      %p30 = scmp.ge.s32.totalorder %s29, 1
      %s31 = scalar_select %p30, 0, %s29
      %s32 = sadd.s32 1, %s23
      %s33 = scalar_select %p30, %s32, %s23
      %p34 = scmp.ge.s32.totalorder %s33, 2
      %s35 = scalar_select %p34, 0, %s33
      %s36 = ssub.s32 %s23, %s35
      %s37 = ssub.s32 %s24, %s31
      %s38 = sor.u32 %s36, %s37
      %p39 = scmp.eq.s32.totalorder %s38, 0
      %s41 = sadd.s32 %s40, 1
      %s42 = scalar_select %p39, %s40, %s41
      %p45 = pneg %p39
      %p46 = scmp.eq.s32.totalorder %s16, 1
      %p47 = por %p45, %p46
      %p48 = scmp.ne.s32.totalorder %s40, %s43
      %p49 = scmp.eq.s32.totalorder %s16, 0
      %p50 = por %p48, %p49
      %p51 = scmp.ne.s32.totalorder %s40, %s43
      %p52 = scmp.eq.s32.totalorder %s21, 1
      %p53 = por %p51, %p52
      %p54 = scmp.ne.s32.totalorder %s43, %s44
      %p55 = scmp.eq.s32.totalorder %s21, 0
      %p56 = por %p54, %p55
      %p57 = scmp.ne.s32.totalorder %s43, %s44
      %p58 = scmp.eq.s32.totalorder %s22, 1
      %p59 = por %p57, %p58
      %p61 = scmp.ne.s32.totalorder %s44, %s60
      %p62 = scmp.eq.s32.totalorder %s22, 0
      %p63 = por %p61, %p62
      %s64 = ssub.s32 %s23, %s35
      %s65 = ssub.s32 %s24, %s31
      %s66 = sor.u32 %s64, %s65
      %p67 = scmp.eq.s32.totalorder %s66, 0
      %s69 = sadd.s32 %s68, 1
      %s70 = scalar_select %p67, %s68, %s69
      %p73 = pneg %p67
      %p74 = scmp.eq.s32.totalorder %s16, 1
      %p75 = por %p73, %p74
      %p76 = scmp.ne.s32.totalorder %s68, %s71
      %p77 = scmp.eq.s32.totalorder %s16, 0
      %p78 = por %p76, %p77
      %p79 = scmp.ne.s32.totalorder %s68, %s71
      %p80 = scmp.eq.s32.totalorder %s21, 1
      %p81 = por %p79, %p80
      %p82 = scmp.ne.s32.totalorder %s71, %s72
      %p83 = scmp.eq.s32.totalorder %s21, 0
      %p84 = por %p82, %p83
      %p85 = scmp.ne.s32.totalorder %s71, %s72
      %p86 = scmp.eq.s32.totalorder %s22, 1
      %p87 = por %p85, %p86
      %p89 = scmp.ne.s32.totalorder %s72, %s88
      %p90 = scmp.eq.s32.totalorder %s22, 0
      %p91 = por %p89, %p90
      %s93 = sadd.s32 %s92, 1
      %p96 = scmp.eq.s32.totalorder %s16, 1
      %p97 = scmp.ne.s32.totalorder %s92, %s94
      %p98 = scmp.eq.s32.totalorder %s16, 0
      %p99 = por %p97, %p98
      %p100 = scmp.ne.s32.totalorder %s92, %s94
      %p101 = scmp.eq.s32.totalorder %s21, 1
      %p102 = por %p100, %p101
      %p103 = scmp.ne.s32.totalorder %s94, %s95
      %p104 = scmp.eq.s32.totalorder %s21, 0
      %p105 = por %p103, %p104
      %p106 = scmp.ne.s32.totalorder %s94, %s95
      %p107 = scmp.eq.s32.totalorder %s22, 1
      %p108 = por %p106, %p107
      %p110 = scmp.ne.s32.totalorder %s95, %s109
      %p111 = scmp.eq.s32.totalorder %s22, 0
      %p112 = por %p110, %p111
      %s114 = sadd.s32 %s113, 1
      %p117 = scmp.eq.s32.totalorder %s16, 1
      %p118 = scmp.ne.s32.totalorder %s113, %s115
      %p119 = scmp.eq.s32.totalorder %s16, 0
      %p120 = por %p118, %p119
      %p121 = scmp.ne.s32.totalorder %s113, %s115
      %p122 = scmp.eq.s32.totalorder %s21, 1
      %p123 = por %p121, %p122
      %p124 = scmp.ne.s32.totalorder %s115, %s116
      %p125 = scmp.eq.s32.totalorder %s21, 0
      %p126 = por %p124, %p125
      %p127 = scmp.ne.s32.totalorder %s115, %s116
      %p128 = scmp.eq.s32.totalorder %s22, 1
      %p129 = por %p127, %p128
      %p131 = scmp.ne.s32.totalorder %s116, %s130
      %p132 = scmp.eq.s32.totalorder %s22, 0
      %p133 = por %p131, %p132
      %s135 = sadd.s32 %s134, 1
      %p138 = scmp.eq.s32.totalorder %s16, 1
      %p139 = scmp.ne.s32.totalorder %s134, %s136
      %p140 = scmp.eq.s32.totalorder %s16, 0
      %p141 = por %p139, %p140
      %p142 = scmp.ne.s32.totalorder %s134, %s136
      %p143 = scmp.eq.s32.totalorder %s21, 1
      %p144 = por %p142, %p143
      %p145 = scmp.ne.s32.totalorder %s136, %s137
      %p146 = scmp.eq.s32.totalorder %s21, 0
      %p147 = por %p145, %p146
      %p148 = scmp.ne.s32.totalorder %s136, %s137
      %p149 = scmp.eq.s32.totalorder %s22, 1
      %p150 = por %p148, %p149
      %p152 = scmp.ne.s32.totalorder %s137, %s151
      %p153 = scmp.eq.s32.totalorder %s22, 0
      %p154 = por %p152, %p153
      %s156 = sadd.s32 %s155, 1
      %p159 = scmp.eq.s32.totalorder %s16, 1
      %p160 = scmp.ne.s32.totalorder %s155, %s157
      %p161 = scmp.eq.s32.totalorder %s16, 0
      %p162 = por %p160, %p161
      %p163 = scmp.ne.s32.totalorder %s155, %s157
      %p164 = scmp.eq.s32.totalorder %s21, 1
      %p165 = por %p163, %p164
      %p166 = scmp.ne.s32.totalorder %s157, %s158
      %p167 = scmp.eq.s32.totalorder %s21, 0
      %p168 = por %p166, %p167
      %p169 = scmp.ne.s32.totalorder %s157, %s158
      %p170 = scmp.eq.s32.totalorder %s22, 1
      %p171 = por %p169, %p170
      %p173 = scmp.ne.s32.totalorder %s158, %s172
      %p174 = scmp.eq.s32.totalorder %s22, 0
      %p175 = por %p173, %p174
      %s177 = sadd.s32 %s176, 1
      %p180 = scmp.eq.s32.totalorder %s16, 1
      %p181 = scmp.ne.s32.totalorder %s176, %s178
      %p182 = scmp.eq.s32.totalorder %s16, 0
      %p183 = por %p181, %p182
      %p184 = scmp.ne.s32.totalorder %s176, %s178
      %p185 = scmp.eq.s32.totalorder %s21, 1
      %p186 = por %p184, %p185
      %p187 = scmp.ne.s32.totalorder %s178, %s179
      %p188 = scmp.eq.s32.totalorder %s21, 0
      %p189 = por %p187, %p188
      %p190 = scmp.ne.s32.totalorder %s178, %s179
      %p191 = scmp.eq.s32.totalorder %s22, 1
      %p192 = por %p190, %p191
      %p194 = scmp.ne.s32.totalorder %s179, %s193
      %p195 = scmp.eq.s32.totalorder %s22, 0
      %p196 = por %p194, %p195
      %s198 = sadd.s32 %s197, 1
      %p201 = scmp.eq.s32.totalorder %s16, 1
      %p202 = scmp.ne.s32.totalorder %s197, %s199
      %p203 = scmp.eq.s32.totalorder %s16, 0
      %p204 = por %p202, %p203
      %p205 = scmp.ne.s32.totalorder %s197, %s199
      %p206 = scmp.eq.s32.totalorder %s21, 1
      %p207 = por %p205, %p206
      %p208 = scmp.ne.s32.totalorder %s199, %s200
      %p209 = scmp.eq.s32.totalorder %s21, 0
      %p210 = por %p208, %p209
      %p211 = scmp.ne.s32.totalorder %s199, %s200
      %p212 = scmp.eq.s32.totalorder %s22, 1
      %p213 = por %p211, %p212
      %p215 = scmp.ne.s32.totalorder %s200, %s214
      %p216 = scmp.eq.s32.totalorder %s22, 0
      %p217 = por %p215, %p216
      %s218 = ssub.s32 %s23, %s35
      %s219 = ssub.s32 %s24, %s31
      %s220 = sor.u32 %s218, %s219
      %p221 = scmp.eq.s32.totalorder %s220, 0
      %s223 = sadd.s32 %s222, 1
      %s224 = scalar_select %p221, %s222, %s223
      %p227 = pneg %p221
      %p228 = scmp.eq.s32.totalorder %s16, 1
      %p229 = por %p227, %p228
      %p230 = scmp.ne.s32.totalorder %s222, %s225
      %p231 = scmp.eq.s32.totalorder %s16, 0
      %p232 = por %p230, %p231
      %p233 = scmp.ne.s32.totalorder %s222, %s225
      %p234 = scmp.eq.s32.totalorder %s21, 1
      %p235 = por %p233, %p234
      %p236 = scmp.ne.s32.totalorder %s225, %s226
      %p237 = scmp.eq.s32.totalorder %s21, 0
      %p238 = por %p236, %p237
      %p239 = scmp.ne.s32.totalorder %s225, %s226
      %p240 = scmp.eq.s32.totalorder %s22, 1
      %p241 = por %p239, %p240
      %p243 = scmp.ne.s32.totalorder %s226, %s242
      %p244 = scmp.eq.s32.totalorder %s22, 0
      %p245 = por %p243, %p244
      %p246 = scmp.le.s32.totalorder 1, %s16
      %p247 = scmp.lt.s32.totalorder %s16, 3
      %p248 = pnand %p246, %p247
      %p249 = pneg %p248
      // Predicated region
      $region9: #{_lambda_.6} parent=5 // pred_check
        _
      $region10: #{_lambda_.6} parent=5 // pred_check_branch
        %251 = sbr.rel (%p248) target = $region12
      $region11: #{_lambda_.6} parent=5 // pred_region
        %s252 = ssub.s32 %s16, 1
        // Predicated region
        $region13: #{_lambda_.6} parent=11 // pred_check
          %p253 = pneg %p105
        $region14: #{_lambda_.6} parent=11 // pred_check_branch
          %255 = sbr.rel (%p253) target = $region16
        $region15: #{_lambda_.6} parent=11 // pred_region
          %s257 = ssub.s32 2048, 2048
          %258 = vsyncadd [#allocation3], %s257
          %s259 = sshll.u32 [#allocation2], 4
          %s260 = int_to_ptr.vmem [resolvable:$true] %s259
          %265 = dma.hbm_to_vmem [thread:$0]  %s2, 2048, %s260, [#allocation3], 256, 256, 16
        $region16: #{_lambda_.6} parent=11 // pred_fallthru
          _
        // Predicated region
        $region17: #{_lambda_.6} parent=11 // pred_check
          %p266 = pneg %p126
        $region18: #{_lambda_.6} parent=11 // pred_check_branch
          %268 = sbr.rel (%p266) target = $region20
        $region19: #{_lambda_.6} parent=11 // pred_region
          %s270 = ssub.s32 64, 64
          %271 = vsyncadd [#allocation5], %s270
          %s273 = sshll.u32 [#allocation4], 4
          %s274 = int_to_ptr.vmem [resolvable:$true] %s273
          %276 = dma.hbm_to_vmem [thread:$0]  %s3, 64, %s274, [#allocation5]
        $region20: #{_lambda_.6} parent=11 // pred_fallthru
          _
        // Predicated region
        $region21: #{_lambda_.6} parent=11 // pred_check
          %p277 = pneg %p147
        $region22: #{_lambda_.6} parent=11 // pred_check_branch
          %279 = sbr.rel (%p277) target = $region24
        $region23: #{_lambda_.6} parent=11 // pred_region
          _
        $region24: #{_lambda_.6} parent=11 // pred_fallthru
          _
        // Predicated region
        $region25: #{_lambda_.6} parent=11 // pred_check
          %p280 = pneg %p168
        $region26: #{_lambda_.6} parent=11 // pred_check_branch
          %282 = sbr.rel (%p280) target = $region28
        $region27: #{_lambda_.6} parent=11 // pred_region
          _
        $region28: #{_lambda_.6} parent=11 // pred_fallthru
          _
        // Predicated region
        $region29: #{_lambda_.6} parent=11 // pred_check
          %p283 = pneg %p189
        $region30: #{_lambda_.6} parent=11 // pred_check_branch
          %285 = sbr.rel (%p283) target = $region32
        $region31: #{_lambda_.6} parent=11 // pred_region
          _
        $region32: #{_lambda_.6} parent=11 // pred_fallthru
          _
        // Predicated region
        $region33: #{_lambda_.6} parent=11 // pred_check
          %p286 = pneg %p210
        $region34: #{_lambda_.6} parent=11 // pred_check_branch
          %288 = sbr.rel (%p286) target = $region36
        $region35: #{_lambda_.6} parent=11 // pred_region
          _
        $region36: #{_lambda_.6} parent=11 // pred_fallthru
          _
      $region12: #{_lambda_.6} parent=5 // pred_fallthru
        _
      %p289 = scmp.lt.s32.totalorder %s16, 2
      // Predicated region
      $region37: #{_lambda_.6} parent=5 // pred_check
        %p290 = pneg %p289
      $region38: #{_lambda_.6} parent=5 // pred_check_branch
        %292 = sbr.rel (%p290) target = $region40
      $region39: #{_lambda_.6} parent=5 // pred_region
        // Predicated region
        $region41: #{_lambda_.6} parent=39 // pred_check
          %p293 = pneg %p50
        $region42: #{_lambda_.6} parent=39 // pred_check_branch
          %295 = sbr.rel (%p293) target = $region44
        $region43: #{_lambda_.6} parent=39 // pred_region
          %p296 = scmp.lt.s32.totalorder %s23, 1
          %s297 = scalar_select %p296, %s23, 1
          %p298 = scmp.lt.s32.totalorder %s24, 0
          %s299 = scalar_select %p298, %s24, 0
          %s300 = sadd.s32 %s299, %s297
          %s301 = smul.addr %s300, 4
          %s302 = scalar_lea.vmem %s0, %s301
        $region44: #{_lambda_.6} parent=39 // pred_fallthru
          _
        // Predicated region
        $region45: #{_lambda_.6} parent=39 // pred_check
          %p303 = pneg %p78
        $region46: #{_lambda_.6} parent=39 // pred_check_branch
          %305 = sbr.rel (%p303) target = $region48
        $region47: #{_lambda_.6} parent=39 // pred_region
          %p306 = scmp.lt.s32.totalorder %s23, 1
          %s307 = scalar_select %p306, %s23, 1
          %p308 = scmp.lt.s32.totalorder %s24, 0
          %s309 = scalar_select %p308, %s24, 0
          %s310 = sadd.s32 %s309, %s307
          %s311 = smul.addr %s310, 4
          %s312 = scalar_lea.vmem %s1, %s311
        $region48: #{_lambda_.6} parent=39 // pred_fallthru
          _
      $region40: #{_lambda_.6} parent=5 // pred_fallthru
        _
      %p313 = scmp.le.s32.totalorder 1, %s16
      %p314 = scmp.lt.s32.totalorder %s16, 3
      %p315 = pnand %p313, %p314
      %p316 = pneg %p315
      // Predicated region
      $region49: #{_lambda_.6} parent=5 // pred_check
        _
      $region50: #{_lambda_.6} parent=5 // pred_check_branch
        %318 = sbr.rel (%p315) target = $region52
      $region51: #{_lambda_.6} parent=5 // pred_region
        %s319 = ssub.s32 %s16, 1
        // Predicated region
        $region53: #{_lambda_.6} parent=51 // pred_check
          %p320 = pneg %p105
        $region54: #{_lambda_.6} parent=51 // pred_check_branch
          %322 = sbr.rel (%p320) target = $region56
        $region55: #{_lambda_.6} parent=51 // pred_region
          %323 = dma.done [#allocation3], 2048
        $region56: #{_lambda_.6} parent=51 // pred_fallthru
          _
        // Predicated region
        $region57: #{_lambda_.6} parent=51 // pred_check
          %p324 = pneg %p126
        $region58: #{_lambda_.6} parent=51 // pred_check_branch
          %326 = sbr.rel (%p324) target = $region60
        $region59: #{_lambda_.6} parent=51 // pred_region
          %327 = dma.done [#allocation5], 64
        $region60: #{_lambda_.6} parent=51 // pred_fallthru
          _
        %p328 = scmp.lt.s32.totalorder %s25, 1
        %s329 = scalar_select %p328, %s25, 1
        %p330 = scmp.lt.s32.totalorder %s26, 0
        %s331 = scalar_select %p330, %s26, 0
        %s332 = sadd.s32 %s331, %s329
        %s333 = smul.addr %s332, 4
        %s334 = scalar_lea.vmem %s0, %s333
        %p335 = pneg %p56
        %p336 = pneg %p53
        %p337 = scmp.lt.s32.totalorder %s25, 1
        %s338 = scalar_select %p337, %s25, 1
        %p339 = scmp.lt.s32.totalorder %s26, 0
        %s340 = scalar_select %p339, %s26, 0
        %s341 = sadd.s32 %s340, %s338
        %s342 = smul.addr %s341, 4
        %s343 = scalar_lea.vmem %s1, %s342
        %p344 = pneg %p84
        %p345 = pneg %p81
        %p346 = pneg %p105
        %p347 = pneg %p102
        %p348 = pneg %p126
        %p349 = pneg %p123
        %p350 = pneg %p147
        %p351 = pneg %p144
        %p352 = pneg %p168
        %p353 = pneg %p165
        %p354 = pneg %p189
        %p355 = pneg %p186
        %p356 = pneg %p210
        %p357 = pneg %p207
        %p358 = pneg %p238
        %p359 = pneg %p235
        %p360 = scmp.lt.s32.totalorder %s25, 1
        %s361 = scalar_select %p360, %s25, 1
        %p362 = scmp.lt.s32.totalorder %s26, 0
        %s363 = scalar_select %p362, %s26, 0
        %s364 = smul.addr %s363, 2
        %s365 = smul.addr %s361, 2
        %s366 = sadd.s32 %s364, %s365
        %s367 = smul.addr %s366, 8
        %s368 = scalar_lea.vmem %s8, %s367
        %p369 = scmp.lt.s32.totalorder %s25, 1
        %s370 = scalar_select %p369, %s25, 1
        %p371 = scmp.lt.s32.totalorder %s26, 0
        %s372 = scalar_select %p371, %s26, 0
        %s373 = sadd.s32 %s372, %s370
        %s374 = smul.addr %s373, 4
        %s375 = scalar_lea.vmem %s0, %s374
        %p376 = scmp.lt.s32.totalorder %s25, 1
        %s377 = scalar_select %p376, %s25, 1
        %p378 = scmp.lt.s32.totalorder %s26, 0
        %s379 = scalar_select %p378, %s26, 0
        %s380 = sadd.s32 %s379, %s377
        %s381 = smul.addr %s380, 4
        %s382 = scalar_lea.vmem %s1, %s381
        %p383 = scmp.lt.s32.totalorder %s25, 1
        %s384 = scalar_select %p383, %s25, 1
        %p385 = scmp.lt.s32.totalorder %s26, 0
        %s386 = scalar_select %p385, %s26, 0
        %s387 = smul.addr %s386, 2
        %s388 = smul.addr %s384, 2
        %s389 = sadd.s32 %s387, %s388
        %s390 = smul.addr %s389, 8
        %s391 = scalar_lea.vmem %s8, %s390
        %v393 = vld [vmem:[#allocation2] sm:$0xff]
        %v394 = vld [vmem:[#allocation2 + $0x8] sm:$0xff]
        %v395 = vld [vmem:[#allocation2 + $0x10] sm:$0xff]
        %v396 = vld [vmem:[#allocation2 + $0x18] sm:$0xff]
        %v397 = vld [vmem:[#allocation2 + $0x20] sm:$0xff]
        %v398 = vld [vmem:[#allocation2 + $0x28] sm:$0xff]
        %v399 = vld [vmem:[#allocation2 + $0x30] sm:$0xff]
        %v400 = vld [vmem:[#allocation2 + $0x38] sm:$0xff]
        %v401 = vld [vmem:[#allocation2 + $0x40] sm:$0xff]
        %v402 = vld [vmem:[#allocation2 + $0x48] sm:$0xff]
        %v403 = vld [vmem:[#allocation2 + $0x50] sm:$0xff]
        %v404 = vld [vmem:[#allocation2 + $0x58] sm:$0xff]
        %v405 = vld [vmem:[#allocation2 + $0x60] sm:$0xff]
        %v406 = vld [vmem:[#allocation2 + $0x68] sm:$0xff]
        %v407 = vld [vmem:[#allocation2 + $0x70] sm:$0xff]
        %v408 = vld [vmem:[#allocation2 + $0x78] sm:$0xff]
        %v409 = vld [vmem:[#allocation4] sm:$0xf]
        %v410 = vld [vmem:[%s375] sm:$0xf]
        %v412 = vlaneseq
        %v413 = vshrl.u32 %v412, 7
        %v414 = vsub.s32 0, %v413
        %v415 = vrot.slane %v409, %v414
        %v416 = vlaneseq
        %v417 = vshrl.u32 %v416, 7
        %v418 = vsub.s32 1, %v417
        %v419 = vrot.slane %v409, %v418
        %v420 = vlaneseq
        %v421 = vshrl.u32 %v420, 7
        %v422 = vsub.s32 2, %v421
        %v423 = vrot.slane %v409, %v422
        %v424 = vlaneseq
        %v425 = vshrl.u32 %v424, 7
        %v426 = vsub.s32 3, %v425
        %v427 = vrot.slane %v409, %v426
        %v448 = vunpack.c.l.b16 %v393
        %v449 = vunpack.c.h.b16 %v393
        %v450 = vunpack.c.l.b16 %v394
        %v451 = vunpack.c.h.b16 %v394
        %v452 = vunpack.c.l.b16 %v395
        %v453 = vunpack.c.h.b16 %v395
        %v454 = vunpack.c.l.b16 %v396
        %v455 = vunpack.c.h.b16 %v396
        %v456 = vunpack.c.l.b16 %v397
        %v457 = vunpack.c.h.b16 %v397
        %v458 = vunpack.c.l.b16 %v398
        %v459 = vunpack.c.h.b16 %v398
        %v460 = vunpack.c.l.b16 %v399
        %v461 = vunpack.c.h.b16 %v399
        %v462 = vunpack.c.l.b16 %v400
        %v463 = vunpack.c.h.b16 %v400
        %v464 = vunpack.c.l.b16 %v401
        %v465 = vunpack.c.h.b16 %v401
        %v466 = vunpack.c.l.b16 %v402
        %v467 = vunpack.c.h.b16 %v402
        %v468 = vunpack.c.l.b16 %v403
        %v469 = vunpack.c.h.b16 %v403
        %v470 = vunpack.c.l.b16 %v404
        %v471 = vunpack.c.h.b16 %v404
        %v472 = vunpack.c.l.b16 %v405
        %v473 = vunpack.c.h.b16 %v405
        %v474 = vunpack.c.l.b16 %v406
        %v475 = vunpack.c.h.b16 %v406
        %v476 = vunpack.c.l.b16 %v407
        %v477 = vunpack.c.h.b16 %v407
        %v478 = vunpack.c.l.b16 %v408
        %v479 = vunpack.c.h.b16 %v408
        %v480 = vpack.c.b16 %v452, %v448
        %v481 = vpack.c.b16 %v453, %v449
        %v482 = vpack.c.b16 %v454, %v450
        %v483 = vpack.c.b16 %v455, %v451
        %v484 = vpack.c.b16 %v460, %v456
        %v485 = vpack.c.b16 %v461, %v457
        %v486 = vpack.c.b16 %v462, %v458
        %v487 = vpack.c.b16 %v463, %v459
        %v488 = vpack.c.b16 %v468, %v464
        %v489 = vpack.c.b16 %v469, %v465
        %v490 = vpack.c.b16 %v470, %v466
        %v491 = vpack.c.b16 %v471, %v467
        %v492 = vpack.c.b16 %v476, %v472
        %v493 = vpack.c.b16 %v477, %v473
        %v494 = vpack.c.b16 %v478, %v474
        %v495 = vpack.c.b16 %v479, %v475
        %vm512 = vcmask 523264
        %v514 = vsel %vm512, %v410, 0
        %516 = vmatprep.subr.bf16.mxu0 0
        %517 = vmatpush1.bf16.msra.mxu0 0
        %518 = vmatprep.subr.bf16.mxu0 0
        %519 = vmatpush1.bf16.msra.mxu0 0
        %520 = vmatprep.subr.bf16.mxu0 0
        %521 = vmatpush1.bf16.msra.mxu0 0
        %522 = vmatprep.subr.bf16.mxu0 0
        %523 = vmatpush1.bf16.msra.mxu0 0
        %524 = vmatprep.subr.bf16.mxu0 %v493
        %525 = vmatpush1.bf16.msra.mxu0 %v492
        %526 = vmatprep.subr.bf16.mxu0 %v489
        %527 = vmatpush1.bf16.msra.mxu0 %v488
        %528 = vmatprep.subr.bf16.mxu0 %v485
        %529 = vmatpush1.bf16.msra.mxu0 %v484
        %530 = vmatprep.subr.bf16.mxu0 %v481
        %531 = vmatpush1.bf16.msra.mxu0 %v480
        %532 = vmatprep.subr.bf16.mxu0 0
        %533 = vmatpush2.bf16.msra.mxu0 0
        %534 = vmatprep.subr.bf16.mxu0 0
        %535 = vmatpush2.bf16.msra.mxu0 0
        %536 = vmatprep.subr.bf16.mxu0 0
        %537 = vmatpush2.bf16.msra.mxu0 0
        %538 = vmatprep.subr.bf16.mxu0 0
        %539 = vmatpush2.bf16.msra.mxu0 0
        %540 = vmatprep.subr.bf16.mxu0 0
        %541 = vmatpush2.bf16.msra.mxu0 0
        %542 = vmatprep.subr.bf16.mxu0 0
        %543 = vmatpush2.bf16.msra.mxu0 0
        %544 = vmatprep.subr.bf16.mxu0 0
        %545 = vmatpush2.bf16.msra.mxu0 0
        %546 = vmatprep.subr.bf16.mxu0 0
        %547 = vmatpush2.bf16.msra.mxu0 0
        %548 = vmatprep.mubr.bf16.mxu0 0
        %549 = vmatmul.mubr.bf16.gmra.mxu0 %v514
        %v550 = vpop.f32.mrf.mxu0
        %v551 = vadd.f32 %v415, %v550
        %v552 = vpop.f32.mrf.mxu0
        %v553 = vadd.f32 %v419, %v552
        %v554 = vpop.f32.mrf.mxu0
        %v555 = vpop.f32.mrf.mxu0
        %556 = vdwg.mxu0
        %557 = vmatprep.subr.bf16.mxu0 0
        %558 = vmatpush1.bf16.msra.mxu0 0
        %559 = vmatprep.subr.bf16.mxu0 0
        %560 = vmatpush1.bf16.msra.mxu0 0
        %561 = vmatprep.subr.bf16.mxu0 0
        %562 = vmatpush1.bf16.msra.mxu0 0
        %563 = vmatprep.subr.bf16.mxu0 0
        %564 = vmatpush1.bf16.msra.mxu0 0
        %565 = vmatprep.subr.bf16.mxu0 %v495
        %566 = vmatpush1.bf16.msra.mxu0 %v494
        %567 = vmatprep.subr.bf16.mxu0 %v491
        %568 = vmatpush1.bf16.msra.mxu0 %v490
        %569 = vmatprep.subr.bf16.mxu0 %v487
        %570 = vmatpush1.bf16.msra.mxu0 %v486
        %571 = vmatprep.subr.bf16.mxu0 %v483
        %572 = vmatpush1.bf16.msra.mxu0 %v482
        %573 = vmatprep.subr.bf16.mxu0 0
        %574 = vmatpush2.bf16.msra.mxu0 0
        %575 = vmatprep.subr.bf16.mxu0 0
        %576 = vmatpush2.bf16.msra.mxu0 0
        %577 = vmatprep.subr.bf16.mxu0 0
        %578 = vmatpush2.bf16.msra.mxu0 0
        %579 = vmatprep.subr.bf16.mxu0 0
        %580 = vmatpush2.bf16.msra.mxu0 0
        %581 = vmatprep.subr.bf16.mxu0 0
        %582 = vmatpush2.bf16.msra.mxu0 0
        %583 = vmatprep.subr.bf16.mxu0 0
        %584 = vmatpush2.bf16.msra.mxu0 0
        %585 = vmatprep.subr.bf16.mxu0 0
        %586 = vmatpush2.bf16.msra.mxu0 0
        %587 = vmatprep.subr.bf16.mxu0 0
        %588 = vmatpush2.bf16.msra.mxu0 0
        %589 = vmatprep.mubr.bf16.mxu0 0
        %590 = vmatmul.mubr.bf16.gmra.mxu0 %v514
        %v591 = vpop.f32.mrf.mxu0
        %v592 = vadd.f32 %v423, %v591
        %v593 = vpop.f32.mrf.mxu0
        %v594 = vadd.f32 %v427, %v593
        %v595 = vpop.f32.mrf.mxu0
        %v596 = vpop.f32.mrf.mxu0
        %597 = vdwg.mxu0
        %v598 = vmax.f32 %v551, 0.0
        %v599 = vmax.f32 %v553, 0.0
        %v600 = vmax.f32 %v592, 0.0
        %v601 = vmax.f32 %v594, 0.0
        %v602 = vld [vmem:[%s382] sm:$0xf]
        %v604 = vsel %vm512, %v602, 0
        %606 = vmatprep.subr.bf16.mxu0 0
        %607 = vmatpush1.bf16.msra.mxu0 0
        %608 = vmatprep.subr.bf16.mxu0 0
        %609 = vmatpush1.bf16.msra.mxu0 0
        %610 = vmatprep.subr.bf16.mxu0 0
        %611 = vmatpush1.bf16.msra.mxu0 0
        %612 = vmatprep.subr.bf16.mxu0 0
        %613 = vmatpush1.bf16.msra.mxu0 0
        %614 = vmatprep.subr.bf16.mxu0 %v493
        %615 = vmatpush1.bf16.msra.mxu0 %v492
        %616 = vmatprep.subr.bf16.mxu0 %v489
        %617 = vmatpush1.bf16.msra.mxu0 %v488
        %618 = vmatprep.subr.bf16.mxu0 %v485
        %619 = vmatpush1.bf16.msra.mxu0 %v484
        %620 = vmatprep.subr.bf16.mxu0 %v481
        %621 = vmatpush1.bf16.msra.mxu0 %v480
        %622 = vmatprep.subr.bf16.mxu0 0
        %623 = vmatpush2.bf16.msra.mxu0 0
        %624 = vmatprep.subr.bf16.mxu0 0
        %625 = vmatpush2.bf16.msra.mxu0 0
        %626 = vmatprep.subr.bf16.mxu0 0
        %627 = vmatpush2.bf16.msra.mxu0 0
        %628 = vmatprep.subr.bf16.mxu0 0
        %629 = vmatpush2.bf16.msra.mxu0 0
        %630 = vmatprep.subr.bf16.mxu0 0
        %631 = vmatpush2.bf16.msra.mxu0 0
        %632 = vmatprep.subr.bf16.mxu0 0
        %633 = vmatpush2.bf16.msra.mxu0 0
        %634 = vmatprep.subr.bf16.mxu0 0
        %635 = vmatpush2.bf16.msra.mxu0 0
        %636 = vmatprep.subr.bf16.mxu0 0
        %637 = vmatpush2.bf16.msra.mxu0 0
        %638 = vmatprep.mubr.bf16.mxu0 0
        %639 = vmatmul.mubr.bf16.gmra.mxu0 %v604
        %v640 = vpop.f32.mrf.mxu0
        %v641 = vadd.f32 %v415, %v640
        %v642 = vpop.f32.mrf.mxu0
        %v643 = vadd.f32 %v419, %v642
        %v644 = vpop.f32.mrf.mxu0
        %v645 = vpop.f32.mrf.mxu0
        %646 = vdwg.mxu0
        %647 = vmatprep.subr.bf16.mxu0 0
        %648 = vmatpush1.bf16.msra.mxu0 0
        %649 = vmatprep.subr.bf16.mxu0 0
        %650 = vmatpush1.bf16.msra.mxu0 0
        %651 = vmatprep.subr.bf16.mxu0 0
        %652 = vmatpush1.bf16.msra.mxu0 0
        %653 = vmatprep.subr.bf16.mxu0 0
        %654 = vmatpush1.bf16.msra.mxu0 0
        %655 = vmatprep.subr.bf16.mxu0 %v495
        %656 = vmatpush1.bf16.msra.mxu0 %v494
        %657 = vmatprep.subr.bf16.mxu0 %v491
        %658 = vmatpush1.bf16.msra.mxu0 %v490
        %659 = vmatprep.subr.bf16.mxu0 %v487
        %660 = vmatpush1.bf16.msra.mxu0 %v486
        %661 = vmatprep.subr.bf16.mxu0 %v483
        %662 = vmatpush1.bf16.msra.mxu0 %v482
        %663 = vmatprep.subr.bf16.mxu0 0
        %664 = vmatpush2.bf16.msra.mxu0 0
        %665 = vmatprep.subr.bf16.mxu0 0
        %666 = vmatpush2.bf16.msra.mxu0 0
        %667 = vmatprep.subr.bf16.mxu0 0
        %668 = vmatpush2.bf16.msra.mxu0 0
        %669 = vmatprep.subr.bf16.mxu0 0
        %670 = vmatpush2.bf16.msra.mxu0 0
        %671 = vmatprep.subr.bf16.mxu0 0
        %672 = vmatpush2.bf16.msra.mxu0 0
        %673 = vmatprep.subr.bf16.mxu0 0
        %674 = vmatpush2.bf16.msra.mxu0 0
        %675 = vmatprep.subr.bf16.mxu0 0
        %676 = vmatpush2.bf16.msra.mxu0 0
        %677 = vmatprep.subr.bf16.mxu0 0
        %678 = vmatpush2.bf16.msra.mxu0 0
        %679 = vmatprep.mubr.bf16.mxu0 0
        %680 = vmatmul.mubr.bf16.gmra.mxu0 %v604
        %v681 = vpop.f32.mrf.mxu0
        %v682 = vadd.f32 %v423, %v681
        %v683 = vpop.f32.mrf.mxu0
        %v684 = vadd.f32 %v427, %v683
        %v685 = vpop.f32.mrf.mxu0
        %v686 = vpop.f32.mrf.mxu0
        %687 = vdwg.mxu0
        %v688 = vmax.f32 %v641, 0.0
        %v689 = vmax.f32 %v643, 0.0
        %v690 = vmax.f32 %v682, 0.0
        %v691 = vmax.f32 %v684, 0.0
        %v692 = vadd.f32 %v598, %v688
        %v693 = vadd.f32 %v599, %v689
        %v694 = vmul.f32 %v692, 0.5
        %v695 = vmul.f32 %v693, 0.5
        %v696 = vadd.f32 %v601, %v691
        %v697 = vmul.f32 %v696, 0.5
        %v698 = vmax.f32 %v600, %v690
        %v699 = vpack.c.bf16 %v698, %v698
        %v700 = vld [vmem:[%s4] sm:$0xf]
        %v701 = vld [vmem:[%s4 + $0x4] sm:$0xf]
        %v702 = vld [vmem:[%s4 + $0x8] sm:$0xf]
        %v703 = vld [vmem:[%s4 + $0xc] sm:$0xf]
        %v704 = vld [vmem:[%s4 + $0x10] sm:$0xf]
        %v705 = vld [vmem:[%s4 + $0x14] sm:$0xf]
        %v706 = vld [vmem:[%s4 + $0x18] sm:$0xf]
        %v707 = vld [vmem:[%s4 + $0x1c] sm:$0xf]
        %v708 = vld [vmem:[%s4 + $0x20] sm:$0xf]
        %v709 = vld [vmem:[%s4 + $0x24] sm:$0xf]
        %v710 = vld [vmem:[%s4 + $0x28] sm:$0xf]
        %v711 = vld [vmem:[%s4 + $0x2c] sm:$0xf]
        %v712 = vld [vmem:[%s4 + $0x30] sm:$0xf]
        %v713 = vld [vmem:[%s4 + $0x34] sm:$0xf]
        %v714 = vld [vmem:[%s4 + $0x38] sm:$0xf]
        %v715 = vld [vmem:[%s4 + $0x3c] sm:$0xf]
        %v716 = vpack.c.bf16 %v697, %v697
        %v717 = vld [vmem:[%s4 + $0x40] sm:$0xf]
        %v718 = vld [vmem:[%s4 + $0x44] sm:$0xf]
        %v719 = vld [vmem:[%s4 + $0x48] sm:$0xf]
        %v720 = vld [vmem:[%s4 + $0x4c] sm:$0xf]
        %v721 = vld [vmem:[%s4 + $0x50] sm:$0xf]
        %v722 = vld [vmem:[%s4 + $0x54] sm:$0xf]
        %v723 = vld [vmem:[%s4 + $0x58] sm:$0xf]
        %v724 = vld [vmem:[%s4 + $0x5c] sm:$0xf]
        %v725 = vld [vmem:[%s4 + $0x60] sm:$0xf]
        %v726 = vld [vmem:[%s4 + $0x64] sm:$0xf]
        %v727 = vld [vmem:[%s4 + $0x68] sm:$0xf]
        %v728 = vld [vmem:[%s4 + $0x6c] sm:$0xf]
        %v729 = vld [vmem:[%s4 + $0x70] sm:$0xf]
        %v730 = vld [vmem:[%s4 + $0x74] sm:$0xf]
        %v731 = vld [vmem:[%s4 + $0x78] sm:$0xf]
        %v732 = vld [vmem:[%s4 + $0x7c] sm:$0xf]
        %v749 = vunpack.c.l.b16 %v717
        %v750 = vunpack.c.l.b16 %v718
        %v751 = vunpack.c.l.b16 %v719
        %v752 = vunpack.c.l.b16 %v720
        %v753 = vunpack.c.l.b16 %v721
        %v754 = vunpack.c.l.b16 %v722
        %v755 = vunpack.c.l.b16 %v723
        %v756 = vunpack.c.l.b16 %v724
        %v757 = vunpack.c.l.b16 %v725
        %v758 = vunpack.c.l.b16 %v726
        %v759 = vunpack.c.l.b16 %v727
        %v760 = vunpack.c.l.b16 %v728
        %v761 = vunpack.c.l.b16 %v729
        %v762 = vunpack.c.l.b16 %v730
        %v763 = vunpack.c.l.b16 %v731
        %v764 = vunpack.c.l.b16 %v732
        %v765 = vpack.c.b16 %v750, %v749
        %v766 = vpack.c.b16 %v752, %v751
        %v767 = vpack.c.b16 %v754, %v753
        %v768 = vpack.c.b16 %v756, %v755
        %v769 = vpack.c.b16 %v758, %v757
        %v770 = vpack.c.b16 %v760, %v759
        %v771 = vpack.c.b16 %v762, %v761
        %v772 = vpack.c.b16 %v764, %v763
        %781 = vmatprep.subr.bf16.mxu0 0
        %782 = vmatpush1.bf16.msra.mxu0 %v772
        %783 = vmatprep.subr.bf16.mxu0 0
        %784 = vmatpush1.bf16.msra.mxu0 %v771
        %785 = vmatprep.subr.bf16.mxu0 0
        %786 = vmatpush1.bf16.msra.mxu0 %v770
        %787 = vmatprep.subr.bf16.mxu0 0
        %788 = vmatpush1.bf16.msra.mxu0 %v769
        %789 = vmatprep.subr.bf16.mxu0 0
        %790 = vmatpush1.bf16.msra.mxu0 %v768
        %791 = vmatprep.subr.bf16.mxu0 0
        %792 = vmatpush1.bf16.msra.mxu0 %v767
        %793 = vmatprep.subr.bf16.mxu0 0
        %794 = vmatpush1.bf16.msra.mxu0 %v766
        %795 = vmatprep.subr.bf16.mxu0 0
        %796 = vmatpush1.bf16.msra.mxu0 %v765
        %797 = vmatprep.subr.bf16.mxu0 0
        %798 = vmatpush2.bf16.msra.mxu0 0
        %799 = vmatprep.subr.bf16.mxu0 0
        %800 = vmatpush2.bf16.msra.mxu0 0
        %801 = vmatprep.subr.bf16.mxu0 0
        %802 = vmatpush2.bf16.msra.mxu0 0
        %803 = vmatprep.subr.bf16.mxu0 0
        %804 = vmatpush2.bf16.msra.mxu0 0
        %805 = vmatprep.subr.bf16.mxu0 0
        %806 = vmatpush2.bf16.msra.mxu0 0
        %807 = vmatprep.subr.bf16.mxu0 0
        %808 = vmatpush2.bf16.msra.mxu0 0
        %809 = vmatprep.subr.bf16.mxu0 0
        %810 = vmatpush2.bf16.msra.mxu0 0
        %811 = vmatprep.subr.bf16.mxu0 0
        %812 = vmatpush2.bf16.msra.mxu0 0
        %813 = vmatprep.mubr.bf16.mxu0 0
        %814 = vmatmul.mubr.bf16.gmra.mxu0 %v716
        %v815 = vpop.f32.mrf.mxu0
        %v816 = vadd.f32 0.0, %v815
        %v817 = vpop.f32.mrf.mxu0
        %v818 = vpop.f32.mrf.mxu0
        %v819 = vpop.f32.mrf.mxu0
        %820 = vdwg.mxu0
        %v837 = vunpack.c.l.b16 %v700
        %v838 = vunpack.c.l.b16 %v701
        %v839 = vunpack.c.l.b16 %v702
        %v840 = vunpack.c.l.b16 %v703
        %v841 = vunpack.c.l.b16 %v704
        %v842 = vunpack.c.l.b16 %v705
        %v843 = vunpack.c.l.b16 %v706
        %v844 = vunpack.c.l.b16 %v707
        %v845 = vunpack.c.l.b16 %v708
        %v846 = vunpack.c.l.b16 %v709
        %v847 = vunpack.c.l.b16 %v710
        %v848 = vunpack.c.l.b16 %v711
        %v849 = vunpack.c.l.b16 %v712
        %v850 = vunpack.c.l.b16 %v713
        %v851 = vunpack.c.l.b16 %v714
        %v852 = vunpack.c.l.b16 %v715
        %v853 = vpack.c.b16 %v838, %v837
        %v854 = vpack.c.b16 %v840, %v839
        %v855 = vpack.c.b16 %v842, %v841
        %v856 = vpack.c.b16 %v844, %v843
        %v857 = vpack.c.b16 %v846, %v845
        %v858 = vpack.c.b16 %v848, %v847
        %v859 = vpack.c.b16 %v850, %v849
        %v860 = vpack.c.b16 %v852, %v851
        %869 = vmatprep.subr.bf16.mxu0 0
        %870 = vmatpush1.bf16.msra.mxu0 %v860
        %871 = vmatprep.subr.bf16.mxu0 0
        %872 = vmatpush1.bf16.msra.mxu0 %v859
        %873 = vmatprep.subr.bf16.mxu0 0
        %874 = vmatpush1.bf16.msra.mxu0 %v858
        %875 = vmatprep.subr.bf16.mxu0 0
        %876 = vmatpush1.bf16.msra.mxu0 %v857
        %877 = vmatprep.subr.bf16.mxu0 0
        %878 = vmatpush1.bf16.msra.mxu0 %v856
        %879 = vmatprep.subr.bf16.mxu0 0
        %880 = vmatpush1.bf16.msra.mxu0 %v855
        %881 = vmatprep.subr.bf16.mxu0 0
        %882 = vmatpush1.bf16.msra.mxu0 %v854
        %883 = vmatprep.subr.bf16.mxu0 0
        %884 = vmatpush1.bf16.msra.mxu0 %v853
        %885 = vmatprep.subr.bf16.mxu0 0
        %886 = vmatpush2.bf16.msra.mxu0 0
        %887 = vmatprep.subr.bf16.mxu0 0
        %888 = vmatpush2.bf16.msra.mxu0 0
        %889 = vmatprep.subr.bf16.mxu0 0
        %890 = vmatpush2.bf16.msra.mxu0 0
        %891 = vmatprep.subr.bf16.mxu0 0
        %892 = vmatpush2.bf16.msra.mxu0 0
        %893 = vmatprep.subr.bf16.mxu0 0
        %894 = vmatpush2.bf16.msra.mxu0 0
        %895 = vmatprep.subr.bf16.mxu0 0
        %896 = vmatpush2.bf16.msra.mxu0 0
        %897 = vmatprep.subr.bf16.mxu0 0
        %898 = vmatpush2.bf16.msra.mxu0 0
        %899 = vmatprep.subr.bf16.mxu0 0
        %900 = vmatpush2.bf16.msra.mxu0 0
        %901 = vmatprep.mubr.bf16.mxu0 0
        %902 = vmatmul.mubr.bf16.gmra.mxu0 %v699
        %v903 = vpop.f32.mrf.mxu0
        %v904 = vadd.f32 %v816, %v903
        %v905 = vpop.f32.mrf.mxu0
        %v906 = vpop.f32.mrf.mxu0
        %v907 = vpop.f32.mrf.mxu0
        %908 = vdwg.mxu0
        %v909 = vld [vmem:[%s5] sm:$0x1]
        %v911 = vlaneseq
        %v912 = vshrl.u32 %v911, 7
        %v913 = vsub.s32 0, %v912
        %v914 = vrot.slane %v909, %v913
        %v916 = vadd.f32 %v904, %v914
        %v917 = vmax.f32 %v916, 0.0
        %v918 = vadd.f32 %v917, %v697
        %v919 = vpack.c.bf16 %v918, %v918
        %v920 = vld [vmem:[%s6] sm:$0xff]
        %v921 = vld [vmem:[%s6 + $0x8] sm:$0xff]
        %v922 = vld [vmem:[%s6 + $0x10] sm:$0xff]
        %v923 = vld [vmem:[%s6 + $0x18] sm:$0xff]
        %v924 = vld [vmem:[%s6 + $0x20] sm:$0xff]
        %v925 = vld [vmem:[%s6 + $0x28] sm:$0xff]
        %v926 = vld [vmem:[%s6 + $0x30] sm:$0xff]
        %v927 = vld [vmem:[%s6 + $0x38] sm:$0xff]
        %v928 = vld [vmem:[%s6 + $0x40] sm:$0xff]
        %v929 = vld [vmem:[%s6 + $0x48] sm:$0xff]
        %v930 = vld [vmem:[%s6 + $0x50] sm:$0xff]
        %v931 = vld [vmem:[%s6 + $0x58] sm:$0xff]
        %v932 = vld [vmem:[%s6 + $0x60] sm:$0xff]
        %v933 = vld [vmem:[%s6 + $0x68] sm:$0xff]
        %v934 = vld [vmem:[%s6 + $0x70] sm:$0xff]
        %v935 = vld [vmem:[%s6 + $0x78] sm:$0xff]
        %v936 = vpack.c.bf16 %v694, %v694
        %v937 = vpack.c.bf16 %v695, %v695
        %v938 = vld [vmem:[%s6 + $0x80] sm:$0xff]
        %v939 = vld [vmem:[%s6 + $0x88] sm:$0xff]
        %v940 = vld [vmem:[%s6 + $0x90] sm:$0xff]
        %v941 = vld [vmem:[%s6 + $0x98] sm:$0xff]
        %v942 = vld [vmem:[%s6 + $0xa0] sm:$0xff]
        %v943 = vld [vmem:[%s6 + $0xa8] sm:$0xff]
        %v944 = vld [vmem:[%s6 + $0xb0] sm:$0xff]
        %v945 = vld [vmem:[%s6 + $0xb8] sm:$0xff]
        %v946 = vld [vmem:[%s6 + $0xc0] sm:$0xff]
        %v947 = vld [vmem:[%s6 + $0xc8] sm:$0xff]
        %v948 = vld [vmem:[%s6 + $0xd0] sm:$0xff]
        %v949 = vld [vmem:[%s6 + $0xd8] sm:$0xff]
        %v950 = vld [vmem:[%s6 + $0xe0] sm:$0xff]
        %v951 = vld [vmem:[%s6 + $0xe8] sm:$0xff]
        %v952 = vld [vmem:[%s6 + $0xf0] sm:$0xff]
        %v953 = vld [vmem:[%s6 + $0xf8] sm:$0xff]
        %v954 = vld [vmem:[%s6 + $0x100] sm:$0xff]
        %v955 = vld [vmem:[%s6 + $0x108] sm:$0xff]
        %v956 = vld [vmem:[%s6 + $0x110] sm:$0xff]
        %v957 = vld [vmem:[%s6 + $0x118] sm:$0xff]
        %v958 = vld [vmem:[%s6 + $0x120] sm:$0xff]
        %v959 = vld [vmem:[%s6 + $0x128] sm:$0xff]
        %v960 = vld [vmem:[%s6 + $0x130] sm:$0xff]
        %v961 = vld [vmem:[%s6 + $0x138] sm:$0xff]
        %v962 = vld [vmem:[%s6 + $0x140] sm:$0xff]
        %v963 = vld [vmem:[%s6 + $0x148] sm:$0xff]
        %v964 = vld [vmem:[%s6 + $0x150] sm:$0xff]
        %v965 = vld [vmem:[%s6 + $0x158] sm:$0xff]
        %v966 = vld [vmem:[%s6 + $0x160] sm:$0xff]
        %v967 = vld [vmem:[%s6 + $0x168] sm:$0xff]
        %v968 = vld [vmem:[%s6 + $0x170] sm:$0xff]
        %v969 = vld [vmem:[%s6 + $0x178] sm:$0xff]
        %v1002 = vunpack.c.l.b16 %v938
        %v1003 = vunpack.c.h.b16 %v938
        %v1004 = vunpack.c.l.b16 %v939
        %v1005 = vunpack.c.h.b16 %v939
        %v1006 = vunpack.c.l.b16 %v940
        %v1007 = vunpack.c.h.b16 %v940
        %v1008 = vunpack.c.l.b16 %v941
        %v1009 = vunpack.c.h.b16 %v941
        %v1010 = vunpack.c.l.b16 %v942
        %v1011 = vunpack.c.h.b16 %v942
        %v1012 = vunpack.c.l.b16 %v943
        %v1013 = vunpack.c.h.b16 %v943
        %v1014 = vunpack.c.l.b16 %v944
        %v1015 = vunpack.c.h.b16 %v944
        %v1016 = vunpack.c.l.b16 %v945
        %v1017 = vunpack.c.h.b16 %v945
        %v1018 = vunpack.c.l.b16 %v946
        %v1019 = vunpack.c.h.b16 %v946
        %v1020 = vunpack.c.l.b16 %v947
        %v1021 = vunpack.c.h.b16 %v947
        %v1022 = vunpack.c.l.b16 %v948
        %v1023 = vunpack.c.h.b16 %v948
        %v1024 = vunpack.c.l.b16 %v949
        %v1025 = vunpack.c.h.b16 %v949
        %v1026 = vunpack.c.l.b16 %v950
        %v1027 = vunpack.c.h.b16 %v950
        %v1028 = vunpack.c.l.b16 %v951
        %v1029 = vunpack.c.h.b16 %v951
        %v1030 = vunpack.c.l.b16 %v952
        %v1031 = vunpack.c.h.b16 %v952
        %v1032 = vunpack.c.l.b16 %v953
        %v1033 = vunpack.c.h.b16 %v953
        %v1034 = vunpack.c.l.b16 %v954
        %v1035 = vunpack.c.h.b16 %v954
        %v1036 = vunpack.c.l.b16 %v955
        %v1037 = vunpack.c.h.b16 %v955
        %v1038 = vunpack.c.l.b16 %v956
        %v1039 = vunpack.c.h.b16 %v956
        %v1040 = vunpack.c.l.b16 %v957
        %v1041 = vunpack.c.h.b16 %v957
        %v1042 = vunpack.c.l.b16 %v958
        %v1043 = vunpack.c.h.b16 %v958
        %v1044 = vunpack.c.l.b16 %v959
        %v1045 = vunpack.c.h.b16 %v959
        %v1046 = vunpack.c.l.b16 %v960
        %v1047 = vunpack.c.h.b16 %v960
        %v1048 = vunpack.c.l.b16 %v961
        %v1049 = vunpack.c.h.b16 %v961
        %v1050 = vunpack.c.l.b16 %v962
        %v1051 = vunpack.c.h.b16 %v962
        %v1052 = vunpack.c.l.b16 %v963
        %v1053 = vunpack.c.h.b16 %v963
        %v1054 = vunpack.c.l.b16 %v964
        %v1055 = vunpack.c.h.b16 %v964
        %v1056 = vunpack.c.l.b16 %v965
        %v1057 = vunpack.c.h.b16 %v965
        %v1058 = vunpack.c.l.b16 %v966
        %v1059 = vunpack.c.h.b16 %v966
        %v1060 = vunpack.c.l.b16 %v967
        %v1061 = vunpack.c.h.b16 %v967
        %v1062 = vunpack.c.l.b16 %v968
        %v1063 = vunpack.c.h.b16 %v968
        %v1064 = vunpack.c.l.b16 %v969
        %v1065 = vunpack.c.h.b16 %v969
        %v1066 = vpack.c.b16 %v1004, %v1002
        %v1067 = vpack.c.b16 %v1005, %v1003
        %v1068 = vpack.c.b16 %v1008, %v1006
        %v1069 = vpack.c.b16 %v1009, %v1007
        %v1070 = vpack.c.b16 %v1012, %v1010
        %v1071 = vpack.c.b16 %v1013, %v1011
        %v1072 = vpack.c.b16 %v1016, %v1014
        %v1073 = vpack.c.b16 %v1017, %v1015
        %v1074 = vpack.c.b16 %v1020, %v1018
        %v1075 = vpack.c.b16 %v1021, %v1019
        %v1076 = vpack.c.b16 %v1024, %v1022
        %v1077 = vpack.c.b16 %v1025, %v1023
        %v1078 = vpack.c.b16 %v1028, %v1026
        %v1079 = vpack.c.b16 %v1029, %v1027
        %v1080 = vpack.c.b16 %v1032, %v1030
        %v1081 = vpack.c.b16 %v1033, %v1031
        %v1082 = vpack.c.b16 %v1036, %v1034
        %v1083 = vpack.c.b16 %v1037, %v1035
        %v1084 = vpack.c.b16 %v1040, %v1038
        %v1085 = vpack.c.b16 %v1041, %v1039
        %v1086 = vpack.c.b16 %v1044, %v1042
        %v1087 = vpack.c.b16 %v1045, %v1043
        %v1088 = vpack.c.b16 %v1048, %v1046
        %v1089 = vpack.c.b16 %v1049, %v1047
        %v1090 = vpack.c.b16 %v1052, %v1050
        %v1091 = vpack.c.b16 %v1053, %v1051
        %v1092 = vpack.c.b16 %v1056, %v1054
        %v1093 = vpack.c.b16 %v1057, %v1055
        %v1094 = vpack.c.b16 %v1060, %v1058
        %v1095 = vpack.c.b16 %v1061, %v1059
        %v1096 = vpack.c.b16 %v1064, %v1062
        %v1097 = vpack.c.b16 %v1065, %v1063
        %1130 = vmatprep.subr.bf16.mxu0 %v1081
        %1131 = vmatpush1.bf16.msra.mxu0 %v1080
        %1132 = vmatprep.subr.bf16.mxu0 %v1079
        %1133 = vmatpush1.bf16.msra.mxu0 %v1078
        %1134 = vmatprep.subr.bf16.mxu0 %v1077
        %1135 = vmatpush1.bf16.msra.mxu0 %v1076
        %1136 = vmatprep.subr.bf16.mxu0 %v1075
        %1137 = vmatpush1.bf16.msra.mxu0 %v1074
        %1138 = vmatprep.subr.bf16.mxu0 %v1073
        %1139 = vmatpush1.bf16.msra.mxu0 %v1072
        %1140 = vmatprep.subr.bf16.mxu0 %v1071
        %1141 = vmatpush1.bf16.msra.mxu0 %v1070
        %1142 = vmatprep.subr.bf16.mxu0 %v1069
        %1143 = vmatpush1.bf16.msra.mxu0 %v1068
        %1144 = vmatprep.subr.bf16.mxu0 %v1067
        %1145 = vmatpush1.bf16.msra.mxu0 %v1066
        %1146 = vmatprep.subr.bf16.mxu0 %v1097
        %1147 = vmatpush2.bf16.msra.mxu0 %v1096
        %1148 = vmatprep.subr.bf16.mxu0 %v1095
        %1149 = vmatpush2.bf16.msra.mxu0 %v1094
        %1150 = vmatprep.subr.bf16.mxu0 %v1093
        %1151 = vmatpush2.bf16.msra.mxu0 %v1092
        %1152 = vmatprep.subr.bf16.mxu0 %v1091
        %1153 = vmatpush2.bf16.msra.mxu0 %v1090
        %1154 = vmatprep.subr.bf16.mxu0 %v1089
        %1155 = vmatpush2.bf16.msra.mxu0 %v1088
        %1156 = vmatprep.subr.bf16.mxu0 %v1087
        %1157 = vmatpush2.bf16.msra.mxu0 %v1086
        %1158 = vmatprep.subr.bf16.mxu0 %v1085
        %1159 = vmatpush2.bf16.msra.mxu0 %v1084
        %1160 = vmatprep.subr.bf16.mxu0 %v1083
        %1161 = vmatpush2.bf16.msra.mxu0 %v1082
        %1162 = vmatprep.mubr.bf16.mxu0 %v937
        %1163 = vmatmul.mubr.bf16.gmra.mxu0 %v936
        %v1164 = vpop.f32.mrf.mxu0
        %v1165 = vadd.f32 0.0, %v1164
        %v1166 = vpop.f32.mrf.mxu0
        %v1167 = vadd.f32 0.0, %v1166
        %v1168 = vpop.f32.mrf.mxu0
        %v1169 = vpop.f32.mrf.mxu0
        %1170 = vdwg.mxu0
        %v1187 = vunpack.c.l.b16 %v920
        %v1188 = vunpack.c.h.b16 %v920
        %v1189 = vunpack.c.l.b16 %v921
        %v1190 = vunpack.c.h.b16 %v921
        %v1191 = vunpack.c.l.b16 %v922
        %v1192 = vunpack.c.h.b16 %v922
        %v1193 = vunpack.c.l.b16 %v923
        %v1194 = vunpack.c.h.b16 %v923
        %v1195 = vunpack.c.l.b16 %v924
        %v1196 = vunpack.c.h.b16 %v924
        %v1197 = vunpack.c.l.b16 %v925
        %v1198 = vunpack.c.h.b16 %v925
        %v1199 = vunpack.c.l.b16 %v926
        %v1200 = vunpack.c.h.b16 %v926
        %v1201 = vunpack.c.l.b16 %v927
        %v1202 = vunpack.c.h.b16 %v927
        %v1203 = vunpack.c.l.b16 %v928
        %v1204 = vunpack.c.h.b16 %v928
        %v1205 = vunpack.c.l.b16 %v929
        %v1206 = vunpack.c.h.b16 %v929
        %v1207 = vunpack.c.l.b16 %v930
        %v1208 = vunpack.c.h.b16 %v930
        %v1209 = vunpack.c.l.b16 %v931
        %v1210 = vunpack.c.h.b16 %v931
        %v1211 = vunpack.c.l.b16 %v932
        %v1212 = vunpack.c.h.b16 %v932
        %v1213 = vunpack.c.l.b16 %v933
        %v1214 = vunpack.c.h.b16 %v933
        %v1215 = vunpack.c.l.b16 %v934
        %v1216 = vunpack.c.h.b16 %v934
        %v1217 = vunpack.c.l.b16 %v935
        %v1218 = vunpack.c.h.b16 %v935
        %v1219 = vpack.c.b16 %v1189, %v1187
        %v1220 = vpack.c.b16 %v1190, %v1188
        %v1221 = vpack.c.b16 %v1193, %v1191
        %v1222 = vpack.c.b16 %v1194, %v1192
        %v1223 = vpack.c.b16 %v1197, %v1195
        %v1224 = vpack.c.b16 %v1198, %v1196
        %v1225 = vpack.c.b16 %v1201, %v1199
        %v1226 = vpack.c.b16 %v1202, %v1200
        %v1227 = vpack.c.b16 %v1205, %v1203
        %v1228 = vpack.c.b16 %v1206, %v1204
        %v1229 = vpack.c.b16 %v1209, %v1207
        %v1230 = vpack.c.b16 %v1210, %v1208
        %v1231 = vpack.c.b16 %v1213, %v1211
        %v1232 = vpack.c.b16 %v1214, %v1212
        %v1233 = vpack.c.b16 %v1217, %v1215
        %v1234 = vpack.c.b16 %v1218, %v1216
        %1251 = vmatprep.subr.bf16.mxu0 %v1234
        %1252 = vmatpush1.bf16.msra.mxu0 %v1233
        %1253 = vmatprep.subr.bf16.mxu0 %v1232
        %1254 = vmatpush1.bf16.msra.mxu0 %v1231
        %1255 = vmatprep.subr.bf16.mxu0 %v1230
        %1256 = vmatpush1.bf16.msra.mxu0 %v1229
        %1257 = vmatprep.subr.bf16.mxu0 %v1228
        %1258 = vmatpush1.bf16.msra.mxu0 %v1227
        %1259 = vmatprep.subr.bf16.mxu0 %v1226
        %1260 = vmatpush1.bf16.msra.mxu0 %v1225
        %1261 = vmatprep.subr.bf16.mxu0 %v1224
        %1262 = vmatpush1.bf16.msra.mxu0 %v1223
        %1263 = vmatprep.subr.bf16.mxu0 %v1222
        %1264 = vmatpush1.bf16.msra.mxu0 %v1221
        %1265 = vmatprep.subr.bf16.mxu0 %v1220
        %1266 = vmatpush1.bf16.msra.mxu0 %v1219
        %1267 = vmatprep.subr.bf16.mxu0 0
        %1268 = vmatpush2.bf16.msra.mxu0 0
        %1269 = vmatprep.subr.bf16.mxu0 0
        %1270 = vmatpush2.bf16.msra.mxu0 0
        %1271 = vmatprep.subr.bf16.mxu0 0
        %1272 = vmatpush2.bf16.msra.mxu0 0
        %1273 = vmatprep.subr.bf16.mxu0 0
        %1274 = vmatpush2.bf16.msra.mxu0 0
        %1275 = vmatprep.subr.bf16.mxu0 0
        %1276 = vmatpush2.bf16.msra.mxu0 0
        %1277 = vmatprep.subr.bf16.mxu0 0
        %1278 = vmatpush2.bf16.msra.mxu0 0
        %1279 = vmatprep.subr.bf16.mxu0 0
        %1280 = vmatpush2.bf16.msra.mxu0 0
        %1281 = vmatprep.subr.bf16.mxu0 0
        %1282 = vmatpush2.bf16.msra.mxu0 0
        %1283 = vmatprep.mubr.bf16.mxu0 0
        %1284 = vmatmul.mubr.bf16.gmra.mxu0 %v919
        %v1285 = vpop.f32.mrf.mxu0
        %v1286 = vadd.f32 %v1165, %v1285
        %v1287 = vpop.f32.mrf.mxu0
        %v1288 = vadd.f32 %v1167, %v1287
        %v1289 = vpop.f32.mrf.mxu0
        %v1290 = vpop.f32.mrf.mxu0
        %1291 = vdwg.mxu0
        %v1292 = vld [vmem:[%s7] sm:$0x3]
        %v1294 = vlaneseq
        %v1295 = vshrl.u32 %v1294, 7
        %v1296 = vsub.s32 0, %v1295
        %v1297 = vrot.slane %v1292, %v1296
        %v1298 = vlaneseq
        %v1299 = vshrl.u32 %v1298, 7
        %v1300 = vsub.s32 1, %v1299
        %v1301 = vrot.slane %v1292, %v1300
        %v1304 = vadd.f32 %v1286, %v1297
        %v1305 = vadd.f32 %v1288, %v1301
        %v1306 = vmax.f32 %v1304, 0.0
        %v1307 = vmax.f32 %v1305, 0.0
        %v1308 = vadd.f32 %v1306, %v694
        %v1309 = vadd.f32 %v1307, %v695
        %1310 = vst [vmem:[%s391] sm:$0xff] %v1308
        %1311 = vst [vmem:[%s391 + $0x8] sm:$0xff] %v1309
        %p1312 = scmp.lt.s32.totalorder %s25, 1
        %s1313 = scalar_select %p1312, %s25, 1
        %p1314 = scmp.lt.s32.totalorder %s26, 0
        %s1315 = scalar_select %p1314, %s26, 0
        %s1316 = smul.addr %s1315, 2
        %s1317 = smul.addr %s1313, 2
        %s1318 = sadd.s32 %s1316, %s1317
        %s1319 = smul.addr %s1318, 8
        %s1320 = scalar_lea.vmem %s8, %s1319
        // Predicated region
        $region61: #{_lambda_.6} parent=51 // pred_check
          %p1321 = pneg %p235
        $region62: #{_lambda_.6} parent=51 // pred_check_branch
          %1323 = sbr.rel (%p1321) target = $region64
        $region63: #{_lambda_.6} parent=51 // pred_region
          _
        $region64: #{_lambda_.6} parent=51 // pred_fallthru
          _
      $region52: #{_lambda_.6} parent=5 // pred_fallthru
        _
      %p1324 = scmp.le.s32.totalorder 2, %s16
      // Predicated region
      $region65: #{_lambda_.6} parent=5 // pred_check
        %p1325 = pneg %p1324
      $region66: #{_lambda_.6} parent=5 // pred_check_branch
        %1327 = sbr.rel (%p1325) target = $region68
      $region67: #{_lambda_.6} parent=5 // pred_region
        %s1328 = ssub.s32 %s16, 2
        // Predicated region
        $region69: #{_lambda_.6} parent=67 // pred_check
          %p1329 = pneg %p241
        $region70: #{_lambda_.6} parent=67 // pred_check_branch
          %1331 = sbr.rel (%p1329) target = $region72
        $region71: #{_lambda_.6} parent=67 // pred_region
          %p1332 = scmp.lt.s32.totalorder %s27, 1
          %s1333 = scalar_select %p1332, %s27, 1
          %p1334 = scmp.lt.s32.totalorder %s28, 0
          %s1335 = scalar_select %p1334, %s28, 0
          %s1336 = smul.addr %s1335, 2
          %s1337 = smul.addr %s1333, 2
          %s1338 = sadd.s32 %s1336, %s1337
          %s1339 = smul.addr %s1338, 8
          %s1340 = scalar_lea.vmem %s8, %s1339
        $region72: #{_lambda_.6} parent=67 // pred_fallthru
          _
      $region68: #{_lambda_.6} parent=5 // pred_fallthru
        _
    $region6: #{_lambda_.6} parent=1 // loop_footer
      %s20 = sadd.s32 1, %s16
    $region7: #{_lambda_.6} parent=1 // loop_footer_branch
      %15 = sbr.rel target = $region3
    $region8: #{_lambda_.6} parent=1 // loop_exit
      _
    %1341 = vsyncpa [#allocation3], 1
    %s1342 = scalar_lea.sflag [#allocation3], 1
    %1343 = vsyncpa %s1342, 1
    %1344 = vsyncpa [#allocation5], 1

// kernel: _lambda_.8
$region0: #{_lambda_.8}
  #allocation0 [shape = 'u32[]', space=smem, size = 0x4, offset = 0x4, fixed_abs, tag = 'smem constant byte address 0x4 - core index']
  #allocation1 [shape = 'u32[144,128]{1,0:T(1,128)}', space=vmem, size = 0x12000, scoped, tag = 'internal scratch']
  #allocation2 [shape = 'f32[2,2,128]{2,1,0:T(2,128)}', space=vmem, size = 0x800, scoped, tag = 'scratch operand']
  %s0 = inlined_call_operand.vmem [shape: f32[8,2,256], index: 0, kind: input, shape index: {}, may-alias: {0,1}]
  %s1 = inlined_call_operand.vmem [shape: f32[8,2,256], index: 1, kind: input, shape index: {}, may-alias: {0,1}]
  %s2 = inlined_call_operand.vmem [shape: bf16[256,768], index: 2, kind: input, shape index: {}]
  %s3 = inlined_call_operand.vmem [shape: f32[1,768], index: 3, kind: input, shape index: {}]
  %s4 = inlined_call_operand.vmem [shape: bf16[2,128,384], index: 4, kind: input, shape index: {}]
  %s5 = inlined_call_operand.vmem [shape: f32[2,1,384], index: 5, kind: input, shape index: {}]
  %s6 = inlined_call_operand.vmem [shape: f32[8,2,128], index: 6, kind: output, shape index: {0}]
  %s7 = inlined_call_operand.vmem [shape: f32[8,2,128], index: 7, kind: output, shape index: {1}]
  %8 = xla_tuple %s6, %s7
  %s9 = sld [smem:[#allocation0]]
  $region53: #{_lambda_.8} parent=0
    _
  %s11 = ssub.s32 1, %s9
  %s12 = scalar_select 0, %s11, %s9
  // Predicated region
  $region2: #{_lambda_.8} parent=0 // pred_check
    _
  $region3: #{_lambda_.8} parent=0 // pred_check_branch
    %14 = sbr.rel (0) target = $region5
  $region4: #{_lambda_.8} parent=0 // pred_region
    _
  $region5: #{_lambda_.8} parent=0 // pred_fallthru
    _
  // Predicated region
  $region6: #{_lambda_.8} parent=0 // pred_check
    _
  $region7: #{_lambda_.8} parent=0 // pred_check_branch
    %16 = sbr.rel (0) target = $region9
  $region8: #{_lambda_.8} parent=0 // pred_region
    %s17 = ssub.s32 0, 0
    %s18 = smul.u32 8, %s17
    %p19 = scmp.lt.s32.totalorder %s18, 7
    %s20 = scalar_select %p19, %s18, 7
    %s21 = smul.addr %s20, 2
    %s22 = smul.addr %s21, 2
    %s23 = scalar_lea.vmem %s1, %s22
    %s24 = ssub.s32 0, 0
    %s25 = smul.u32 8, %s24
  $region9: #{_lambda_.8} parent=0 // pred_fallthru
    _
  // Predicated region
  $region10: #{_lambda_.8} parent=0 // pred_check
    _
  $region11: #{_lambda_.8} parent=0 // pred_check_branch
    %27 = sbr.rel (0) target = $region13
  $region12: #{_lambda_.8} parent=0 // pred_region
    _
  $region13: #{_lambda_.8} parent=0 // pred_fallthru
    _
  // Predicated region
  $region14: #{_lambda_.8} parent=0 // pred_check
    _
  $region15: #{_lambda_.8} parent=0 // pred_check_branch
    %29 = sbr.rel (0) target = $region17
  $region16: #{_lambda_.8} parent=0 // pred_region
    _
  $region17: #{_lambda_.8} parent=0 // pred_fallthru
    _
  // Predicated region
  $region18: #{_lambda_.8} parent=0 // pred_check
    _
  $region19: #{_lambda_.8} parent=0 // pred_check_branch
    %31 = sbr.rel (0) target = $region21
  $region20: #{_lambda_.8} parent=0 // pred_region
    _
  $region21: #{_lambda_.8} parent=0 // pred_fallthru
    _
  // Predicated region
  $region22: #{_lambda_.8} parent=0 // pred_check
    _
  $region23: #{_lambda_.8} parent=0 // pred_check_branch
    %33 = sbr.rel (0) target = $region25
  $region24: #{_lambda_.8} parent=0 // pred_region
    _
  $region25: #{_lambda_.8} parent=0 // pred_fallthru
    _
  %s34 = ssub.s32 0, 0
  %s35 = smul.u32 8, %s34
  %p36 = scmp.lt.s32.totalorder %s35, 7
  %s37 = scalar_select %p36, %s35, 7
  %s38 = smul.addr %s37, 2
  %s39 = smul.addr %s38, 2
  %s40 = scalar_lea.vmem %s1, %s39
  %s41 = ssub.s32 0, 0
  %s42 = smul.u32 8, %s41
  %p43 = scmp.lt.s32.totalorder %s42, 7
  %s44 = scalar_select %p43, %s42, 7
  %s45 = smul.addr %s44, 2
  %s46 = scalar_lea.vmem %s7, %s45
  %s47 = ssub.s32 0, 0
  %s48 = smul.u32 8, %s47
  %p49 = scmp.lt.s32.totalorder %s48, 7
  %s50 = scalar_select %p49, %s48, 7
  %s51 = smul.addr %s50, 2
  %s52 = smul.addr %s51, 2
  %s53 = scalar_lea.vmem %s1, %s52
  %s54 = ssub.s32 0, 0
  %s55 = smul.u32 8, %s54
  %s56 = ssub.s32 0, 0
  %s57 = smul.u32 8, %s56
  %p58 = scmp.lt.s32.totalorder %s57, 7
  %s59 = scalar_select %p58, %s57, 7
  %s60 = smul.addr %s59, 2
  %s61 = scalar_lea.vmem %s7, %s60
  %s62 = ssub.s32 0, 0
  %s63 = smul.u32 8, %s62
  %p65 = scmp.eq.s32.totalorder 0, 0
  // Predicated region
  $region26: #{_lambda_.8} parent=0 // pred_check
    %p66 = pneg %p65
  $region27: #{_lambda_.8} parent=0 // pred_check_branch
    %68 = sbr.rel (%p66) target = $region29
  $region28: #{_lambda_.8} parent=0 // pred_region
    %69 = vst [vmem:[#allocation2] sm:$0x3] 0.0
    %70 = vst [vmem:[#allocation2 + $0x2] sm:$0x3] 0.0
  $region29: #{_lambda_.8} parent=0 // pred_fallthru
    _
  %v71 = vld [vmem:[%s2] sm:$0xff]
  %v72 = vld [vmem:[%s2 + $0x8] sm:$0xf]
  %v73 = vld [vmem:[%s2 + $0x18] sm:$0xff]
  %v74 = vld [vmem:[%s2 + $0x20] sm:$0xf]
  %v75 = vld [vmem:[%s2 + $0x30] sm:$0xff]
  %v76 = vld [vmem:[%s2 + $0x38] sm:$0xf]
  %v77 = vld [vmem:[%s2 + $0x48] sm:$0xff]
  %v78 = vld [vmem:[%s2 + $0x50] sm:$0xf]
  %v79 = vld [vmem:[%s2 + $0x60] sm:$0xff]
  %v80 = vld [vmem:[%s2 + $0x68] sm:$0xf]
  %v81 = vld [vmem:[%s2 + $0x78] sm:$0xff]
  %v82 = vld [vmem:[%s2 + $0x80] sm:$0xf]
  %v83 = vld [vmem:[%s2 + $0x90] sm:$0xff]
  %v84 = vld [vmem:[%s2 + $0x98] sm:$0xf]
  %v85 = vld [vmem:[%s2 + $0xa8] sm:$0xff]
  %v86 = vld [vmem:[%s2 + $0xb0] sm:$0xf]
  %v87 = vld [vmem:[%s2 + $0xc0] sm:$0xff]
  %v88 = vld [vmem:[%s2 + $0xc8] sm:$0xf]
  %v89 = vld [vmem:[%s2 + $0xd8] sm:$0xff]
  %v90 = vld [vmem:[%s2 + $0xe0] sm:$0xf]
  %v91 = vld [vmem:[%s2 + $0xf0] sm:$0xff]
  %v92 = vld [vmem:[%s2 + $0xf8] sm:$0xf]
  %v93 = vld [vmem:[%s2 + $0x108] sm:$0xff]
  %v94 = vld [vmem:[%s2 + $0x110] sm:$0xf]
  %v95 = vld [vmem:[%s2 + $0x120] sm:$0xff]
  %v96 = vld [vmem:[%s2 + $0x128] sm:$0xf]
  %v97 = vld [vmem:[%s2 + $0x138] sm:$0xff]
  %v98 = vld [vmem:[%s2 + $0x140] sm:$0xf]
  %v99 = vld [vmem:[%s2 + $0x150] sm:$0xff]
  %v100 = vld [vmem:[%s2 + $0x158] sm:$0xf]
  %v101 = vld [vmem:[%s2 + $0x168] sm:$0xff]
  %v102 = vld [vmem:[%s2 + $0x170] sm:$0xf]
  %v103 = vld [vmem:[%s2 + $0x180] sm:$0xff]
  %v104 = vld [vmem:[%s2 + $0x188] sm:$0xf]
  %v105 = vld [vmem:[%s2 + $0x198] sm:$0xff]
  %v106 = vld [vmem:[%s2 + $0x1a0] sm:$0xf]
  %v107 = vld [vmem:[%s2 + $0x1b0] sm:$0xff]
  %v108 = vld [vmem:[%s2 + $0x1b8] sm:$0xf]
  %v109 = vld [vmem:[%s2 + $0x1c8] sm:$0xff]
  %v110 = vld [vmem:[%s2 + $0x1d0] sm:$0xf]
  %v111 = vld [vmem:[%s2 + $0x1e0] sm:$0xff]
  %v112 = vld [vmem:[%s2 + $0x1e8] sm:$0xf]
  %v113 = vld [vmem:[%s2 + $0x1f8] sm:$0xff]
  %v114 = vld [vmem:[%s2 + $0x200] sm:$0xf]
  %v115 = vld [vmem:[%s2 + $0x210] sm:$0xff]
  %v116 = vld [vmem:[%s2 + $0x218] sm:$0xf]
  %v117 = vld [vmem:[%s2 + $0x228] sm:$0xff]
  %v118 = vld [vmem:[%s2 + $0x230] sm:$0xf]
  %v119 = vld [vmem:[%s2 + $0x240] sm:$0xff]
  %v120 = vld [vmem:[%s2 + $0x248] sm:$0xf]
  %v121 = vld [vmem:[%s2 + $0x258] sm:$0xff]
  %v122 = vld [vmem:[%s2 + $0x260] sm:$0xf]
  %v123 = vld [vmem:[%s2 + $0x270] sm:$0xff]
  %v124 = vld [vmem:[%s2 + $0x278] sm:$0xf]
  %v125 = vld [vmem:[%s2 + $0x288] sm:$0xff]
  %v126 = vld [vmem:[%s2 + $0x290] sm:$0xf]
  %v127 = vld [vmem:[%s2 + $0x2a0] sm:$0xff]
  %v128 = vld [vmem:[%s2 + $0x2a8] sm:$0xf]
  %v129 = vld [vmem:[%s2 + $0x2b8] sm:$0xff]
  %v130 = vld [vmem:[%s2 + $0x2c0] sm:$0xf]
  %v131 = vld [vmem:[%s2 + $0x2d0] sm:$0xff]
  %v132 = vld [vmem:[%s2 + $0x2d8] sm:$0xf]
  %v133 = vld [vmem:[%s2 + $0x2e8] sm:$0xff]
  %v134 = vld [vmem:[%s2 + $0x2f0] sm:$0xf]
  %v135 = vld [vmem:[%s2 + $0xc] sm:$0xff]
  %v136 = vld [vmem:[%s2 + $0x14] sm:$0xf]
  %v137 = vld [vmem:[%s2 + $0x24] sm:$0xff]
  %v138 = vld [vmem:[%s2 + $0x2c] sm:$0xf]
  %v139 = vld [vmem:[%s2 + $0x3c] sm:$0xff]
  %v140 = vld [vmem:[%s2 + $0x44] sm:$0xf]
  %v141 = vld [vmem:[%s2 + $0x54] sm:$0xff]
  %v142 = vld [vmem:[%s2 + $0x5c] sm:$0xf]
  %v143 = vld [vmem:[%s2 + $0x6c] sm:$0xff]
  %v144 = vld [vmem:[%s2 + $0x74] sm:$0xf]
  %v145 = vld [vmem:[%s2 + $0x84] sm:$0xff]
  %v146 = vld [vmem:[%s2 + $0x8c] sm:$0xf]
  %v147 = vld [vmem:[%s2 + $0x9c] sm:$0xff]
  %v148 = vld [vmem:[%s2 + $0xa4] sm:$0xf]
  %v149 = vld [vmem:[%s2 + $0xb4] sm:$0xff]
  %v150 = vld [vmem:[%s2 + $0xbc] sm:$0xf]
  %v151 = vld [vmem:[%s2 + $0xcc] sm:$0xff]
  %v152 = vld [vmem:[%s2 + $0xd4] sm:$0xf]
  %v153 = vld [vmem:[%s2 + $0xe4] sm:$0xff]
  %v154 = vld [vmem:[%s2 + $0xec] sm:$0xf]
  %v155 = vld [vmem:[%s2 + $0xfc] sm:$0xff]
  %v156 = vld [vmem:[%s2 + $0x104] sm:$0xf]
  %v157 = vld [vmem:[%s2 + $0x114] sm:$0xff]
  %v158 = vld [vmem:[%s2 + $0x11c] sm:$0xf]
  %v159 = vld [vmem:[%s2 + $0x12c] sm:$0xff]
  %v160 = vld [vmem:[%s2 + $0x134] sm:$0xf]
  %v161 = vld [vmem:[%s2 + $0x144] sm:$0xff]
  %v162 = vld [vmem:[%s2 + $0x14c] sm:$0xf]
  %v163 = vld [vmem:[%s2 + $0x15c] sm:$0xff]
  %v164 = vld [vmem:[%s2 + $0x164] sm:$0xf]
  %v165 = vld [vmem:[%s2 + $0x174] sm:$0xff]
  %v166 = vld [vmem:[%s2 + $0x17c] sm:$0xf]
  %v167 = vld [vmem:[%s2 + $0x18c] sm:$0xff]
  %v168 = vld [vmem:[%s2 + $0x194] sm:$0xf]
  %v169 = vld [vmem:[%s2 + $0x1a4] sm:$0xff]
  %v170 = vld [vmem:[%s2 + $0x1ac] sm:$0xf]
  %v171 = vld [vmem:[%s2 + $0x1bc] sm:$0xff]
  %v172 = vld [vmem:[%s2 + $0x1c4] sm:$0xf]
  %v173 = vld [vmem:[%s2 + $0x1d4] sm:$0xff]
  %v174 = vld [vmem:[%s2 + $0x1dc] sm:$0xf]
  %v175 = vld [vmem:[%s2 + $0x1ec] sm:$0xff]
  %v176 = vld [vmem:[%s2 + $0x1f4] sm:$0xf]
  %v177 = vld [vmem:[%s2 + $0x204] sm:$0xff]
  %v178 = vld [vmem:[%s2 + $0x20c] sm:$0xf]
  %v179 = vld [vmem:[%s2 + $0x21c] sm:$0xff]
  %v180 = vld [vmem:[%s2 + $0x224] sm:$0xf]
  %v181 = vld [vmem:[%s2 + $0x234] sm:$0xff]
  %v182 = vld [vmem:[%s2 + $0x23c] sm:$0xf]
  %v183 = vld [vmem:[%s2 + $0x24c] sm:$0xff]
  %v184 = vld [vmem:[%s2 + $0x254] sm:$0xf]
  %v185 = vld [vmem:[%s2 + $0x264] sm:$0xff]
  %v186 = vld [vmem:[%s2 + $0x26c] sm:$0xf]
  %v187 = vld [vmem:[%s2 + $0x27c] sm:$0xff]
  %v188 = vld [vmem:[%s2 + $0x284] sm:$0xf]
  %v189 = vld [vmem:[%s2 + $0x294] sm:$0xff]
  %v190 = vld [vmem:[%s2 + $0x29c] sm:$0xf]
  %v191 = vld [vmem:[%s2 + $0x2ac] sm:$0xff]
  %v192 = vld [vmem:[%s2 + $0x2b4] sm:$0xf]
  %v193 = vld [vmem:[%s2 + $0x2c4] sm:$0xff]
  %v194 = vld [vmem:[%s2 + $0x2cc] sm:$0xf]
  %v195 = vld [vmem:[%s2 + $0x2dc] sm:$0xff]
  %v196 = vld [vmem:[%s2 + $0x2e4] sm:$0xf]
  %v197 = vld [vmem:[%s2 + $0x2f4] sm:$0xff]
  %v198 = vld [vmem:[%s2 + $0x2fc] sm:$0xf]
  %v199 = vld [vmem:[%s3] sm:$0x7]
  %v200 = vld [vmem:[%s3 + $0x3] sm:$0x7]
  %v201 = vld [vmem:[%s4] sm:$0xff]
  %v202 = vld [vmem:[%s4 + $0x8] sm:$0xf]
  %v203 = vld [vmem:[%s4 + $0xc] sm:$0xff]
  %v204 = vld [vmem:[%s4 + $0x14] sm:$0xf]
  %v205 = vld [vmem:[%s4 + $0x18] sm:$0xff]
  %v206 = vld [vmem:[%s4 + $0x20] sm:$0xf]
  %v207 = vld [vmem:[%s4 + $0x24] sm:$0xff]
  %v208 = vld [vmem:[%s4 + $0x2c] sm:$0xf]
  %v209 = vld [vmem:[%s4 + $0x30] sm:$0xff]
  %v210 = vld [vmem:[%s4 + $0x38] sm:$0xf]
  %v211 = vld [vmem:[%s4 + $0x3c] sm:$0xff]
  %v212 = vld [vmem:[%s4 + $0x44] sm:$0xf]
  %v213 = vld [vmem:[%s4 + $0x48] sm:$0xff]
  %v214 = vld [vmem:[%s4 + $0x50] sm:$0xf]
  %v215 = vld [vmem:[%s4 + $0x54] sm:$0xff]
  %v216 = vld [vmem:[%s4 + $0x5c] sm:$0xf]
  %v217 = vld [vmem:[%s4 + $0x60] sm:$0xff]
  %v218 = vld [vmem:[%s4 + $0x68] sm:$0xf]
  %v219 = vld [vmem:[%s4 + $0x6c] sm:$0xff]
  %v220 = vld [vmem:[%s4 + $0x74] sm:$0xf]
  %v221 = vld [vmem:[%s4 + $0x78] sm:$0xff]
  %v222 = vld [vmem:[%s4 + $0x80] sm:$0xf]
  %v223 = vld [vmem:[%s4 + $0x84] sm:$0xff]
  %v224 = vld [vmem:[%s4 + $0x8c] sm:$0xf]
  %v225 = vld [vmem:[%s4 + $0x90] sm:$0xff]
  %v226 = vld [vmem:[%s4 + $0x98] sm:$0xf]
  %v227 = vld [vmem:[%s4 + $0x9c] sm:$0xff]
  %v228 = vld [vmem:[%s4 + $0xa4] sm:$0xf]
  %v229 = vld [vmem:[%s4 + $0xa8] sm:$0xff]
  %v230 = vld [vmem:[%s4 + $0xb0] sm:$0xf]
  %v231 = vld [vmem:[%s4 + $0xb4] sm:$0xff]
  %v232 = vld [vmem:[%s4 + $0xbc] sm:$0xf]
  %s233 = scalar_lea.vmem %s4, 192
  %v234 = vld [vmem:[%s233] sm:$0xff]
  %v235 = vld [vmem:[%s233 + $0x8] sm:$0xf]
  %v236 = vld [vmem:[%s233 + $0xc] sm:$0xff]
  %v237 = vld [vmem:[%s233 + $0x14] sm:$0xf]
  %v238 = vld [vmem:[%s233 + $0x18] sm:$0xff]
  %v239 = vld [vmem:[%s233 + $0x20] sm:$0xf]
  %v240 = vld [vmem:[%s233 + $0x24] sm:$0xff]
  %v241 = vld [vmem:[%s233 + $0x2c] sm:$0xf]
  %v242 = vld [vmem:[%s233 + $0x30] sm:$0xff]
  %v243 = vld [vmem:[%s233 + $0x38] sm:$0xf]
  %v244 = vld [vmem:[%s233 + $0x3c] sm:$0xff]
  %v245 = vld [vmem:[%s233 + $0x44] sm:$0xf]
  %v246 = vld [vmem:[%s233 + $0x48] sm:$0xff]
  %v247 = vld [vmem:[%s233 + $0x50] sm:$0xf]
  %v248 = vld [vmem:[%s233 + $0x54] sm:$0xff]
  %v249 = vld [vmem:[%s233 + $0x5c] sm:$0xf]
  %v250 = vld [vmem:[%s233 + $0x60] sm:$0xff]
  %v251 = vld [vmem:[%s233 + $0x68] sm:$0xf]
  %v252 = vld [vmem:[%s233 + $0x6c] sm:$0xff]
  %v253 = vld [vmem:[%s233 + $0x74] sm:$0xf]
  %v254 = vld [vmem:[%s233 + $0x78] sm:$0xff]
  %v255 = vld [vmem:[%s233 + $0x80] sm:$0xf]
  %v256 = vld [vmem:[%s233 + $0x84] sm:$0xff]
  %v257 = vld [vmem:[%s233 + $0x8c] sm:$0xf]
  %v258 = vld [vmem:[%s233 + $0x90] sm:$0xff]
  %v259 = vld [vmem:[%s233 + $0x98] sm:$0xf]
  %v260 = vld [vmem:[%s233 + $0x9c] sm:$0xff]
  %v261 = vld [vmem:[%s233 + $0xa4] sm:$0xf]
  %v262 = vld [vmem:[%s233 + $0xa8] sm:$0xff]
  %v263 = vld [vmem:[%s233 + $0xb0] sm:$0xf]
  %v264 = vld [vmem:[%s233 + $0xb4] sm:$0xff]
  %v265 = vld [vmem:[%s233 + $0xbc] sm:$0xf]
  %v266 = vld [vmem:[%s5] sm:$0x7]
  %s267 = scalar_lea.vmem %s5, 3
  %v268 = vld [vmem:[%s267] sm:$0x7]
  loop: start=0, step=1, limit=8
  $region30: #{_lambda_.8} parent=0 // loop_pre_header
    _
  $region31: #{_lambda_.8} parent=0 // loop_header
    %s270 = sphi 0, %s274
    %p271 = scmp.ge.s32.totalorder %s270, 8
  $region32: #{_lambda_.8} parent=0 // loop_header_branch
    %273 = sbr.rel (%p271) target = $region36
  $region33: #{_lambda_.8} parent=0 // loop_body
    %s275 = ssub.s32 7, %s270
    %s276 = smul.u32 %s270, 2
    %s277 = smul.addr %s276, 2
    %s278 = scalar_lea.vmem %s0, %s277
    %v279 = vld [vmem:[%s278] sm:$0xf]
    %v282 = vunpack.c.l.s4 1983009808
    %v283 = vunpack.c.0.s8 %v282
    %v284 = vlaneseq
    %v285 = vshrl.u32 %v284, 7
    %v286 = vsub.s32 %v283, %v285
    %v287 = vrot.slane %v279, %v286
    %v288 = vcombine.high %v287, %v287
    %v291 = vpack.c.bf16 %v287, %v287
    %v292 = vpack.c.bf16 %v288, %v288
    %s293 = smul.u32 %s275, 2
    %s294 = smul.addr %s293, 2
    %s295 = scalar_lea.vmem %s53, %s294
    %v296 = vld [vmem:[%s295] sm:$0xf]
    %v299 = vunpack.c.l.s4 1983009808
    %v300 = vunpack.c.0.s8 %v299
    %v301 = vlaneseq
    %v302 = vshrl.u32 %v301, 7
    %v303 = vsub.s32 %v300, %v302
    %v304 = vrot.slane %v296, %v303
    %v305 = vcombine.high %v304, %v304
    %v308 = vpack.c.bf16 %v304, %v304
    %v309 = vpack.c.bf16 %v305, %v305
    %v310 = vld [vmem:[#allocation2] sm:$0x3]
    %v312 = vlaneseq
    %v313 = vshrl.u32 %v312, 7
    %v314 = vsub.s32 0, %v313
    %v315 = vrot.slane %v199, %v314
    %v316 = vlaneseq
    %v317 = vshrl.u32 %v316, 7
    %v318 = vsub.s32 1, %v317
    %v319 = vrot.slane %v199, %v318
    %v320 = vlaneseq
    %v321 = vshrl.u32 %v320, 7
    %v322 = vsub.s32 2, %v321
    %v323 = vrot.slane %v199, %v322
    %v391 = vunpack.c.l.b16 %v71
    %v392 = vunpack.c.h.b16 %v71
    %v393 = vunpack.c.l.b16 %v72
    %v394 = vunpack.c.l.b16 %v73
    %v395 = vunpack.c.h.b16 %v73
    %v396 = vunpack.c.l.b16 %v74
    %v397 = vunpack.c.l.b16 %v75
    %v398 = vunpack.c.h.b16 %v75
    %v399 = vunpack.c.l.b16 %v76
    %v400 = vunpack.c.l.b16 %v77
    %v401 = vunpack.c.h.b16 %v77
    %v402 = vunpack.c.l.b16 %v78
    %v403 = vunpack.c.l.b16 %v79
    %v404 = vunpack.c.h.b16 %v79
    %v405 = vunpack.c.l.b16 %v80
    %v406 = vunpack.c.l.b16 %v81
    %v407 = vunpack.c.h.b16 %v81
    %v408 = vunpack.c.l.b16 %v82
    %v409 = vunpack.c.l.b16 %v83
    %v410 = vunpack.c.h.b16 %v83
    %v411 = vunpack.c.l.b16 %v84
    %v412 = vunpack.c.l.b16 %v85
    %v413 = vunpack.c.h.b16 %v85
    %v414 = vunpack.c.l.b16 %v86
    %v415 = vunpack.c.l.b16 %v87
    %v416 = vunpack.c.h.b16 %v87
    %v417 = vunpack.c.l.b16 %v88
    %v418 = vunpack.c.l.b16 %v89
    %v419 = vunpack.c.h.b16 %v89
    %v420 = vunpack.c.l.b16 %v90
    %v421 = vunpack.c.l.b16 %v91
    %v422 = vunpack.c.h.b16 %v91
    %v423 = vunpack.c.l.b16 %v92
    %v424 = vunpack.c.l.b16 %v93
    %v425 = vunpack.c.h.b16 %v93
    %v426 = vunpack.c.l.b16 %v94
    %v427 = vunpack.c.l.b16 %v95
    %v428 = vunpack.c.h.b16 %v95
    %v429 = vunpack.c.l.b16 %v96
    %v430 = vunpack.c.l.b16 %v97
    %v431 = vunpack.c.h.b16 %v97
    %v432 = vunpack.c.l.b16 %v98
    %v433 = vunpack.c.l.b16 %v99
    %v434 = vunpack.c.h.b16 %v99
    %v435 = vunpack.c.l.b16 %v100
    %v436 = vunpack.c.l.b16 %v101
    %v437 = vunpack.c.h.b16 %v101
    %v438 = vunpack.c.l.b16 %v102
    %v439 = vunpack.c.l.b16 %v103
    %v440 = vunpack.c.h.b16 %v103
    %v441 = vunpack.c.l.b16 %v104
    %v442 = vunpack.c.l.b16 %v105
    %v443 = vunpack.c.h.b16 %v105
    %v444 = vunpack.c.l.b16 %v106
    %v445 = vunpack.c.l.b16 %v107
    %v446 = vunpack.c.h.b16 %v107
    %v447 = vunpack.c.l.b16 %v108
    %v448 = vunpack.c.l.b16 %v109
    %v449 = vunpack.c.h.b16 %v109
    %v450 = vunpack.c.l.b16 %v110
    %v451 = vunpack.c.l.b16 %v111
    %v452 = vunpack.c.h.b16 %v111
    %v453 = vunpack.c.l.b16 %v112
    %v454 = vunpack.c.l.b16 %v113
    %v455 = vunpack.c.h.b16 %v113
    %v456 = vunpack.c.l.b16 %v114
    %v457 = vunpack.c.l.b16 %v115
    %v458 = vunpack.c.h.b16 %v115
    %v459 = vunpack.c.l.b16 %v116
    %v460 = vunpack.c.l.b16 %v117
    %v461 = vunpack.c.h.b16 %v117
    %v462 = vunpack.c.l.b16 %v118
    %v463 = vunpack.c.l.b16 %v119
    %v464 = vunpack.c.h.b16 %v119
    %v465 = vunpack.c.l.b16 %v120
    %v466 = vunpack.c.l.b16 %v121
    %v467 = vunpack.c.h.b16 %v121
    %v468 = vunpack.c.l.b16 %v122
    %v469 = vunpack.c.l.b16 %v123
    %v470 = vunpack.c.h.b16 %v123
    %v471 = vunpack.c.l.b16 %v124
    %v472 = vunpack.c.l.b16 %v125
    %v473 = vunpack.c.h.b16 %v125
    %v474 = vunpack.c.l.b16 %v126
    %v475 = vunpack.c.l.b16 %v127
    %v476 = vunpack.c.h.b16 %v127
    %v477 = vunpack.c.l.b16 %v128
    %v478 = vunpack.c.l.b16 %v129
    %v479 = vunpack.c.h.b16 %v129
    %v480 = vunpack.c.l.b16 %v130
    %v481 = vunpack.c.l.b16 %v131
    %v482 = vunpack.c.h.b16 %v131
    %v483 = vunpack.c.l.b16 %v132
    %v484 = vunpack.c.l.b16 %v133
    %v485 = vunpack.c.h.b16 %v133
    %v486 = vunpack.c.l.b16 %v134
    %v487 = vpack.c.b16 %v394, %v391
    %v488 = vpack.c.b16 %v395, %v392
    %v489 = vpack.c.b16 %v396, %v393
    %v490 = vpack.c.b16 %v400, %v397
    %v491 = vpack.c.b16 %v401, %v398
    %v492 = vpack.c.b16 %v402, %v399
    %v493 = vpack.c.b16 %v406, %v403
    %v494 = vpack.c.b16 %v407, %v404
    %v495 = vpack.c.b16 %v408, %v405
    %v496 = vpack.c.b16 %v412, %v409
    %v497 = vpack.c.b16 %v413, %v410
    %v498 = vpack.c.b16 %v414, %v411
    %v499 = vpack.c.b16 %v418, %v415
    %v500 = vpack.c.b16 %v419, %v416
    %v501 = vpack.c.b16 %v420, %v417
    %v502 = vpack.c.b16 %v424, %v421
    %v503 = vpack.c.b16 %v425, %v422
    %v504 = vpack.c.b16 %v426, %v423
    %v505 = vpack.c.b16 %v430, %v427
    %v506 = vpack.c.b16 %v431, %v428
    %v507 = vpack.c.b16 %v432, %v429
    %v508 = vpack.c.b16 %v436, %v433
    %v509 = vpack.c.b16 %v437, %v434
    %v510 = vpack.c.b16 %v438, %v435
    %v511 = vpack.c.b16 %v442, %v439
    %v512 = vpack.c.b16 %v443, %v440
    %v513 = vpack.c.b16 %v444, %v441
    %v514 = vpack.c.b16 %v448, %v445
    %v515 = vpack.c.b16 %v449, %v446
    %v516 = vpack.c.b16 %v450, %v447
    %v517 = vpack.c.b16 %v454, %v451
    %v518 = vpack.c.b16 %v455, %v452
    %v519 = vpack.c.b16 %v456, %v453
    %v520 = vpack.c.b16 %v460, %v457
    %v521 = vpack.c.b16 %v461, %v458
    %v522 = vpack.c.b16 %v462, %v459
    %v523 = vpack.c.b16 %v466, %v463
    %v524 = vpack.c.b16 %v467, %v464
    %v525 = vpack.c.b16 %v468, %v465
    %v526 = vpack.c.b16 %v472, %v469
    %v527 = vpack.c.b16 %v473, %v470
    %v528 = vpack.c.b16 %v474, %v471
    %v529 = vpack.c.b16 %v478, %v475
    %v530 = vpack.c.b16 %v479, %v476
    %v531 = vpack.c.b16 %v480, %v477
    %v532 = vpack.c.b16 %v484, %v481
    %v533 = vpack.c.b16 %v485, %v482
    %v534 = vpack.c.b16 %v486, %v483
    %583 = vmatprep.subr.bf16.mxu0 %v509
    %584 = vmatpush1.bf16.msra.mxu0 %v508
    %585 = vmatprep.subr.bf16.mxu0 %v506
    %586 = vmatpush1.bf16.msra.mxu0 %v505
    %587 = vmatprep.subr.bf16.mxu0 %v503
    %588 = vmatpush1.bf16.msra.mxu0 %v502
    %589 = vmatprep.subr.bf16.mxu0 %v500
    %590 = vmatpush1.bf16.msra.mxu0 %v499
    %591 = vmatprep.subr.bf16.mxu0 %v497
    %592 = vmatpush1.bf16.msra.mxu0 %v496
    %593 = vmatprep.subr.bf16.mxu0 %v494
    %594 = vmatpush1.bf16.msra.mxu0 %v493
    %595 = vmatprep.subr.bf16.mxu0 %v491
    %596 = vmatpush1.bf16.msra.mxu0 %v490
    %597 = vmatprep.subr.bf16.mxu0 %v488
    %598 = vmatpush1.bf16.msra.mxu0 %v487
    %599 = vmatprep.subr.bf16.mxu0 %v533
    %600 = vmatpush2.bf16.msra.mxu0 %v532
    %601 = vmatprep.subr.bf16.mxu0 %v530
    %602 = vmatpush2.bf16.msra.mxu0 %v529
    %603 = vmatprep.subr.bf16.mxu0 %v527
    %604 = vmatpush2.bf16.msra.mxu0 %v526
    %605 = vmatprep.subr.bf16.mxu0 %v524
    %606 = vmatpush2.bf16.msra.mxu0 %v523
    %607 = vmatprep.subr.bf16.mxu0 %v521
    %608 = vmatpush2.bf16.msra.mxu0 %v520
    %609 = vmatprep.subr.bf16.mxu0 %v518
    %610 = vmatpush2.bf16.msra.mxu0 %v517
    %611 = vmatprep.subr.bf16.mxu0 %v515
    %612 = vmatpush2.bf16.msra.mxu0 %v514
    %613 = vmatprep.subr.bf16.mxu0 %v512
    %614 = vmatpush2.bf16.msra.mxu0 %v511
    %615 = vmatprep.mubr.bf16.mxu0 %v292
    %616 = vmatmul.mubr.bf16.gmra.mxu0 %v291
    %v617 = vpop.f32.mrf.mxu0
    %v618 = vadd.f32 %v315, %v617
    %v619 = vpop.f32.mrf.mxu0
    %v620 = vadd.f32 %v319, %v619
    %v621 = vpop.f32.mrf.mxu0
    %v622 = vpop.f32.mrf.mxu0
    %623 = vdwg.mxu0
    %624 = vmatprep.subr.bf16.mxu0 0
    %625 = vmatpush1.bf16.msra.mxu0 %v510
    %626 = vmatprep.subr.bf16.mxu0 0
    %627 = vmatpush1.bf16.msra.mxu0 %v507
    %628 = vmatprep.subr.bf16.mxu0 0
    %629 = vmatpush1.bf16.msra.mxu0 %v504
    %630 = vmatprep.subr.bf16.mxu0 0
    %631 = vmatpush1.bf16.msra.mxu0 %v501
    %632 = vmatprep.subr.bf16.mxu0 0
    %633 = vmatpush1.bf16.msra.mxu0 %v498
    %634 = vmatprep.subr.bf16.mxu0 0
    %635 = vmatpush1.bf16.msra.mxu0 %v495
    %636 = vmatprep.subr.bf16.mxu0 0
    %637 = vmatpush1.bf16.msra.mxu0 %v492
    %638 = vmatprep.subr.bf16.mxu0 0
    %639 = vmatpush1.bf16.msra.mxu0 %v489
    %640 = vmatprep.subr.bf16.mxu0 0
    %641 = vmatpush2.bf16.msra.mxu0 %v534
    %642 = vmatprep.subr.bf16.mxu0 0
    %643 = vmatpush2.bf16.msra.mxu0 %v531
    %644 = vmatprep.subr.bf16.mxu0 0
    %645 = vmatpush2.bf16.msra.mxu0 %v528
    %646 = vmatprep.subr.bf16.mxu0 0
    %647 = vmatpush2.bf16.msra.mxu0 %v525
    %648 = vmatprep.subr.bf16.mxu0 0
    %649 = vmatpush2.bf16.msra.mxu0 %v522
    %650 = vmatprep.subr.bf16.mxu0 0
    %651 = vmatpush2.bf16.msra.mxu0 %v519
    %652 = vmatprep.subr.bf16.mxu0 0
    %653 = vmatpush2.bf16.msra.mxu0 %v516
    %654 = vmatprep.subr.bf16.mxu0 0
    %655 = vmatpush2.bf16.msra.mxu0 %v513
    %656 = vmatprep.mubr.bf16.mxu0 %v292
    %657 = vmatmul.mubr.bf16.gmra.mxu0 %v291
    %v658 = vpop.f32.mrf.mxu0
    %v659 = vadd.f32 %v323, %v658
    %v660 = vpop.f32.mrf.mxu0
    %v661 = vpop.f32.mrf.mxu0
    %v662 = vpop.f32.mrf.mxu0
    %663 = vdwg.mxu0
    %v664 = vpack.c.bf16 %v310, %v310
    %v666 = vlaneseq
    %v667 = vshrl.u32 %v666, 7
    %v668 = vsub.s32 0, %v667
    %v669 = vrot.slane %v266, %v668
    %v670 = vlaneseq
    %v671 = vshrl.u32 %v670, 7
    %v672 = vsub.s32 1, %v671
    %v673 = vrot.slane %v266, %v672
    %v674 = vlaneseq
    %v675 = vshrl.u32 %v674, 7
    %v676 = vsub.s32 2, %v675
    %v677 = vrot.slane %v266, %v676
    %v713 = vunpack.c.l.b16 %v201
    %v714 = vunpack.c.h.b16 %v201
    %v715 = vunpack.c.l.b16 %v202
    %v716 = vunpack.c.l.b16 %v203
    %v717 = vunpack.c.h.b16 %v203
    %v718 = vunpack.c.l.b16 %v204
    %v719 = vunpack.c.l.b16 %v205
    %v720 = vunpack.c.h.b16 %v205
    %v721 = vunpack.c.l.b16 %v206
    %v722 = vunpack.c.l.b16 %v207
    %v723 = vunpack.c.h.b16 %v207
    %v724 = vunpack.c.l.b16 %v208
    %v725 = vunpack.c.l.b16 %v209
    %v726 = vunpack.c.h.b16 %v209
    %v727 = vunpack.c.l.b16 %v210
    %v728 = vunpack.c.l.b16 %v211
    %v729 = vunpack.c.h.b16 %v211
    %v730 = vunpack.c.l.b16 %v212
    %v731 = vunpack.c.l.b16 %v213
    %v732 = vunpack.c.h.b16 %v213
    %v733 = vunpack.c.l.b16 %v214
    %v734 = vunpack.c.l.b16 %v215
    %v735 = vunpack.c.h.b16 %v215
    %v736 = vunpack.c.l.b16 %v216
    %v737 = vunpack.c.l.b16 %v217
    %v738 = vunpack.c.h.b16 %v217
    %v739 = vunpack.c.l.b16 %v218
    %v740 = vunpack.c.l.b16 %v219
    %v741 = vunpack.c.h.b16 %v219
    %v742 = vunpack.c.l.b16 %v220
    %v743 = vunpack.c.l.b16 %v221
    %v744 = vunpack.c.h.b16 %v221
    %v745 = vunpack.c.l.b16 %v222
    %v746 = vunpack.c.l.b16 %v223
    %v747 = vunpack.c.h.b16 %v223
    %v748 = vunpack.c.l.b16 %v224
    %v749 = vunpack.c.l.b16 %v225
    %v750 = vunpack.c.h.b16 %v225
    %v751 = vunpack.c.l.b16 %v226
    %v752 = vunpack.c.l.b16 %v227
    %v753 = vunpack.c.h.b16 %v227
    %v754 = vunpack.c.l.b16 %v228
    %v755 = vunpack.c.l.b16 %v229
    %v756 = vunpack.c.h.b16 %v229
    %v757 = vunpack.c.l.b16 %v230
    %v758 = vunpack.c.l.b16 %v231
    %v759 = vunpack.c.h.b16 %v231
    %v760 = vunpack.c.l.b16 %v232
    %v761 = vpack.c.b16 %v716, %v713
    %v762 = vpack.c.b16 %v717, %v714
    %v763 = vpack.c.b16 %v718, %v715
    %v764 = vpack.c.b16 %v722, %v719
    %v765 = vpack.c.b16 %v723, %v720
    %v766 = vpack.c.b16 %v724, %v721
    %v767 = vpack.c.b16 %v728, %v725
    %v768 = vpack.c.b16 %v729, %v726
    %v769 = vpack.c.b16 %v730, %v727
    %v770 = vpack.c.b16 %v734, %v731
    %v771 = vpack.c.b16 %v735, %v732
    %v772 = vpack.c.b16 %v736, %v733
    %v773 = vpack.c.b16 %v740, %v737
    %v774 = vpack.c.b16 %v741, %v738
    %v775 = vpack.c.b16 %v742, %v739
    %v776 = vpack.c.b16 %v746, %v743
    %v777 = vpack.c.b16 %v747, %v744
    %v778 = vpack.c.b16 %v748, %v745
    %v779 = vpack.c.b16 %v752, %v749
    %v780 = vpack.c.b16 %v753, %v750
    %v781 = vpack.c.b16 %v754, %v751
    %v782 = vpack.c.b16 %v758, %v755
    %v783 = vpack.c.b16 %v759, %v756
    %v784 = vpack.c.b16 %v760, %v757
    %809 = vmatprep.subr.bf16.mxu0 %v783
    %810 = vmatpush1.bf16.msra.mxu0 %v782
    %811 = vmatprep.subr.bf16.mxu0 %v780
    %812 = vmatpush1.bf16.msra.mxu0 %v779
    %813 = vmatprep.subr.bf16.mxu0 %v777
    %814 = vmatpush1.bf16.msra.mxu0 %v776
    %815 = vmatprep.subr.bf16.mxu0 %v774
    %816 = vmatpush1.bf16.msra.mxu0 %v773
    %817 = vmatprep.subr.bf16.mxu0 %v771
    %818 = vmatpush1.bf16.msra.mxu0 %v770
    %819 = vmatprep.subr.bf16.mxu0 %v768
    %820 = vmatpush1.bf16.msra.mxu0 %v767
    %821 = vmatprep.subr.bf16.mxu0 %v765
    %822 = vmatpush1.bf16.msra.mxu0 %v764
    %823 = vmatprep.subr.bf16.mxu0 %v762
    %824 = vmatpush1.bf16.msra.mxu0 %v761
    %825 = vmatprep.subr.bf16.mxu0 0
    %826 = vmatpush2.bf16.msra.mxu0 0
    %827 = vmatprep.subr.bf16.mxu0 0
    %828 = vmatpush2.bf16.msra.mxu0 0
    %829 = vmatprep.subr.bf16.mxu0 0
    %830 = vmatpush2.bf16.msra.mxu0 0
    %831 = vmatprep.subr.bf16.mxu0 0
    %832 = vmatpush2.bf16.msra.mxu0 0
    %833 = vmatprep.subr.bf16.mxu0 0
    %834 = vmatpush2.bf16.msra.mxu0 0
    %835 = vmatprep.subr.bf16.mxu0 0
    %836 = vmatpush2.bf16.msra.mxu0 0
    %837 = vmatprep.subr.bf16.mxu0 0
    %838 = vmatpush2.bf16.msra.mxu0 0
    %839 = vmatprep.subr.bf16.mxu0 0
    %840 = vmatpush2.bf16.msra.mxu0 0
    %841 = vmatprep.mubr.bf16.mxu0 0
    %842 = vmatmul.mubr.bf16.gmra.mxu0 %v664
    %v843 = vpop.f32.mrf.mxu0
    %v844 = vadd.f32 %v669, %v843
    %v845 = vpop.f32.mrf.mxu0
    %v846 = vadd.f32 %v673, %v845
    %v847 = vpop.f32.mrf.mxu0
    %v848 = vpop.f32.mrf.mxu0
    %849 = vdwg.mxu0
    %850 = vmatprep.subr.bf16.mxu0 0
    %851 = vmatpush1.bf16.msra.mxu0 %v784
    %852 = vmatprep.subr.bf16.mxu0 0
    %853 = vmatpush1.bf16.msra.mxu0 %v781
    %854 = vmatprep.subr.bf16.mxu0 0
    %855 = vmatpush1.bf16.msra.mxu0 %v778
    %856 = vmatprep.subr.bf16.mxu0 0
    %857 = vmatpush1.bf16.msra.mxu0 %v775
    %858 = vmatprep.subr.bf16.mxu0 0
    %859 = vmatpush1.bf16.msra.mxu0 %v772
    %860 = vmatprep.subr.bf16.mxu0 0
    %861 = vmatpush1.bf16.msra.mxu0 %v769
    %862 = vmatprep.subr.bf16.mxu0 0
    %863 = vmatpush1.bf16.msra.mxu0 %v766
    %864 = vmatprep.subr.bf16.mxu0 0
    %865 = vmatpush1.bf16.msra.mxu0 %v763
    %866 = vmatprep.subr.bf16.mxu0 0
    %867 = vmatpush2.bf16.msra.mxu0 0
    %868 = vmatprep.subr.bf16.mxu0 0
    %869 = vmatpush2.bf16.msra.mxu0 0
    %870 = vmatprep.subr.bf16.mxu0 0
    %871 = vmatpush2.bf16.msra.mxu0 0
    %872 = vmatprep.subr.bf16.mxu0 0
    %873 = vmatpush2.bf16.msra.mxu0 0
    %874 = vmatprep.subr.bf16.mxu0 0
    %875 = vmatpush2.bf16.msra.mxu0 0
    %876 = vmatprep.subr.bf16.mxu0 0
    %877 = vmatpush2.bf16.msra.mxu0 0
    %878 = vmatprep.subr.bf16.mxu0 0
    %879 = vmatpush2.bf16.msra.mxu0 0
    %880 = vmatprep.subr.bf16.mxu0 0
    %881 = vmatpush2.bf16.msra.mxu0 0
    %882 = vmatprep.mubr.bf16.mxu0 0
    %883 = vmatmul.mubr.bf16.gmra.mxu0 %v664
    %v884 = vpop.f32.mrf.mxu0
    %v885 = vadd.f32 %v677, %v884
    %v886 = vpop.f32.mrf.mxu0
    %v887 = vpop.f32.mrf.mxu0
    %v888 = vpop.f32.mrf.mxu0
    %889 = vdwg.mxu0
    %v890 = vadd.f32 %v618, %v844
    %v891 = vxor.u32 %v890, 2147483648
    %v892 = vmul.f32 %v891, 1.442695
    %v893 = vpow.pop %v892
    %v894 = vadd.f32 %v893, 1.0
    %v895 = vrcp.pop %v894
    %v896 = vmul.f32 1.0, %v895
    %v897 = vadd.f32 %v620, %v846
    %v898 = vxor.u32 %v897, 2147483648
    %v899 = vmul.f32 %v898, 1.442695
    %v900 = vpow.pop %v899
    %v901 = vadd.f32 %v900, 1.0
    %v902 = vrcp.pop %v901
    %v903 = vmul.f32 1.0, %v902
    %v904 = vmul.f32 %v896, %v885
    %v905 = vadd.f32 %v659, %v904
    %v906 = vtanh.pop %v905
    %v907 = vsub.f32 1.0, %v903
    %v908 = vmul.f32 %v907, %v906
    %v909 = vmul.f32 %v903, %v310
    %v910 = vadd.f32 %v908, %v909
    %s911 = scalar_lea.vmem [#allocation2], 2
    %v912 = vld [vmem:[%s911] sm:$0x3]
    %v914 = vlaneseq
    %v915 = vshrl.u32 %v914, 7
    %v916 = vsub.s32 0, %v915
    %v917 = vrot.slane %v200, %v916
    %v918 = vlaneseq
    %v919 = vshrl.u32 %v918, 7
    %v920 = vsub.s32 1, %v919
    %v921 = vrot.slane %v200, %v920
    %v922 = vlaneseq
    %v923 = vshrl.u32 %v922, 7
    %v924 = vsub.s32 2, %v923
    %v925 = vrot.slane %v200, %v924
    %v993 = vunpack.c.l.b16 %v135
    %v994 = vunpack.c.h.b16 %v135
    %v995 = vunpack.c.l.b16 %v136
    %v996 = vunpack.c.l.b16 %v137
    %v997 = vunpack.c.h.b16 %v137
    %v998 = vunpack.c.l.b16 %v138
    %v999 = vunpack.c.l.b16 %v139
    %v1000 = vunpack.c.h.b16 %v139
    %v1001 = vunpack.c.l.b16 %v140
    %v1002 = vunpack.c.l.b16 %v141
    %v1003 = vunpack.c.h.b16 %v141
    %v1004 = vunpack.c.l.b16 %v142
    %v1005 = vunpack.c.l.b16 %v143
    %v1006 = vunpack.c.h.b16 %v143
    %v1007 = vunpack.c.l.b16 %v144
    %v1008 = vunpack.c.l.b16 %v145
    %v1009 = vunpack.c.h.b16 %v145
    %v1010 = vunpack.c.l.b16 %v146
    %v1011 = vunpack.c.l.b16 %v147
    %v1012 = vunpack.c.h.b16 %v147
    %v1013 = vunpack.c.l.b16 %v148
    %v1014 = vunpack.c.l.b16 %v149
    %v1015 = vunpack.c.h.b16 %v149
    %v1016 = vunpack.c.l.b16 %v150
    %v1017 = vunpack.c.l.b16 %v151
    %v1018 = vunpack.c.h.b16 %v151
    %v1019 = vunpack.c.l.b16 %v152
    %v1020 = vunpack.c.l.b16 %v153
    %v1021 = vunpack.c.h.b16 %v153
    %v1022 = vunpack.c.l.b16 %v154
    %v1023 = vunpack.c.l.b16 %v155
    %v1024 = vunpack.c.h.b16 %v155
    %v1025 = vunpack.c.l.b16 %v156
    %v1026 = vunpack.c.l.b16 %v157
    %v1027 = vunpack.c.h.b16 %v157
    %v1028 = vunpack.c.l.b16 %v158
    %v1029 = vunpack.c.l.b16 %v159
    %v1030 = vunpack.c.h.b16 %v159
    %v1031 = vunpack.c.l.b16 %v160
    %v1032 = vunpack.c.l.b16 %v161
    %v1033 = vunpack.c.h.b16 %v161
    %v1034 = vunpack.c.l.b16 %v162
    %v1035 = vunpack.c.l.b16 %v163
    %v1036 = vunpack.c.h.b16 %v163
    %v1037 = vunpack.c.l.b16 %v164
    %v1038 = vunpack.c.l.b16 %v165
    %v1039 = vunpack.c.h.b16 %v165
    %v1040 = vunpack.c.l.b16 %v166
    %v1041 = vunpack.c.l.b16 %v167
    %v1042 = vunpack.c.h.b16 %v167
    %v1043 = vunpack.c.l.b16 %v168
    %v1044 = vunpack.c.l.b16 %v169
    %v1045 = vunpack.c.h.b16 %v169
    %v1046 = vunpack.c.l.b16 %v170
    %v1047 = vunpack.c.l.b16 %v171
    %v1048 = vunpack.c.h.b16 %v171
    %v1049 = vunpack.c.l.b16 %v172
    %v1050 = vunpack.c.l.b16 %v173
    %v1051 = vunpack.c.h.b16 %v173
    %v1052 = vunpack.c.l.b16 %v174
    %v1053 = vunpack.c.l.b16 %v175
    %v1054 = vunpack.c.h.b16 %v175
    %v1055 = vunpack.c.l.b16 %v176
    %v1056 = vunpack.c.l.b16 %v177
    %v1057 = vunpack.c.h.b16 %v177
    %v1058 = vunpack.c.l.b16 %v178
    %v1059 = vunpack.c.l.b16 %v179
    %v1060 = vunpack.c.h.b16 %v179
    %v1061 = vunpack.c.l.b16 %v180
    %v1062 = vunpack.c.l.b16 %v181
    %v1063 = vunpack.c.h.b16 %v181
    %v1064 = vunpack.c.l.b16 %v182
    %v1065 = vunpack.c.l.b16 %v183
    %v1066 = vunpack.c.h.b16 %v183
    %v1067 = vunpack.c.l.b16 %v184
    %v1068 = vunpack.c.l.b16 %v185
    %v1069 = vunpack.c.h.b16 %v185
    %v1070 = vunpack.c.l.b16 %v186
    %v1071 = vunpack.c.l.b16 %v187
    %v1072 = vunpack.c.h.b16 %v187
    %v1073 = vunpack.c.l.b16 %v188
    %v1074 = vunpack.c.l.b16 %v189
    %v1075 = vunpack.c.h.b16 %v189
    %v1076 = vunpack.c.l.b16 %v190
    %v1077 = vunpack.c.l.b16 %v191
    %v1078 = vunpack.c.h.b16 %v191
    %v1079 = vunpack.c.l.b16 %v192
    %v1080 = vunpack.c.l.b16 %v193
    %v1081 = vunpack.c.h.b16 %v193
    %v1082 = vunpack.c.l.b16 %v194
    %v1083 = vunpack.c.l.b16 %v195
    %v1084 = vunpack.c.h.b16 %v195
    %v1085 = vunpack.c.l.b16 %v196
    %v1086 = vunpack.c.l.b16 %v197
    %v1087 = vunpack.c.h.b16 %v197
    %v1088 = vunpack.c.l.b16 %v198
    %v1089 = vpack.c.b16 %v996, %v993
    %v1090 = vpack.c.b16 %v997, %v994
    %v1091 = vpack.c.b16 %v998, %v995
    %v1092 = vpack.c.b16 %v1002, %v999
    %v1093 = vpack.c.b16 %v1003, %v1000
    %v1094 = vpack.c.b16 %v1004, %v1001
    %v1095 = vpack.c.b16 %v1008, %v1005
    %v1096 = vpack.c.b16 %v1009, %v1006
    %v1097 = vpack.c.b16 %v1010, %v1007
    %v1098 = vpack.c.b16 %v1014, %v1011
    %v1099 = vpack.c.b16 %v1015, %v1012
    %v1100 = vpack.c.b16 %v1016, %v1013
    %v1101 = vpack.c.b16 %v1020, %v1017
    %v1102 = vpack.c.b16 %v1021, %v1018
    %v1103 = vpack.c.b16 %v1022, %v1019
    %v1104 = vpack.c.b16 %v1026, %v1023
    %v1105 = vpack.c.b16 %v1027, %v1024
    %v1106 = vpack.c.b16 %v1028, %v1025
    %v1107 = vpack.c.b16 %v1032, %v1029
    %v1108 = vpack.c.b16 %v1033, %v1030
    %v1109 = vpack.c.b16 %v1034, %v1031
    %v1110 = vpack.c.b16 %v1038, %v1035
    %v1111 = vpack.c.b16 %v1039, %v1036
    %v1112 = vpack.c.b16 %v1040, %v1037
    %v1113 = vpack.c.b16 %v1044, %v1041
    %v1114 = vpack.c.b16 %v1045, %v1042
    %v1115 = vpack.c.b16 %v1046, %v1043
    %v1116 = vpack.c.b16 %v1050, %v1047
    %v1117 = vpack.c.b16 %v1051, %v1048
    %v1118 = vpack.c.b16 %v1052, %v1049
    %v1119 = vpack.c.b16 %v1056, %v1053
    %v1120 = vpack.c.b16 %v1057, %v1054
    %v1121 = vpack.c.b16 %v1058, %v1055
    %v1122 = vpack.c.b16 %v1062, %v1059
    %v1123 = vpack.c.b16 %v1063, %v1060
    %v1124 = vpack.c.b16 %v1064, %v1061
    %v1125 = vpack.c.b16 %v1068, %v1065
    %v1126 = vpack.c.b16 %v1069, %v1066
    %v1127 = vpack.c.b16 %v1070, %v1067
    %v1128 = vpack.c.b16 %v1074, %v1071
    %v1129 = vpack.c.b16 %v1075, %v1072
    %v1130 = vpack.c.b16 %v1076, %v1073
    %v1131 = vpack.c.b16 %v1080, %v1077
    %v1132 = vpack.c.b16 %v1081, %v1078
    %v1133 = vpack.c.b16 %v1082, %v1079
    %v1134 = vpack.c.b16 %v1086, %v1083
    %v1135 = vpack.c.b16 %v1087, %v1084
    %v1136 = vpack.c.b16 %v1088, %v1085
    %1185 = vmatprep.subr.bf16.mxu0 %v1111
    %1186 = vmatpush1.bf16.msra.mxu0 %v1110
    %1187 = vmatprep.subr.bf16.mxu0 %v1108
    %1188 = vmatpush1.bf16.msra.mxu0 %v1107
    %1189 = vmatprep.subr.bf16.mxu0 %v1105
    %1190 = vmatpush1.bf16.msra.mxu0 %v1104
    %1191 = vmatprep.subr.bf16.mxu0 %v1102
    %1192 = vmatpush1.bf16.msra.mxu0 %v1101
    %1193 = vmatprep.subr.bf16.mxu0 %v1099
    %1194 = vmatpush1.bf16.msra.mxu0 %v1098
    %1195 = vmatprep.subr.bf16.mxu0 %v1096
    %1196 = vmatpush1.bf16.msra.mxu0 %v1095
    %1197 = vmatprep.subr.bf16.mxu0 %v1093
    %1198 = vmatpush1.bf16.msra.mxu0 %v1092
    %1199 = vmatprep.subr.bf16.mxu0 %v1090
    %1200 = vmatpush1.bf16.msra.mxu0 %v1089
    %1201 = vmatprep.subr.bf16.mxu0 %v1135
    %1202 = vmatpush2.bf16.msra.mxu0 %v1134
    %1203 = vmatprep.subr.bf16.mxu0 %v1132
    %1204 = vmatpush2.bf16.msra.mxu0 %v1131
    %1205 = vmatprep.subr.bf16.mxu0 %v1129
    %1206 = vmatpush2.bf16.msra.mxu0 %v1128
    %1207 = vmatprep.subr.bf16.mxu0 %v1126
    %1208 = vmatpush2.bf16.msra.mxu0 %v1125
    %1209 = vmatprep.subr.bf16.mxu0 %v1123
    %1210 = vmatpush2.bf16.msra.mxu0 %v1122
    %1211 = vmatprep.subr.bf16.mxu0 %v1120
    %1212 = vmatpush2.bf16.msra.mxu0 %v1119
    %1213 = vmatprep.subr.bf16.mxu0 %v1117
    %1214 = vmatpush2.bf16.msra.mxu0 %v1116
    %1215 = vmatprep.subr.bf16.mxu0 %v1114
    %1216 = vmatpush2.bf16.msra.mxu0 %v1113
    %1217 = vmatprep.mubr.bf16.mxu0 %v309
    %1218 = vmatmul.mubr.bf16.gmra.mxu0 %v308
    %v1219 = vpop.f32.mrf.mxu0
    %v1220 = vadd.f32 %v917, %v1219
    %v1221 = vpop.f32.mrf.mxu0
    %v1222 = vadd.f32 %v921, %v1221
    %v1223 = vpop.f32.mrf.mxu0
    %v1224 = vpop.f32.mrf.mxu0
    %1225 = vdwg.mxu0
    %1226 = vmatprep.subr.bf16.mxu0 0
    %1227 = vmatpush1.bf16.msra.mxu0 %v1112
    %1228 = vmatprep.subr.bf16.mxu0 0
    %1229 = vmatpush1.bf16.msra.mxu0 %v1109
    %1230 = vmatprep.subr.bf16.mxu0 0
    %1231 = vmatpush1.bf16.msra.mxu0 %v1106
    %1232 = vmatprep.subr.bf16.mxu0 0
    %1233 = vmatpush1.bf16.msra.mxu0 %v1103
    %1234 = vmatprep.subr.bf16.mxu0 0
    %1235 = vmatpush1.bf16.msra.mxu0 %v1100
    %1236 = vmatprep.subr.bf16.mxu0 0
    %1237 = vmatpush1.bf16.msra.mxu0 %v1097
    %1238 = vmatprep.subr.bf16.mxu0 0
    %1239 = vmatpush1.bf16.msra.mxu0 %v1094
    %1240 = vmatprep.subr.bf16.mxu0 0
    %1241 = vmatpush1.bf16.msra.mxu0 %v1091
    %1242 = vmatprep.subr.bf16.mxu0 0
    %1243 = vmatpush2.bf16.msra.mxu0 %v1136
    %1244 = vmatprep.subr.bf16.mxu0 0
    %1245 = vmatpush2.bf16.msra.mxu0 %v1133
    %1246 = vmatprep.subr.bf16.mxu0 0
    %1247 = vmatpush2.bf16.msra.mxu0 %v1130
    %1248 = vmatprep.subr.bf16.mxu0 0
    %1249 = vmatpush2.bf16.msra.mxu0 %v1127
    %1250 = vmatprep.subr.bf16.mxu0 0
    %1251 = vmatpush2.bf16.msra.mxu0 %v1124
    %1252 = vmatprep.subr.bf16.mxu0 0
    %1253 = vmatpush2.bf16.msra.mxu0 %v1121
    %1254 = vmatprep.subr.bf16.mxu0 0
    %1255 = vmatpush2.bf16.msra.mxu0 %v1118
    %1256 = vmatprep.subr.bf16.mxu0 0
    %1257 = vmatpush2.bf16.msra.mxu0 %v1115
    %1258 = vmatprep.mubr.bf16.mxu0 %v309
    %1259 = vmatmul.mubr.bf16.gmra.mxu0 %v308
    %v1260 = vpop.f32.mrf.mxu0
    %v1261 = vadd.f32 %v925, %v1260
    %v1262 = vpop.f32.mrf.mxu0
    %v1263 = vpop.f32.mrf.mxu0
    %v1264 = vpop.f32.mrf.mxu0
    %1265 = vdwg.mxu0
    %v1266 = vpack.c.bf16 %v912, %v912
    %v1268 = vlaneseq
    %v1269 = vshrl.u32 %v1268, 7
    %v1270 = vsub.s32 0, %v1269
    %v1271 = vrot.slane %v268, %v1270
    %v1272 = vlaneseq
    %v1273 = vshrl.u32 %v1272, 7
    %v1274 = vsub.s32 1, %v1273
    %v1275 = vrot.slane %v268, %v1274
    %v1276 = vlaneseq
    %v1277 = vshrl.u32 %v1276, 7
    %v1278 = vsub.s32 2, %v1277
    %v1279 = vrot.slane %v268, %v1278
    %v1315 = vunpack.c.l.b16 %v234
    %v1316 = vunpack.c.h.b16 %v234
    %v1317 = vunpack.c.l.b16 %v235
    %v1318 = vunpack.c.l.b16 %v236
    %v1319 = vunpack.c.h.b16 %v236
    %v1320 = vunpack.c.l.b16 %v237
    %v1321 = vunpack.c.l.b16 %v238
    %v1322 = vunpack.c.h.b16 %v238
    %v1323 = vunpack.c.l.b16 %v239
    %v1324 = vunpack.c.l.b16 %v240
    %v1325 = vunpack.c.h.b16 %v240
    %v1326 = vunpack.c.l.b16 %v241
    %v1327 = vunpack.c.l.b16 %v242
    %v1328 = vunpack.c.h.b16 %v242
    %v1329 = vunpack.c.l.b16 %v243
    %v1330 = vunpack.c.l.b16 %v244
    %v1331 = vunpack.c.h.b16 %v244
    %v1332 = vunpack.c.l.b16 %v245
    %v1333 = vunpack.c.l.b16 %v246
    %v1334 = vunpack.c.h.b16 %v246
    %v1335 = vunpack.c.l.b16 %v247
    %v1336 = vunpack.c.l.b16 %v248
    %v1337 = vunpack.c.h.b16 %v248
    %v1338 = vunpack.c.l.b16 %v249
    %v1339 = vunpack.c.l.b16 %v250
    %v1340 = vunpack.c.h.b16 %v250
    %v1341 = vunpack.c.l.b16 %v251
    %v1342 = vunpack.c.l.b16 %v252
    %v1343 = vunpack.c.h.b16 %v252
    %v1344 = vunpack.c.l.b16 %v253
    %v1345 = vunpack.c.l.b16 %v254
    %v1346 = vunpack.c.h.b16 %v254
    %v1347 = vunpack.c.l.b16 %v255
    %v1348 = vunpack.c.l.b16 %v256
    %v1349 = vunpack.c.h.b16 %v256
    %v1350 = vunpack.c.l.b16 %v257
    %v1351 = vunpack.c.l.b16 %v258
    %v1352 = vunpack.c.h.b16 %v258
    %v1353 = vunpack.c.l.b16 %v259
    %v1354 = vunpack.c.l.b16 %v260
    %v1355 = vunpack.c.h.b16 %v260
    %v1356 = vunpack.c.l.b16 %v261
    %v1357 = vunpack.c.l.b16 %v262
    %v1358 = vunpack.c.h.b16 %v262
    %v1359 = vunpack.c.l.b16 %v263
    %v1360 = vunpack.c.l.b16 %v264
    %v1361 = vunpack.c.h.b16 %v264
    %v1362 = vunpack.c.l.b16 %v265
    %v1363 = vpack.c.b16 %v1318, %v1315
    %v1364 = vpack.c.b16 %v1319, %v1316
    %v1365 = vpack.c.b16 %v1320, %v1317
    %v1366 = vpack.c.b16 %v1324, %v1321
    %v1367 = vpack.c.b16 %v1325, %v1322
    %v1368 = vpack.c.b16 %v1326, %v1323
    %v1369 = vpack.c.b16 %v1330, %v1327
    %v1370 = vpack.c.b16 %v1331, %v1328
    %v1371 = vpack.c.b16 %v1332, %v1329
    %v1372 = vpack.c.b16 %v1336, %v1333
    %v1373 = vpack.c.b16 %v1337, %v1334
    %v1374 = vpack.c.b16 %v1338, %v1335
    %v1375 = vpack.c.b16 %v1342, %v1339
    %v1376 = vpack.c.b16 %v1343, %v1340
    %v1377 = vpack.c.b16 %v1344, %v1341
    %v1378 = vpack.c.b16 %v1348, %v1345
    %v1379 = vpack.c.b16 %v1349, %v1346
    %v1380 = vpack.c.b16 %v1350, %v1347
    %v1381 = vpack.c.b16 %v1354, %v1351
    %v1382 = vpack.c.b16 %v1355, %v1352
    %v1383 = vpack.c.b16 %v1356, %v1353
    %v1384 = vpack.c.b16 %v1360, %v1357
    %v1385 = vpack.c.b16 %v1361, %v1358
    %v1386 = vpack.c.b16 %v1362, %v1359
    %1411 = vmatprep.subr.bf16.mxu0 %v1385
    %1412 = vmatpush1.bf16.msra.mxu0 %v1384
    %1413 = vmatprep.subr.bf16.mxu0 %v1382
    %1414 = vmatpush1.bf16.msra.mxu0 %v1381
    %1415 = vmatprep.subr.bf16.mxu0 %v1379
    %1416 = vmatpush1.bf16.msra.mxu0 %v1378
    %1417 = vmatprep.subr.bf16.mxu0 %v1376
    %1418 = vmatpush1.bf16.msra.mxu0 %v1375
    %1419 = vmatprep.subr.bf16.mxu0 %v1373
    %1420 = vmatpush1.bf16.msra.mxu0 %v1372
    %1421 = vmatprep.subr.bf16.mxu0 %v1370
    %1422 = vmatpush1.bf16.msra.mxu0 %v1369
    %1423 = vmatprep.subr.bf16.mxu0 %v1367
    %1424 = vmatpush1.bf16.msra.mxu0 %v1366
    %1425 = vmatprep.subr.bf16.mxu0 %v1364
    %1426 = vmatpush1.bf16.msra.mxu0 %v1363
    %1427 = vmatprep.subr.bf16.mxu0 0
    %1428 = vmatpush2.bf16.msra.mxu0 0
    %1429 = vmatprep.subr.bf16.mxu0 0
    %1430 = vmatpush2.bf16.msra.mxu0 0
    %1431 = vmatprep.subr.bf16.mxu0 0
    %1432 = vmatpush2.bf16.msra.mxu0 0
    %1433 = vmatprep.subr.bf16.mxu0 0
    %1434 = vmatpush2.bf16.msra.mxu0 0
    %1435 = vmatprep.subr.bf16.mxu0 0
    %1436 = vmatpush2.bf16.msra.mxu0 0
    %1437 = vmatprep.subr.bf16.mxu0 0
    %1438 = vmatpush2.bf16.msra.mxu0 0
    %1439 = vmatprep.subr.bf16.mxu0 0
    %1440 = vmatpush2.bf16.msra.mxu0 0
    %1441 = vmatprep.subr.bf16.mxu0 0
    %1442 = vmatpush2.bf16.msra.mxu0 0
    %1443 = vmatprep.mubr.bf16.mxu0 0
    %1444 = vmatmul.mubr.bf16.gmra.mxu0 %v1266
    %v1445 = vpop.f32.mrf.mxu0
    %v1446 = vadd.f32 %v1271, %v1445
    %v1447 = vpop.f32.mrf.mxu0
    %v1448 = vadd.f32 %v1275, %v1447
    %v1449 = vpop.f32.mrf.mxu0
    %v1450 = vpop.f32.mrf.mxu0
    %1451 = vdwg.mxu0
    %1452 = vmatprep.subr.bf16.mxu0 0
    %1453 = vmatpush1.bf16.msra.mxu0 %v1386
    %1454 = vmatprep.subr.bf16.mxu0 0
    %1455 = vmatpush1.bf16.msra.mxu0 %v1383
    %1456 = vmatprep.subr.bf16.mxu0 0
    %1457 = vmatpush1.bf16.msra.mxu0 %v1380
    %1458 = vmatprep.subr.bf16.mxu0 0
    %1459 = vmatpush1.bf16.msra.mxu0 %v1377
    %1460 = vmatprep.subr.bf16.mxu0 0
    %1461 = vmatpush1.bf16.msra.mxu0 %v1374
    %1462 = vmatprep.subr.bf16.mxu0 0
    %1463 = vmatpush1.bf16.msra.mxu0 %v1371
    %1464 = vmatprep.subr.bf16.mxu0 0
    %1465 = vmatpush1.bf16.msra.mxu0 %v1368
    %1466 = vmatprep.subr.bf16.mxu0 0
    %1467 = vmatpush1.bf16.msra.mxu0 %v1365
    %1468 = vmatprep.subr.bf16.mxu0 0
    %1469 = vmatpush2.bf16.msra.mxu0 0
    %1470 = vmatprep.subr.bf16.mxu0 0
    %1471 = vmatpush2.bf16.msra.mxu0 0
    %1472 = vmatprep.subr.bf16.mxu0 0
    %1473 = vmatpush2.bf16.msra.mxu0 0
    %1474 = vmatprep.subr.bf16.mxu0 0
    %1475 = vmatpush2.bf16.msra.mxu0 0
    %1476 = vmatprep.subr.bf16.mxu0 0
    %1477 = vmatpush2.bf16.msra.mxu0 0
    %1478 = vmatprep.subr.bf16.mxu0 0
    %1479 = vmatpush2.bf16.msra.mxu0 0
    %1480 = vmatprep.subr.bf16.mxu0 0
    %1481 = vmatpush2.bf16.msra.mxu0 0
    %1482 = vmatprep.subr.bf16.mxu0 0
    %1483 = vmatpush2.bf16.msra.mxu0 0
    %1484 = vmatprep.mubr.bf16.mxu0 0
    %1485 = vmatmul.mubr.bf16.gmra.mxu0 %v1266
    %v1486 = vpop.f32.mrf.mxu0
    %v1487 = vadd.f32 %v1279, %v1486
    %v1488 = vpop.f32.mrf.mxu0
    %v1489 = vpop.f32.mrf.mxu0
    %v1490 = vpop.f32.mrf.mxu0
    %1491 = vdwg.mxu0
    %v1492 = vadd.f32 %v1220, %v1446
    %v1493 = vxor.u32 %v1492, 2147483648
    %v1494 = vmul.f32 %v1493, 1.442695
    %v1495 = vpow.pop %v1494
    %v1496 = vadd.f32 %v1495, 1.0
    %v1497 = vrcp.pop %v1496
    %v1498 = vmul.f32 1.0, %v1497
    %v1499 = vadd.f32 %v1222, %v1448
    %v1500 = vxor.u32 %v1499, 2147483648
    %v1501 = vmul.f32 %v1500, 1.442695
    %v1502 = vpow.pop %v1501
    %v1503 = vadd.f32 %v1502, 1.0
    %v1504 = vrcp.pop %v1503
    %v1505 = vmul.f32 1.0, %v1504
    %v1506 = vmul.f32 %v1498, %v1487
    %v1507 = vadd.f32 %v1261, %v1506
    %v1508 = vtanh.pop %v1507
    %v1509 = vsub.f32 1.0, %v1505
    %v1510 = vmul.f32 %v1509, %v1508
    %v1511 = vmul.f32 %v1505, %v912
    %v1512 = vadd.f32 %v1510, %v1511
    %1513 = vst [vmem:[#allocation2] sm:$0x3] %v910
    %1514 = vst [vmem:[%s911] sm:$0x3] %v1512
    %s1515 = scalar_lea.vmem %s6, %s276
    %1516 = vst [vmem:[%s1515] sm:$0x3] %v910
    %s1517 = scalar_lea.vmem %s61, %s293
    %1518 = vst [vmem:[%s1517] sm:$0x3] %v1512
  $region34: #{_lambda_.8} parent=0 // loop_footer
    %s274 = sadd.s32 1, %s270
  $region35: #{_lambda_.8} parent=0 // loop_footer_branch
    %269 = sbr.rel target = $region31
  $region36: #{_lambda_.8} parent=0 // loop_exit
    _
  %s1519 = ssub.s32 0, 0
  %s1520 = smul.u32 8, %s1519
  %p1521 = scmp.lt.s32.totalorder %s1520, 7
  %s1522 = scalar_select %p1521, %s1520, 7
  %s1523 = smul.addr %s1522, 2
  %s1524 = scalar_lea.vmem %s7, %s1523
  // Predicated region
  $region37: #{_lambda_.8} parent=0 // pred_check
    _
  $region38: #{_lambda_.8} parent=0 // pred_check_branch
    %1526 = sbr.rel (0) target = $region40
  $region39: #{_lambda_.8} parent=0 // pred_region
    _
  $region40: #{_lambda_.8} parent=0 // pred_fallthru
    _
  // Predicated region
  $region41: #{_lambda_.8} parent=0 // pred_check
    _
  $region42: #{_lambda_.8} parent=0 // pred_check_branch
    %1528 = sbr.rel (0) target = $region44
  $region43: #{_lambda_.8} parent=0 // pred_region
    %s1529 = ssub.s32 0, 0
    %s1530 = smul.u32 8, %s1529
  $region44: #{_lambda_.8} parent=0 // pred_fallthru
    _
  // Predicated region
  $region45: #{_lambda_.8} parent=0 // pred_check
    _
  $region46: #{_lambda_.8} parent=0 // pred_check_branch
    %1532 = sbr.rel (0) target = $region48
  $region47: #{_lambda_.8} parent=0 // pred_region
    _
  $region48: #{_lambda_.8} parent=0 // pred_fallthru
    _
  // Predicated region
  $region49: #{_lambda_.8} parent=0 // pred_check
    _
  $region50: #{_lambda_.8} parent=0 // pred_check_branch
    %1534 = sbr.rel (0) target = $region52
  $region51: #{_lambda_.8} parent=0 // pred_region
    %s1535 = ssub.s32 0, 0
    %s1536 = smul.u32 8, %s1535
    %p1537 = scmp.lt.s32.totalorder %s1536, 7
    %s1538 = scalar_select %p1537, %s1536, 7
    %s1539 = smul.addr %s1538, 2
    %s1540 = scalar_lea.vmem %s7, %s1539
  $region52: #{_lambda_.8} parent=0 // pred_fallthru
    _

// kernel: _lambda_.7
$region0: #{_lambda_.7}
  #allocation0 [shape = 'u32[]', space=smem, size = 0x4, offset = 0x4, fixed_abs, tag = 'smem constant byte address 0x4 - core index']
  #allocation1 [shape = 'u32[144,128]{1,0:T(1,128)}', space=vmem, size = 0x12000, scoped, tag = 'internal scratch']
  #allocation2 [shape = 'f32[2,2,128]{2,1,0:T(2,128)}', space=vmem, size = 0x800, scoped, tag = 'scratch operand']
  %s0 = inlined_call_operand.vmem [shape: f32[8,2,256], index: 0, kind: input, shape index: {}, may-alias: {0,1}]
  %s1 = inlined_call_operand.vmem [shape: f32[8,2,256], index: 1, kind: input, shape index: {}, may-alias: {0,1}]
  %s2 = inlined_call_operand.vmem [shape: bf16[256,768], index: 2, kind: input, shape index: {}]
  %s3 = inlined_call_operand.hbm [shape: f32[1,768], index: 3, kind: input, shape index: {}]
  %s4 = inlined_call_operand.vmem [shape: bf16[2,128,384], index: 4, kind: input, shape index: {}]
  %s5 = inlined_call_operand.hbm [shape: f32[2,1,384], index: 5, kind: input, shape index: {}]
  %s6 = inlined_call_operand.vmem [shape: f32[8,2,128], index: 6, kind: output, shape index: {0}]
  %s7 = inlined_call_operand.vmem [shape: f32[8,2,128], index: 7, kind: output, shape index: {1}]
  %8 = xla_tuple %s6, %s7
  %s9 = sld [smem:[#allocation0]]
  $region61: #{_lambda_.7} parent=0
    _
  %s11 = ssub.s32 1, %s9
  %s12 = scalar_select 0, %s11, %s9
  $region1: #{_lambda_.7} parent=0
    #allocation3 [shape = 'u8[3072]{0}', space=vmem, size = 0xc00, scoped, tag = 'input window, operand 3, single buffered']
    #allocation4 [shape = 's32[1]{0}', space=sflag, size = 0x4, scoped, tag = 'scoped memory for _lambda_.7']
    #allocation5 [shape = 'u8[3072]{0}', space=vmem, size = 0xc00, scoped, tag = 'input window, operand 5, single buffered']
    #allocation6 [shape = 's32[1]{0}', space=sflag, size = 0x4, scoped, tag = 'scoped memory for _lambda_.7']
    %13 = vsyncpa [#allocation4], 0
    %14 = vsyncpa [#allocation6], 0
    // Predicated region
    $region2: #{_lambda_.7} parent=1 // pred_check
      _
    $region3: #{_lambda_.7} parent=1 // pred_check_branch
      %16 = sbr.rel (0) target = $region5
    $region4: #{_lambda_.7} parent=1 // pred_region
      _
    $region5: #{_lambda_.7} parent=1 // pred_fallthru
      _
    // Predicated region
    $region6: #{_lambda_.7} parent=1 // pred_check
      _
    $region7: #{_lambda_.7} parent=1 // pred_check_branch
      %18 = sbr.rel (0) target = $region9
    $region8: #{_lambda_.7} parent=1 // pred_region
      %s19 = ssub.s32 0, 0
      %s20 = smul.u32 8, %s19
      %p21 = scmp.lt.s32.totalorder %s20, 7
      %s22 = scalar_select %p21, %s20, 7
      %s23 = smul.addr %s22, 2
      %s24 = smul.addr %s23, 2
      %s25 = scalar_lea.vmem %s1, %s24
      %s26 = ssub.s32 0, 0
      %s27 = smul.u32 8, %s26
    $region9: #{_lambda_.7} parent=1 // pred_fallthru
      _
    // Predicated region
    $region10: #{_lambda_.7} parent=1 // pred_check
      _
    $region11: #{_lambda_.7} parent=1 // pred_check_branch
      %29 = sbr.rel (0) target = $region13
    $region12: #{_lambda_.7} parent=1 // pred_region
      _
    $region13: #{_lambda_.7} parent=1 // pred_fallthru
      _
    // Predicated region
    $region14: #{_lambda_.7} parent=1 // pred_check
      _
    $region15: #{_lambda_.7} parent=1 // pred_check_branch
      %31 = sbr.rel (0) target = $region17
    $region16: #{_lambda_.7} parent=1 // pred_region
      %s33 = ssub.s32 96, 96
      %34 = vsyncadd [#allocation4], %s33
      %s36 = sshll.u32 [#allocation3], 4
      %s37 = int_to_ptr.vmem [resolvable:$true] %s36
      %39 = dma.hbm_to_vmem [thread:$0]  %s3, 96, %s37, [#allocation4]
    $region17: #{_lambda_.7} parent=1 // pred_fallthru
      _
    // Predicated region
    $region18: #{_lambda_.7} parent=1 // pred_check
      _
    $region19: #{_lambda_.7} parent=1 // pred_check_branch
      %41 = sbr.rel (0) target = $region21
    $region20: #{_lambda_.7} parent=1 // pred_region
      _
    $region21: #{_lambda_.7} parent=1 // pred_fallthru
      _
    // Predicated region
    $region22: #{_lambda_.7} parent=1 // pred_check
      _
    $region23: #{_lambda_.7} parent=1 // pred_check_branch
      %43 = sbr.rel (0) target = $region25
    $region24: #{_lambda_.7} parent=1 // pred_region
      %s45 = ssub.s32 96, 96
      %46 = vsyncadd [#allocation6], %s45
      %s47 = sshll.u32 [#allocation5], 4
      %s48 = int_to_ptr.vmem [resolvable:$true] %s47
      %53 = dma.hbm_to_vmem [thread:$0]  %s5, 96, %s48, [#allocation6], 48, 48, 3
    $region25: #{_lambda_.7} parent=1 // pred_fallthru
      _
    // Predicated region
    $region26: #{_lambda_.7} parent=1 // pred_check
      _
    $region27: #{_lambda_.7} parent=1 // pred_check_branch
      %55 = sbr.rel (0) target = $region29
    $region28: #{_lambda_.7} parent=1 // pred_region
      %56 = dma.done [#allocation4], 96
    $region29: #{_lambda_.7} parent=1 // pred_fallthru
      _
    // Predicated region
    $region30: #{_lambda_.7} parent=1 // pred_check
      _
    $region31: #{_lambda_.7} parent=1 // pred_check_branch
      %58 = sbr.rel (0) target = $region33
    $region32: #{_lambda_.7} parent=1 // pred_region
      %59 = dma.done [#allocation6], 96
    $region33: #{_lambda_.7} parent=1 // pred_fallthru
      _
    %s60 = ssub.s32 0, 0
    %s61 = smul.u32 8, %s60
    %p62 = scmp.lt.s32.totalorder %s61, 7
    %s63 = scalar_select %p62, %s61, 7
    %s64 = smul.addr %s63, 2
    %s65 = smul.addr %s64, 2
    %s66 = scalar_lea.vmem %s1, %s65
    %s67 = ssub.s32 0, 0
    %s68 = smul.u32 8, %s67
    %p69 = scmp.lt.s32.totalorder %s68, 7
    %s70 = scalar_select %p69, %s68, 7
    %s71 = smul.addr %s70, 2
    %s72 = scalar_lea.vmem %s7, %s71
    %s73 = ssub.s32 0, 0
    %s74 = smul.u32 8, %s73
    %p75 = scmp.lt.s32.totalorder %s74, 7
    %s76 = scalar_select %p75, %s74, 7
    %s77 = smul.addr %s76, 2
    %s78 = smul.addr %s77, 2
    %s79 = scalar_lea.vmem %s1, %s78
    %s80 = ssub.s32 0, 0
    %s81 = smul.u32 8, %s80
    %s82 = ssub.s32 0, 0
    %s83 = smul.u32 8, %s82
    %p84 = scmp.lt.s32.totalorder %s83, 7
    %s85 = scalar_select %p84, %s83, 7
    %s86 = smul.addr %s85, 2
    %s87 = scalar_lea.vmem %s7, %s86
    %s88 = ssub.s32 0, 0
    %s89 = smul.u32 8, %s88
    %p91 = scmp.eq.s32.totalorder 0, 0
    // Predicated region
    $region34: #{_lambda_.7} parent=1 // pred_check
      %p92 = pneg %p91
    $region35: #{_lambda_.7} parent=1 // pred_check_branch
      %94 = sbr.rel (%p92) target = $region37
    $region36: #{_lambda_.7} parent=1 // pred_region
      %95 = vst [vmem:[#allocation2] sm:$0x3] 0.0
      %96 = vst [vmem:[#allocation2 + $0x2] sm:$0x3] 0.0
    $region37: #{_lambda_.7} parent=1 // pred_fallthru
      _
    %v97 = vld [vmem:[%s2] sm:$0xff]
    %v98 = vld [vmem:[%s2 + $0x8] sm:$0xf]
    %v99 = vld [vmem:[%s2 + $0x18] sm:$0xff]
    %v100 = vld [vmem:[%s2 + $0x20] sm:$0xf]
    %v101 = vld [vmem:[%s2 + $0x30] sm:$0xff]
    %v102 = vld [vmem:[%s2 + $0x38] sm:$0xf]
    %v103 = vld [vmem:[%s2 + $0x48] sm:$0xff]
    %v104 = vld [vmem:[%s2 + $0x50] sm:$0xf]
    %v105 = vld [vmem:[%s2 + $0x60] sm:$0xff]
    %v106 = vld [vmem:[%s2 + $0x68] sm:$0xf]
    %v107 = vld [vmem:[%s2 + $0x78] sm:$0xff]
    %v108 = vld [vmem:[%s2 + $0x80] sm:$0xf]
    %v109 = vld [vmem:[%s2 + $0x90] sm:$0xff]
    %v110 = vld [vmem:[%s2 + $0x98] sm:$0xf]
    %v111 = vld [vmem:[%s2 + $0xa8] sm:$0xff]
    %v112 = vld [vmem:[%s2 + $0xb0] sm:$0xf]
    %v113 = vld [vmem:[%s2 + $0xc0] sm:$0xff]
    %v114 = vld [vmem:[%s2 + $0xc8] sm:$0xf]
    %v115 = vld [vmem:[%s2 + $0xd8] sm:$0xff]
    %v116 = vld [vmem:[%s2 + $0xe0] sm:$0xf]
    %v117 = vld [vmem:[%s2 + $0xf0] sm:$0xff]
    %v118 = vld [vmem:[%s2 + $0xf8] sm:$0xf]
    %v119 = vld [vmem:[%s2 + $0x108] sm:$0xff]
    %v120 = vld [vmem:[%s2 + $0x110] sm:$0xf]
    %v121 = vld [vmem:[%s2 + $0x120] sm:$0xff]
    %v122 = vld [vmem:[%s2 + $0x128] sm:$0xf]
    %v123 = vld [vmem:[%s2 + $0x138] sm:$0xff]
    %v124 = vld [vmem:[%s2 + $0x140] sm:$0xf]
    %v125 = vld [vmem:[%s2 + $0x150] sm:$0xff]
    %v126 = vld [vmem:[%s2 + $0x158] sm:$0xf]
    %v127 = vld [vmem:[%s2 + $0x168] sm:$0xff]
    %v128 = vld [vmem:[%s2 + $0x170] sm:$0xf]
    %v129 = vld [vmem:[%s2 + $0x180] sm:$0xff]
    %v130 = vld [vmem:[%s2 + $0x188] sm:$0xf]
    %v131 = vld [vmem:[%s2 + $0x198] sm:$0xff]
    %v132 = vld [vmem:[%s2 + $0x1a0] sm:$0xf]
    %v133 = vld [vmem:[%s2 + $0x1b0] sm:$0xff]
    %v134 = vld [vmem:[%s2 + $0x1b8] sm:$0xf]
    %v135 = vld [vmem:[%s2 + $0x1c8] sm:$0xff]
    %v136 = vld [vmem:[%s2 + $0x1d0] sm:$0xf]
    %v137 = vld [vmem:[%s2 + $0x1e0] sm:$0xff]
    %v138 = vld [vmem:[%s2 + $0x1e8] sm:$0xf]
    %v139 = vld [vmem:[%s2 + $0x1f8] sm:$0xff]
    %v140 = vld [vmem:[%s2 + $0x200] sm:$0xf]
    %v141 = vld [vmem:[%s2 + $0x210] sm:$0xff]
    %v142 = vld [vmem:[%s2 + $0x218] sm:$0xf]
    %v143 = vld [vmem:[%s2 + $0x228] sm:$0xff]
    %v144 = vld [vmem:[%s2 + $0x230] sm:$0xf]
    %v145 = vld [vmem:[%s2 + $0x240] sm:$0xff]
    %v146 = vld [vmem:[%s2 + $0x248] sm:$0xf]
    %v147 = vld [vmem:[%s2 + $0x258] sm:$0xff]
    %v148 = vld [vmem:[%s2 + $0x260] sm:$0xf]
    %v149 = vld [vmem:[%s2 + $0x270] sm:$0xff]
    %v150 = vld [vmem:[%s2 + $0x278] sm:$0xf]
    %v151 = vld [vmem:[%s2 + $0x288] sm:$0xff]
    %v152 = vld [vmem:[%s2 + $0x290] sm:$0xf]
    %v153 = vld [vmem:[%s2 + $0x2a0] sm:$0xff]
    %v154 = vld [vmem:[%s2 + $0x2a8] sm:$0xf]
    %v155 = vld [vmem:[%s2 + $0x2b8] sm:$0xff]
    %v156 = vld [vmem:[%s2 + $0x2c0] sm:$0xf]
    %v157 = vld [vmem:[%s2 + $0x2d0] sm:$0xff]
    %v158 = vld [vmem:[%s2 + $0x2d8] sm:$0xf]
    %v159 = vld [vmem:[%s2 + $0x2e8] sm:$0xff]
    %v160 = vld [vmem:[%s2 + $0x2f0] sm:$0xf]
    %v161 = vld [vmem:[%s2 + $0xc] sm:$0xff]
    %v162 = vld [vmem:[%s2 + $0x14] sm:$0xf]
    %v163 = vld [vmem:[%s2 + $0x24] sm:$0xff]
    %v164 = vld [vmem:[%s2 + $0x2c] sm:$0xf]
    %v165 = vld [vmem:[%s2 + $0x3c] sm:$0xff]
    %v166 = vld [vmem:[%s2 + $0x44] sm:$0xf]
    %v167 = vld [vmem:[%s2 + $0x54] sm:$0xff]
    %v168 = vld [vmem:[%s2 + $0x5c] sm:$0xf]
    %v169 = vld [vmem:[%s2 + $0x6c] sm:$0xff]
    %v170 = vld [vmem:[%s2 + $0x74] sm:$0xf]
    %v171 = vld [vmem:[%s2 + $0x84] sm:$0xff]
    %v172 = vld [vmem:[%s2 + $0x8c] sm:$0xf]
    %v173 = vld [vmem:[%s2 + $0x9c] sm:$0xff]
    %v174 = vld [vmem:[%s2 + $0xa4] sm:$0xf]
    %v175 = vld [vmem:[%s2 + $0xb4] sm:$0xff]
    %v176 = vld [vmem:[%s2 + $0xbc] sm:$0xf]
    %v177 = vld [vmem:[%s2 + $0xcc] sm:$0xff]
    %v178 = vld [vmem:[%s2 + $0xd4] sm:$0xf]
    %v179 = vld [vmem:[%s2 + $0xe4] sm:$0xff]
    %v180 = vld [vmem:[%s2 + $0xec] sm:$0xf]
    %v181 = vld [vmem:[%s2 + $0xfc] sm:$0xff]
    %v182 = vld [vmem:[%s2 + $0x104] sm:$0xf]
    %v183 = vld [vmem:[%s2 + $0x114] sm:$0xff]
    %v184 = vld [vmem:[%s2 + $0x11c] sm:$0xf]
    %v185 = vld [vmem:[%s2 + $0x12c] sm:$0xff]
    %v186 = vld [vmem:[%s2 + $0x134] sm:$0xf]
    %v187 = vld [vmem:[%s2 + $0x144] sm:$0xff]
    %v188 = vld [vmem:[%s2 + $0x14c] sm:$0xf]
    %v189 = vld [vmem:[%s2 + $0x15c] sm:$0xff]
    %v190 = vld [vmem:[%s2 + $0x164] sm:$0xf]
    %v191 = vld [vmem:[%s2 + $0x174] sm:$0xff]
    %v192 = vld [vmem:[%s2 + $0x17c] sm:$0xf]
    %v193 = vld [vmem:[%s2 + $0x18c] sm:$0xff]
    %v194 = vld [vmem:[%s2 + $0x194] sm:$0xf]
    %v195 = vld [vmem:[%s2 + $0x1a4] sm:$0xff]
    %v196 = vld [vmem:[%s2 + $0x1ac] sm:$0xf]
    %v197 = vld [vmem:[%s2 + $0x1bc] sm:$0xff]
    %v198 = vld [vmem:[%s2 + $0x1c4] sm:$0xf]
    %v199 = vld [vmem:[%s2 + $0x1d4] sm:$0xff]
    %v200 = vld [vmem:[%s2 + $0x1dc] sm:$0xf]
    %v201 = vld [vmem:[%s2 + $0x1ec] sm:$0xff]
    %v202 = vld [vmem:[%s2 + $0x1f4] sm:$0xf]
    %v203 = vld [vmem:[%s2 + $0x204] sm:$0xff]
    %v204 = vld [vmem:[%s2 + $0x20c] sm:$0xf]
    %v205 = vld [vmem:[%s2 + $0x21c] sm:$0xff]
    %v206 = vld [vmem:[%s2 + $0x224] sm:$0xf]
    %v207 = vld [vmem:[%s2 + $0x234] sm:$0xff]
    %v208 = vld [vmem:[%s2 + $0x23c] sm:$0xf]
    %v209 = vld [vmem:[%s2 + $0x24c] sm:$0xff]
    %v210 = vld [vmem:[%s2 + $0x254] sm:$0xf]
    %v211 = vld [vmem:[%s2 + $0x264] sm:$0xff]
    %v212 = vld [vmem:[%s2 + $0x26c] sm:$0xf]
    %v213 = vld [vmem:[%s2 + $0x27c] sm:$0xff]
    %v214 = vld [vmem:[%s2 + $0x284] sm:$0xf]
    %v215 = vld [vmem:[%s2 + $0x294] sm:$0xff]
    %v216 = vld [vmem:[%s2 + $0x29c] sm:$0xf]
    %v217 = vld [vmem:[%s2 + $0x2ac] sm:$0xff]
    %v218 = vld [vmem:[%s2 + $0x2b4] sm:$0xf]
    %v219 = vld [vmem:[%s2 + $0x2c4] sm:$0xff]
    %v220 = vld [vmem:[%s2 + $0x2cc] sm:$0xf]
    %v221 = vld [vmem:[%s2 + $0x2dc] sm:$0xff]
    %v222 = vld [vmem:[%s2 + $0x2e4] sm:$0xf]
    %v223 = vld [vmem:[%s2 + $0x2f4] sm:$0xff]
    %v224 = vld [vmem:[%s2 + $0x2fc] sm:$0xf]
    %v225 = vld [vmem:[#allocation3] sm:$0x7]
    %v226 = vld [vmem:[#allocation3 + $0x3] sm:$0x7]
    %v227 = vld [vmem:[%s4] sm:$0xff]
    %v228 = vld [vmem:[%s4 + $0x8] sm:$0xf]
    %v229 = vld [vmem:[%s4 + $0xc] sm:$0xff]
    %v230 = vld [vmem:[%s4 + $0x14] sm:$0xf]
    %v231 = vld [vmem:[%s4 + $0x18] sm:$0xff]
    %v232 = vld [vmem:[%s4 + $0x20] sm:$0xf]
    %v233 = vld [vmem:[%s4 + $0x24] sm:$0xff]
    %v234 = vld [vmem:[%s4 + $0x2c] sm:$0xf]
    %v235 = vld [vmem:[%s4 + $0x30] sm:$0xff]
    %v236 = vld [vmem:[%s4 + $0x38] sm:$0xf]
    %v237 = vld [vmem:[%s4 + $0x3c] sm:$0xff]
    %v238 = vld [vmem:[%s4 + $0x44] sm:$0xf]
    %v239 = vld [vmem:[%s4 + $0x48] sm:$0xff]
    %v240 = vld [vmem:[%s4 + $0x50] sm:$0xf]
    %v241 = vld [vmem:[%s4 + $0x54] sm:$0xff]
    %v242 = vld [vmem:[%s4 + $0x5c] sm:$0xf]
    %v243 = vld [vmem:[%s4 + $0x60] sm:$0xff]
    %v244 = vld [vmem:[%s4 + $0x68] sm:$0xf]
    %v245 = vld [vmem:[%s4 + $0x6c] sm:$0xff]
    %v246 = vld [vmem:[%s4 + $0x74] sm:$0xf]
    %v247 = vld [vmem:[%s4 + $0x78] sm:$0xff]
    %v248 = vld [vmem:[%s4 + $0x80] sm:$0xf]
    %v249 = vld [vmem:[%s4 + $0x84] sm:$0xff]
    %v250 = vld [vmem:[%s4 + $0x8c] sm:$0xf]
    %v251 = vld [vmem:[%s4 + $0x90] sm:$0xff]
    %v252 = vld [vmem:[%s4 + $0x98] sm:$0xf]
    %v253 = vld [vmem:[%s4 + $0x9c] sm:$0xff]
    %v254 = vld [vmem:[%s4 + $0xa4] sm:$0xf]
    %v255 = vld [vmem:[%s4 + $0xa8] sm:$0xff]
    %v256 = vld [vmem:[%s4 + $0xb0] sm:$0xf]
    %v257 = vld [vmem:[%s4 + $0xb4] sm:$0xff]
    %v258 = vld [vmem:[%s4 + $0xbc] sm:$0xf]
    %s259 = scalar_lea.vmem %s4, 192
    %v260 = vld [vmem:[%s259] sm:$0xff]
    %v261 = vld [vmem:[%s259 + $0x8] sm:$0xf]
    %v262 = vld [vmem:[%s259 + $0xc] sm:$0xff]
    %v263 = vld [vmem:[%s259 + $0x14] sm:$0xf]
    %v264 = vld [vmem:[%s259 + $0x18] sm:$0xff]
    %v265 = vld [vmem:[%s259 + $0x20] sm:$0xf]
    %v266 = vld [vmem:[%s259 + $0x24] sm:$0xff]
    %v267 = vld [vmem:[%s259 + $0x2c] sm:$0xf]
    %v268 = vld [vmem:[%s259 + $0x30] sm:$0xff]
    %v269 = vld [vmem:[%s259 + $0x38] sm:$0xf]
    %v270 = vld [vmem:[%s259 + $0x3c] sm:$0xff]
    %v271 = vld [vmem:[%s259 + $0x44] sm:$0xf]
    %v272 = vld [vmem:[%s259 + $0x48] sm:$0xff]
    %v273 = vld [vmem:[%s259 + $0x50] sm:$0xf]
    %v274 = vld [vmem:[%s259 + $0x54] sm:$0xff]
    %v275 = vld [vmem:[%s259 + $0x5c] sm:$0xf]
    %v276 = vld [vmem:[%s259 + $0x60] sm:$0xff]
    %v277 = vld [vmem:[%s259 + $0x68] sm:$0xf]
    %v278 = vld [vmem:[%s259 + $0x6c] sm:$0xff]
    %v279 = vld [vmem:[%s259 + $0x74] sm:$0xf]
    %v280 = vld [vmem:[%s259 + $0x78] sm:$0xff]
    %v281 = vld [vmem:[%s259 + $0x80] sm:$0xf]
    %v282 = vld [vmem:[%s259 + $0x84] sm:$0xff]
    %v283 = vld [vmem:[%s259 + $0x8c] sm:$0xf]
    %v284 = vld [vmem:[%s259 + $0x90] sm:$0xff]
    %v285 = vld [vmem:[%s259 + $0x98] sm:$0xf]
    %v286 = vld [vmem:[%s259 + $0x9c] sm:$0xff]
    %v287 = vld [vmem:[%s259 + $0xa4] sm:$0xf]
    %v288 = vld [vmem:[%s259 + $0xa8] sm:$0xff]
    %v289 = vld [vmem:[%s259 + $0xb0] sm:$0xf]
    %v290 = vld [vmem:[%s259 + $0xb4] sm:$0xff]
    %v291 = vld [vmem:[%s259 + $0xbc] sm:$0xf]
    %v292 = vld [vmem:[#allocation5] sm:$0x7]
    %s293 = scalar_lea.vmem [#allocation5], 3
    %v294 = vld [vmem:[%s293] sm:$0x7]
    loop: start=0, step=1, limit=8
    $region38: #{_lambda_.7} parent=1 // loop_pre_header
      _
    $region39: #{_lambda_.7} parent=1 // loop_header
      %s296 = sphi 0, %s300
      %p297 = scmp.ge.s32.totalorder %s296, 8
    $region40: #{_lambda_.7} parent=1 // loop_header_branch
      %299 = sbr.rel (%p297) target = $region44
    $region41: #{_lambda_.7} parent=1 // loop_body
      %s301 = ssub.s32 7, %s296
      %s302 = smul.u32 %s296, 2
      %s303 = smul.addr %s302, 2
      %s304 = scalar_lea.vmem %s0, %s303
      %v305 = vld [vmem:[%s304] sm:$0xf]
      %v308 = vunpack.c.l.s4 1983009808
      %v309 = vunpack.c.0.s8 %v308
      %v310 = vlaneseq
      %v311 = vshrl.u32 %v310, 7
      %v312 = vsub.s32 %v309, %v311
      %v313 = vrot.slane %v305, %v312
      %v314 = vcombine.high %v313, %v313
      %v317 = vpack.c.bf16 %v313, %v313
      %v318 = vpack.c.bf16 %v314, %v314
      %s319 = smul.u32 %s301, 2
      %s320 = smul.addr %s319, 2
      %s321 = scalar_lea.vmem %s79, %s320
      %v322 = vld [vmem:[%s321] sm:$0xf]
      %v325 = vunpack.c.l.s4 1983009808
      %v326 = vunpack.c.0.s8 %v325
      %v327 = vlaneseq
      %v328 = vshrl.u32 %v327, 7
      %v329 = vsub.s32 %v326, %v328
      %v330 = vrot.slane %v322, %v329
      %v331 = vcombine.high %v330, %v330
      %v334 = vpack.c.bf16 %v330, %v330
      %v335 = vpack.c.bf16 %v331, %v331
      %v336 = vld [vmem:[#allocation2] sm:$0x3]
      %v338 = vlaneseq
      %v339 = vshrl.u32 %v338, 7
      %v340 = vsub.s32 0, %v339
      %v341 = vrot.slane %v225, %v340
      %v342 = vlaneseq
      %v343 = vshrl.u32 %v342, 7
      %v344 = vsub.s32 1, %v343
      %v345 = vrot.slane %v225, %v344
      %v346 = vlaneseq
      %v347 = vshrl.u32 %v346, 7
      %v348 = vsub.s32 2, %v347
      %v349 = vrot.slane %v225, %v348
      %v417 = vunpack.c.l.b16 %v97
      %v418 = vunpack.c.h.b16 %v97
      %v419 = vunpack.c.l.b16 %v98
      %v420 = vunpack.c.l.b16 %v99
      %v421 = vunpack.c.h.b16 %v99
      %v422 = vunpack.c.l.b16 %v100
      %v423 = vunpack.c.l.b16 %v101
      %v424 = vunpack.c.h.b16 %v101
      %v425 = vunpack.c.l.b16 %v102
      %v426 = vunpack.c.l.b16 %v103
      %v427 = vunpack.c.h.b16 %v103
      %v428 = vunpack.c.l.b16 %v104
      %v429 = vunpack.c.l.b16 %v105
      %v430 = vunpack.c.h.b16 %v105
      %v431 = vunpack.c.l.b16 %v106
      %v432 = vunpack.c.l.b16 %v107
      %v433 = vunpack.c.h.b16 %v107
      %v434 = vunpack.c.l.b16 %v108
      %v435 = vunpack.c.l.b16 %v109
      %v436 = vunpack.c.h.b16 %v109
      %v437 = vunpack.c.l.b16 %v110
      %v438 = vunpack.c.l.b16 %v111
      %v439 = vunpack.c.h.b16 %v111
      %v440 = vunpack.c.l.b16 %v112
      %v441 = vunpack.c.l.b16 %v113
      %v442 = vunpack.c.h.b16 %v113
      %v443 = vunpack.c.l.b16 %v114
      %v444 = vunpack.c.l.b16 %v115
      %v445 = vunpack.c.h.b16 %v115
      %v446 = vunpack.c.l.b16 %v116
      %v447 = vunpack.c.l.b16 %v117
      %v448 = vunpack.c.h.b16 %v117
      %v449 = vunpack.c.l.b16 %v118
      %v450 = vunpack.c.l.b16 %v119
      %v451 = vunpack.c.h.b16 %v119
      %v452 = vunpack.c.l.b16 %v120
      %v453 = vunpack.c.l.b16 %v121
      %v454 = vunpack.c.h.b16 %v121
      %v455 = vunpack.c.l.b16 %v122
      %v456 = vunpack.c.l.b16 %v123
      %v457 = vunpack.c.h.b16 %v123
      %v458 = vunpack.c.l.b16 %v124
      %v459 = vunpack.c.l.b16 %v125
      %v460 = vunpack.c.h.b16 %v125
      %v461 = vunpack.c.l.b16 %v126
      %v462 = vunpack.c.l.b16 %v127
      %v463 = vunpack.c.h.b16 %v127
      %v464 = vunpack.c.l.b16 %v128
      %v465 = vunpack.c.l.b16 %v129
      %v466 = vunpack.c.h.b16 %v129
      %v467 = vunpack.c.l.b16 %v130
      %v468 = vunpack.c.l.b16 %v131
      %v469 = vunpack.c.h.b16 %v131
      %v470 = vunpack.c.l.b16 %v132
      %v471 = vunpack.c.l.b16 %v133
      %v472 = vunpack.c.h.b16 %v133
      %v473 = vunpack.c.l.b16 %v134
      %v474 = vunpack.c.l.b16 %v135
      %v475 = vunpack.c.h.b16 %v135
      %v476 = vunpack.c.l.b16 %v136
      %v477 = vunpack.c.l.b16 %v137
      %v478 = vunpack.c.h.b16 %v137
      %v479 = vunpack.c.l.b16 %v138
      %v480 = vunpack.c.l.b16 %v139
      %v481 = vunpack.c.h.b16 %v139
      %v482 = vunpack.c.l.b16 %v140
      %v483 = vunpack.c.l.b16 %v141
      %v484 = vunpack.c.h.b16 %v141
      %v485 = vunpack.c.l.b16 %v142
      %v486 = vunpack.c.l.b16 %v143
      %v487 = vunpack.c.h.b16 %v143
      %v488 = vunpack.c.l.b16 %v144
      %v489 = vunpack.c.l.b16 %v145
      %v490 = vunpack.c.h.b16 %v145
      %v491 = vunpack.c.l.b16 %v146
      %v492 = vunpack.c.l.b16 %v147
      %v493 = vunpack.c.h.b16 %v147
      %v494 = vunpack.c.l.b16 %v148
      %v495 = vunpack.c.l.b16 %v149
      %v496 = vunpack.c.h.b16 %v149
      %v497 = vunpack.c.l.b16 %v150
      %v498 = vunpack.c.l.b16 %v151
      %v499 = vunpack.c.h.b16 %v151
      %v500 = vunpack.c.l.b16 %v152
      %v501 = vunpack.c.l.b16 %v153
      %v502 = vunpack.c.h.b16 %v153
      %v503 = vunpack.c.l.b16 %v154
      %v504 = vunpack.c.l.b16 %v155
      %v505 = vunpack.c.h.b16 %v155
      %v506 = vunpack.c.l.b16 %v156
      %v507 = vunpack.c.l.b16 %v157
      %v508 = vunpack.c.h.b16 %v157
      %v509 = vunpack.c.l.b16 %v158
      %v510 = vunpack.c.l.b16 %v159
      %v511 = vunpack.c.h.b16 %v159
      %v512 = vunpack.c.l.b16 %v160
      %v513 = vpack.c.b16 %v420, %v417
      %v514 = vpack.c.b16 %v421, %v418
      %v515 = vpack.c.b16 %v422, %v419
      %v516 = vpack.c.b16 %v426, %v423
      %v517 = vpack.c.b16 %v427, %v424
      %v518 = vpack.c.b16 %v428, %v425
      %v519 = vpack.c.b16 %v432, %v429
      %v520 = vpack.c.b16 %v433, %v430
      %v521 = vpack.c.b16 %v434, %v431
      %v522 = vpack.c.b16 %v438, %v435
      %v523 = vpack.c.b16 %v439, %v436
      %v524 = vpack.c.b16 %v440, %v437
      %v525 = vpack.c.b16 %v444, %v441
      %v526 = vpack.c.b16 %v445, %v442
      %v527 = vpack.c.b16 %v446, %v443
      %v528 = vpack.c.b16 %v450, %v447
      %v529 = vpack.c.b16 %v451, %v448
      %v530 = vpack.c.b16 %v452, %v449
      %v531 = vpack.c.b16 %v456, %v453
      %v532 = vpack.c.b16 %v457, %v454
      %v533 = vpack.c.b16 %v458, %v455
      %v534 = vpack.c.b16 %v462, %v459
      %v535 = vpack.c.b16 %v463, %v460
      %v536 = vpack.c.b16 %v464, %v461
      %v537 = vpack.c.b16 %v468, %v465
      %v538 = vpack.c.b16 %v469, %v466
      %v539 = vpack.c.b16 %v470, %v467
      %v540 = vpack.c.b16 %v474, %v471
      %v541 = vpack.c.b16 %v475, %v472
      %v542 = vpack.c.b16 %v476, %v473
      %v543 = vpack.c.b16 %v480, %v477
      %v544 = vpack.c.b16 %v481, %v478
      %v545 = vpack.c.b16 %v482, %v479
      %v546 = vpack.c.b16 %v486, %v483
      %v547 = vpack.c.b16 %v487, %v484
      %v548 = vpack.c.b16 %v488, %v485
      %v549 = vpack.c.b16 %v492, %v489
      %v550 = vpack.c.b16 %v493, %v490
      %v551 = vpack.c.b16 %v494, %v491
      %v552 = vpack.c.b16 %v498, %v495
      %v553 = vpack.c.b16 %v499, %v496
      %v554 = vpack.c.b16 %v500, %v497
      %v555 = vpack.c.b16 %v504, %v501
      %v556 = vpack.c.b16 %v505, %v502
      %v557 = vpack.c.b16 %v506, %v503
      %v558 = vpack.c.b16 %v510, %v507
      %v559 = vpack.c.b16 %v511, %v508
      %v560 = vpack.c.b16 %v512, %v509
      %609 = vmatprep.subr.bf16.mxu0 %v535
      %610 = vmatpush1.bf16.msra.mxu0 %v534
      %611 = vmatprep.subr.bf16.mxu0 %v532
      %612 = vmatpush1.bf16.msra.mxu0 %v531
      %613 = vmatprep.subr.bf16.mxu0 %v529
      %614 = vmatpush1.bf16.msra.mxu0 %v528
      %615 = vmatprep.subr.bf16.mxu0 %v526
      %616 = vmatpush1.bf16.msra.mxu0 %v525
      %617 = vmatprep.subr.bf16.mxu0 %v523
      %618 = vmatpush1.bf16.msra.mxu0 %v522
      %619 = vmatprep.subr.bf16.mxu0 %v520
      %620 = vmatpush1.bf16.msra.mxu0 %v519
      %621 = vmatprep.subr.bf16.mxu0 %v517
      %622 = vmatpush1.bf16.msra.mxu0 %v516
      %623 = vmatprep.subr.bf16.mxu0 %v514
      %624 = vmatpush1.bf16.msra.mxu0 %v513
      %625 = vmatprep.subr.bf16.mxu0 %v559
      %626 = vmatpush2.bf16.msra.mxu0 %v558
      %627 = vmatprep.subr.bf16.mxu0 %v556
      %628 = vmatpush2.bf16.msra.mxu0 %v555
      %629 = vmatprep.subr.bf16.mxu0 %v553
      %630 = vmatpush2.bf16.msra.mxu0 %v552
      %631 = vmatprep.subr.bf16.mxu0 %v550
      %632 = vmatpush2.bf16.msra.mxu0 %v549
      %633 = vmatprep.subr.bf16.mxu0 %v547
      %634 = vmatpush2.bf16.msra.mxu0 %v546
      %635 = vmatprep.subr.bf16.mxu0 %v544
      %636 = vmatpush2.bf16.msra.mxu0 %v543
      %637 = vmatprep.subr.bf16.mxu0 %v541
      %638 = vmatpush2.bf16.msra.mxu0 %v540
      %639 = vmatprep.subr.bf16.mxu0 %v538
      %640 = vmatpush2.bf16.msra.mxu0 %v537
      %641 = vmatprep.mubr.bf16.mxu0 %v318
      %642 = vmatmul.mubr.bf16.gmra.mxu0 %v317
      %v643 = vpop.f32.mrf.mxu0
      %v644 = vadd.f32 %v341, %v643
      %v645 = vpop.f32.mrf.mxu0
      %v646 = vadd.f32 %v345, %v645
      %v647 = vpop.f32.mrf.mxu0
      %v648 = vpop.f32.mrf.mxu0
      %649 = vdwg.mxu0
      %650 = vmatprep.subr.bf16.mxu0 0
      %651 = vmatpush1.bf16.msra.mxu0 %v536
      %652 = vmatprep.subr.bf16.mxu0 0
      %653 = vmatpush1.bf16.msra.mxu0 %v533
      %654 = vmatprep.subr.bf16.mxu0 0
      %655 = vmatpush1.bf16.msra.mxu0 %v530
      %656 = vmatprep.subr.bf16.mxu0 0
      %657 = vmatpush1.bf16.msra.mxu0 %v527
      %658 = vmatprep.subr.bf16.mxu0 0
      %659 = vmatpush1.bf16.msra.mxu0 %v524
      %660 = vmatprep.subr.bf16.mxu0 0
      %661 = vmatpush1.bf16.msra.mxu0 %v521
      %662 = vmatprep.subr.bf16.mxu0 0
      %663 = vmatpush1.bf16.msra.mxu0 %v518
      %664 = vmatprep.subr.bf16.mxu0 0
      %665 = vmatpush1.bf16.msra.mxu0 %v515
      %666 = vmatprep.subr.bf16.mxu0 0
      %667 = vmatpush2.bf16.msra.mxu0 %v560
      %668 = vmatprep.subr.bf16.mxu0 0
      %669 = vmatpush2.bf16.msra.mxu0 %v557
      %670 = vmatprep.subr.bf16.mxu0 0
      %671 = vmatpush2.bf16.msra.mxu0 %v554
      %672 = vmatprep.subr.bf16.mxu0 0
      %673 = vmatpush2.bf16.msra.mxu0 %v551
      %674 = vmatprep.subr.bf16.mxu0 0
      %675 = vmatpush2.bf16.msra.mxu0 %v548
      %676 = vmatprep.subr.bf16.mxu0 0
      %677 = vmatpush2.bf16.msra.mxu0 %v545
      %678 = vmatprep.subr.bf16.mxu0 0
      %679 = vmatpush2.bf16.msra.mxu0 %v542
      %680 = vmatprep.subr.bf16.mxu0 0
      %681 = vmatpush2.bf16.msra.mxu0 %v539
      %682 = vmatprep.mubr.bf16.mxu0 %v318
      %683 = vmatmul.mubr.bf16.gmra.mxu0 %v317
      %v684 = vpop.f32.mrf.mxu0
      %v685 = vadd.f32 %v349, %v684
      %v686 = vpop.f32.mrf.mxu0
      %v687 = vpop.f32.mrf.mxu0
      %v688 = vpop.f32.mrf.mxu0
      %689 = vdwg.mxu0
      %v690 = vpack.c.bf16 %v336, %v336
      %v692 = vlaneseq
      %v693 = vshrl.u32 %v692, 7
      %v694 = vsub.s32 0, %v693
      %v695 = vrot.slane %v292, %v694
      %v696 = vlaneseq
      %v697 = vshrl.u32 %v696, 7
      %v698 = vsub.s32 1, %v697
      %v699 = vrot.slane %v292, %v698
      %v700 = vlaneseq
      %v701 = vshrl.u32 %v700, 7
      %v702 = vsub.s32 2, %v701
      %v703 = vrot.slane %v292, %v702
      %v739 = vunpack.c.l.b16 %v227
      %v740 = vunpack.c.h.b16 %v227
      %v741 = vunpack.c.l.b16 %v228
      %v742 = vunpack.c.l.b16 %v229
      %v743 = vunpack.c.h.b16 %v229
      %v744 = vunpack.c.l.b16 %v230
      %v745 = vunpack.c.l.b16 %v231
      %v746 = vunpack.c.h.b16 %v231
      %v747 = vunpack.c.l.b16 %v232
      %v748 = vunpack.c.l.b16 %v233
      %v749 = vunpack.c.h.b16 %v233
      %v750 = vunpack.c.l.b16 %v234
      %v751 = vunpack.c.l.b16 %v235
      %v752 = vunpack.c.h.b16 %v235
      %v753 = vunpack.c.l.b16 %v236
      %v754 = vunpack.c.l.b16 %v237
      %v755 = vunpack.c.h.b16 %v237
      %v756 = vunpack.c.l.b16 %v238
      %v757 = vunpack.c.l.b16 %v239
      %v758 = vunpack.c.h.b16 %v239
      %v759 = vunpack.c.l.b16 %v240
      %v760 = vunpack.c.l.b16 %v241
      %v761 = vunpack.c.h.b16 %v241
      %v762 = vunpack.c.l.b16 %v242
      %v763 = vunpack.c.l.b16 %v243
      %v764 = vunpack.c.h.b16 %v243
      %v765 = vunpack.c.l.b16 %v244
      %v766 = vunpack.c.l.b16 %v245
      %v767 = vunpack.c.h.b16 %v245
      %v768 = vunpack.c.l.b16 %v246
      %v769 = vunpack.c.l.b16 %v247
      %v770 = vunpack.c.h.b16 %v247
      %v771 = vunpack.c.l.b16 %v248
      %v772 = vunpack.c.l.b16 %v249
      %v773 = vunpack.c.h.b16 %v249
      %v774 = vunpack.c.l.b16 %v250
      %v775 = vunpack.c.l.b16 %v251
      %v776 = vunpack.c.h.b16 %v251
      %v777 = vunpack.c.l.b16 %v252
      %v778 = vunpack.c.l.b16 %v253
      %v779 = vunpack.c.h.b16 %v253
      %v780 = vunpack.c.l.b16 %v254
      %v781 = vunpack.c.l.b16 %v255
      %v782 = vunpack.c.h.b16 %v255
      %v783 = vunpack.c.l.b16 %v256
      %v784 = vunpack.c.l.b16 %v257
      %v785 = vunpack.c.h.b16 %v257
      %v786 = vunpack.c.l.b16 %v258
      %v787 = vpack.c.b16 %v742, %v739
      %v788 = vpack.c.b16 %v743, %v740
      %v789 = vpack.c.b16 %v744, %v741
      %v790 = vpack.c.b16 %v748, %v745
      %v791 = vpack.c.b16 %v749, %v746
      %v792 = vpack.c.b16 %v750, %v747
      %v793 = vpack.c.b16 %v754, %v751
      %v794 = vpack.c.b16 %v755, %v752
      %v795 = vpack.c.b16 %v756, %v753
      %v796 = vpack.c.b16 %v760, %v757
      %v797 = vpack.c.b16 %v761, %v758
      %v798 = vpack.c.b16 %v762, %v759
      %v799 = vpack.c.b16 %v766, %v763
      %v800 = vpack.c.b16 %v767, %v764
      %v801 = vpack.c.b16 %v768, %v765
      %v802 = vpack.c.b16 %v772, %v769
      %v803 = vpack.c.b16 %v773, %v770
      %v804 = vpack.c.b16 %v774, %v771
      %v805 = vpack.c.b16 %v778, %v775
      %v806 = vpack.c.b16 %v779, %v776
      %v807 = vpack.c.b16 %v780, %v777
      %v808 = vpack.c.b16 %v784, %v781
      %v809 = vpack.c.b16 %v785, %v782
      %v810 = vpack.c.b16 %v786, %v783
      %835 = vmatprep.subr.bf16.mxu0 %v809
      %836 = vmatpush1.bf16.msra.mxu0 %v808
      %837 = vmatprep.subr.bf16.mxu0 %v806
      %838 = vmatpush1.bf16.msra.mxu0 %v805
      %839 = vmatprep.subr.bf16.mxu0 %v803
      %840 = vmatpush1.bf16.msra.mxu0 %v802
      %841 = vmatprep.subr.bf16.mxu0 %v800
      %842 = vmatpush1.bf16.msra.mxu0 %v799
      %843 = vmatprep.subr.bf16.mxu0 %v797
      %844 = vmatpush1.bf16.msra.mxu0 %v796
      %845 = vmatprep.subr.bf16.mxu0 %v794
      %846 = vmatpush1.bf16.msra.mxu0 %v793
      %847 = vmatprep.subr.bf16.mxu0 %v791
      %848 = vmatpush1.bf16.msra.mxu0 %v790
      %849 = vmatprep.subr.bf16.mxu0 %v788
      %850 = vmatpush1.bf16.msra.mxu0 %v787
      %851 = vmatprep.subr.bf16.mxu0 0
      %852 = vmatpush2.bf16.msra.mxu0 0
      %853 = vmatprep.subr.bf16.mxu0 0
      %854 = vmatpush2.bf16.msra.mxu0 0
      %855 = vmatprep.subr.bf16.mxu0 0
      %856 = vmatpush2.bf16.msra.mxu0 0
      %857 = vmatprep.subr.bf16.mxu0 0
      %858 = vmatpush2.bf16.msra.mxu0 0
      %859 = vmatprep.subr.bf16.mxu0 0
      %860 = vmatpush2.bf16.msra.mxu0 0
      %861 = vmatprep.subr.bf16.mxu0 0
      %862 = vmatpush2.bf16.msra.mxu0 0
      %863 = vmatprep.subr.bf16.mxu0 0
      %864 = vmatpush2.bf16.msra.mxu0 0
      %865 = vmatprep.subr.bf16.mxu0 0
      %866 = vmatpush2.bf16.msra.mxu0 0
      %867 = vmatprep.mubr.bf16.mxu0 0
      %868 = vmatmul.mubr.bf16.gmra.mxu0 %v690
      %v869 = vpop.f32.mrf.mxu0
      %v870 = vadd.f32 %v695, %v869
      %v871 = vpop.f32.mrf.mxu0
      %v872 = vadd.f32 %v699, %v871
      %v873 = vpop.f32.mrf.mxu0
      %v874 = vpop.f32.mrf.mxu0
      %875 = vdwg.mxu0
      %876 = vmatprep.subr.bf16.mxu0 0
      %877 = vmatpush1.bf16.msra.mxu0 %v810
      %878 = vmatprep.subr.bf16.mxu0 0
      %879 = vmatpush1.bf16.msra.mxu0 %v807
      %880 = vmatprep.subr.bf16.mxu0 0
      %881 = vmatpush1.bf16.msra.mxu0 %v804
      %882 = vmatprep.subr.bf16.mxu0 0
      %883 = vmatpush1.bf16.msra.mxu0 %v801
      %884 = vmatprep.subr.bf16.mxu0 0
      %885 = vmatpush1.bf16.msra.mxu0 %v798
      %886 = vmatprep.subr.bf16.mxu0 0
      %887 = vmatpush1.bf16.msra.mxu0 %v795
      %888 = vmatprep.subr.bf16.mxu0 0
      %889 = vmatpush1.bf16.msra.mxu0 %v792
      %890 = vmatprep.subr.bf16.mxu0 0
      %891 = vmatpush1.bf16.msra.mxu0 %v789
      %892 = vmatprep.subr.bf16.mxu0 0
      %893 = vmatpush2.bf16.msra.mxu0 0
      %894 = vmatprep.subr.bf16.mxu0 0
      %895 = vmatpush2.bf16.msra.mxu0 0
      %896 = vmatprep.subr.bf16.mxu0 0
      %897 = vmatpush2.bf16.msra.mxu0 0
      %898 = vmatprep.subr.bf16.mxu0 0
      %899 = vmatpush2.bf16.msra.mxu0 0
      %900 = vmatprep.subr.bf16.mxu0 0
      %901 = vmatpush2.bf16.msra.mxu0 0
      %902 = vmatprep.subr.bf16.mxu0 0
      %903 = vmatpush2.bf16.msra.mxu0 0
      %904 = vmatprep.subr.bf16.mxu0 0
      %905 = vmatpush2.bf16.msra.mxu0 0
      %906 = vmatprep.subr.bf16.mxu0 0
      %907 = vmatpush2.bf16.msra.mxu0 0
      %908 = vmatprep.mubr.bf16.mxu0 0
      %909 = vmatmul.mubr.bf16.gmra.mxu0 %v690
      %v910 = vpop.f32.mrf.mxu0
      %v911 = vadd.f32 %v703, %v910
      %v912 = vpop.f32.mrf.mxu0
      %v913 = vpop.f32.mrf.mxu0
      %v914 = vpop.f32.mrf.mxu0
      %915 = vdwg.mxu0
      %v916 = vadd.f32 %v644, %v870
      %v917 = vxor.u32 %v916, 2147483648
      %v918 = vmul.f32 %v917, 1.442695
      %v919 = vpow.pop %v918
      %v920 = vadd.f32 %v919, 1.0
      %v921 = vrcp.pop %v920
      %v922 = vmul.f32 1.0, %v921
      %v923 = vadd.f32 %v646, %v872
      %v924 = vxor.u32 %v923, 2147483648
      %v925 = vmul.f32 %v924, 1.442695
      %v926 = vpow.pop %v925
      %v927 = vadd.f32 %v926, 1.0
      %v928 = vrcp.pop %v927
      %v929 = vmul.f32 1.0, %v928
      %v930 = vmul.f32 %v922, %v911
      %v931 = vadd.f32 %v685, %v930
      %v932 = vtanh.pop %v931
      %v933 = vsub.f32 1.0, %v929
      %v934 = vmul.f32 %v933, %v932
      %v935 = vmul.f32 %v929, %v336
      %v936 = vadd.f32 %v934, %v935
      %s937 = scalar_lea.vmem [#allocation2], 2
      %v938 = vld [vmem:[%s937] sm:$0x3]
      %v940 = vlaneseq
      %v941 = vshrl.u32 %v940, 7
      %v942 = vsub.s32 0, %v941
      %v943 = vrot.slane %v226, %v942
      %v944 = vlaneseq
      %v945 = vshrl.u32 %v944, 7
      %v946 = vsub.s32 1, %v945
      %v947 = vrot.slane %v226, %v946
      %v948 = vlaneseq
      %v949 = vshrl.u32 %v948, 7
      %v950 = vsub.s32 2, %v949
      %v951 = vrot.slane %v226, %v950
      %v1019 = vunpack.c.l.b16 %v161
      %v1020 = vunpack.c.h.b16 %v161
      %v1021 = vunpack.c.l.b16 %v162
      %v1022 = vunpack.c.l.b16 %v163
      %v1023 = vunpack.c.h.b16 %v163
      %v1024 = vunpack.c.l.b16 %v164
      %v1025 = vunpack.c.l.b16 %v165
      %v1026 = vunpack.c.h.b16 %v165
      %v1027 = vunpack.c.l.b16 %v166
      %v1028 = vunpack.c.l.b16 %v167
      %v1029 = vunpack.c.h.b16 %v167
      %v1030 = vunpack.c.l.b16 %v168
      %v1031 = vunpack.c.l.b16 %v169
      %v1032 = vunpack.c.h.b16 %v169
      %v1033 = vunpack.c.l.b16 %v170
      %v1034 = vunpack.c.l.b16 %v171
      %v1035 = vunpack.c.h.b16 %v171
      %v1036 = vunpack.c.l.b16 %v172
      %v1037 = vunpack.c.l.b16 %v173
      %v1038 = vunpack.c.h.b16 %v173
      %v1039 = vunpack.c.l.b16 %v174
      %v1040 = vunpack.c.l.b16 %v175
      %v1041 = vunpack.c.h.b16 %v175
      %v1042 = vunpack.c.l.b16 %v176
      %v1043 = vunpack.c.l.b16 %v177
      %v1044 = vunpack.c.h.b16 %v177
      %v1045 = vunpack.c.l.b16 %v178
      %v1046 = vunpack.c.l.b16 %v179
      %v1047 = vunpack.c.h.b16 %v179
      %v1048 = vunpack.c.l.b16 %v180
      %v1049 = vunpack.c.l.b16 %v181
      %v1050 = vunpack.c.h.b16 %v181
      %v1051 = vunpack.c.l.b16 %v182
      %v1052 = vunpack.c.l.b16 %v183
      %v1053 = vunpack.c.h.b16 %v183
      %v1054 = vunpack.c.l.b16 %v184
      %v1055 = vunpack.c.l.b16 %v185
      %v1056 = vunpack.c.h.b16 %v185
      %v1057 = vunpack.c.l.b16 %v186
      %v1058 = vunpack.c.l.b16 %v187
      %v1059 = vunpack.c.h.b16 %v187
      %v1060 = vunpack.c.l.b16 %v188
      %v1061 = vunpack.c.l.b16 %v189
      %v1062 = vunpack.c.h.b16 %v189
      %v1063 = vunpack.c.l.b16 %v190
      %v1064 = vunpack.c.l.b16 %v191
      %v1065 = vunpack.c.h.b16 %v191
      %v1066 = vunpack.c.l.b16 %v192
      %v1067 = vunpack.c.l.b16 %v193
      %v1068 = vunpack.c.h.b16 %v193
      %v1069 = vunpack.c.l.b16 %v194
      %v1070 = vunpack.c.l.b16 %v195
      %v1071 = vunpack.c.h.b16 %v195
      %v1072 = vunpack.c.l.b16 %v196
      %v1073 = vunpack.c.l.b16 %v197
      %v1074 = vunpack.c.h.b16 %v197
      %v1075 = vunpack.c.l.b16 %v198
      %v1076 = vunpack.c.l.b16 %v199
      %v1077 = vunpack.c.h.b16 %v199
      %v1078 = vunpack.c.l.b16 %v200
      %v1079 = vunpack.c.l.b16 %v201
      %v1080 = vunpack.c.h.b16 %v201
      %v1081 = vunpack.c.l.b16 %v202
      %v1082 = vunpack.c.l.b16 %v203
      %v1083 = vunpack.c.h.b16 %v203
      %v1084 = vunpack.c.l.b16 %v204
      %v1085 = vunpack.c.l.b16 %v205
      %v1086 = vunpack.c.h.b16 %v205
      %v1087 = vunpack.c.l.b16 %v206
      %v1088 = vunpack.c.l.b16 %v207
      %v1089 = vunpack.c.h.b16 %v207
      %v1090 = vunpack.c.l.b16 %v208
      %v1091 = vunpack.c.l.b16 %v209
      %v1092 = vunpack.c.h.b16 %v209
      %v1093 = vunpack.c.l.b16 %v210
      %v1094 = vunpack.c.l.b16 %v211
      %v1095 = vunpack.c.h.b16 %v211
      %v1096 = vunpack.c.l.b16 %v212
      %v1097 = vunpack.c.l.b16 %v213
      %v1098 = vunpack.c.h.b16 %v213
      %v1099 = vunpack.c.l.b16 %v214
      %v1100 = vunpack.c.l.b16 %v215
      %v1101 = vunpack.c.h.b16 %v215
      %v1102 = vunpack.c.l.b16 %v216
      %v1103 = vunpack.c.l.b16 %v217
      %v1104 = vunpack.c.h.b16 %v217
      %v1105 = vunpack.c.l.b16 %v218
      %v1106 = vunpack.c.l.b16 %v219
      %v1107 = vunpack.c.h.b16 %v219
      %v1108 = vunpack.c.l.b16 %v220
      %v1109 = vunpack.c.l.b16 %v221
      %v1110 = vunpack.c.h.b16 %v221
      %v1111 = vunpack.c.l.b16 %v222
      %v1112 = vunpack.c.l.b16 %v223
      %v1113 = vunpack.c.h.b16 %v223
      %v1114 = vunpack.c.l.b16 %v224
      %v1115 = vpack.c.b16 %v1022, %v1019
      %v1116 = vpack.c.b16 %v1023, %v1020
      %v1117 = vpack.c.b16 %v1024, %v1021
      %v1118 = vpack.c.b16 %v1028, %v1025
      %v1119 = vpack.c.b16 %v1029, %v1026
      %v1120 = vpack.c.b16 %v1030, %v1027
      %v1121 = vpack.c.b16 %v1034, %v1031
      %v1122 = vpack.c.b16 %v1035, %v1032
      %v1123 = vpack.c.b16 %v1036, %v1033
      %v1124 = vpack.c.b16 %v1040, %v1037
      %v1125 = vpack.c.b16 %v1041, %v1038
      %v1126 = vpack.c.b16 %v1042, %v1039
      %v1127 = vpack.c.b16 %v1046, %v1043
      %v1128 = vpack.c.b16 %v1047, %v1044
      %v1129 = vpack.c.b16 %v1048, %v1045
      %v1130 = vpack.c.b16 %v1052, %v1049
      %v1131 = vpack.c.b16 %v1053, %v1050
      %v1132 = vpack.c.b16 %v1054, %v1051
      %v1133 = vpack.c.b16 %v1058, %v1055
      %v1134 = vpack.c.b16 %v1059, %v1056
      %v1135 = vpack.c.b16 %v1060, %v1057
      %v1136 = vpack.c.b16 %v1064, %v1061
      %v1137 = vpack.c.b16 %v1065, %v1062
      %v1138 = vpack.c.b16 %v1066, %v1063
      %v1139 = vpack.c.b16 %v1070, %v1067
      %v1140 = vpack.c.b16 %v1071, %v1068
      %v1141 = vpack.c.b16 %v1072, %v1069
      %v1142 = vpack.c.b16 %v1076, %v1073
      %v1143 = vpack.c.b16 %v1077, %v1074
      %v1144 = vpack.c.b16 %v1078, %v1075
      %v1145 = vpack.c.b16 %v1082, %v1079
      %v1146 = vpack.c.b16 %v1083, %v1080
      %v1147 = vpack.c.b16 %v1084, %v1081
      %v1148 = vpack.c.b16 %v1088, %v1085
      %v1149 = vpack.c.b16 %v1089, %v1086
      %v1150 = vpack.c.b16 %v1090, %v1087
      %v1151 = vpack.c.b16 %v1094, %v1091
      %v1152 = vpack.c.b16 %v1095, %v1092
      %v1153 = vpack.c.b16 %v1096, %v1093
      %v1154 = vpack.c.b16 %v1100, %v1097
      %v1155 = vpack.c.b16 %v1101, %v1098
      %v1156 = vpack.c.b16 %v1102, %v1099
      %v1157 = vpack.c.b16 %v1106, %v1103
      %v1158 = vpack.c.b16 %v1107, %v1104
      %v1159 = vpack.c.b16 %v1108, %v1105
      %v1160 = vpack.c.b16 %v1112, %v1109
      %v1161 = vpack.c.b16 %v1113, %v1110
      %v1162 = vpack.c.b16 %v1114, %v1111
      %1211 = vmatprep.subr.bf16.mxu0 %v1137
      %1212 = vmatpush1.bf16.msra.mxu0 %v1136
      %1213 = vmatprep.subr.bf16.mxu0 %v1134
      %1214 = vmatpush1.bf16.msra.mxu0 %v1133
      %1215 = vmatprep.subr.bf16.mxu0 %v1131
      %1216 = vmatpush1.bf16.msra.mxu0 %v1130
      %1217 = vmatprep.subr.bf16.mxu0 %v1128
      %1218 = vmatpush1.bf16.msra.mxu0 %v1127
      %1219 = vmatprep.subr.bf16.mxu0 %v1125
      %1220 = vmatpush1.bf16.msra.mxu0 %v1124
      %1221 = vmatprep.subr.bf16.mxu0 %v1122
      %1222 = vmatpush1.bf16.msra.mxu0 %v1121
      %1223 = vmatprep.subr.bf16.mxu0 %v1119
      %1224 = vmatpush1.bf16.msra.mxu0 %v1118
      %1225 = vmatprep.subr.bf16.mxu0 %v1116
      %1226 = vmatpush1.bf16.msra.mxu0 %v1115
      %1227 = vmatprep.subr.bf16.mxu0 %v1161
      %1228 = vmatpush2.bf16.msra.mxu0 %v1160
      %1229 = vmatprep.subr.bf16.mxu0 %v1158
      %1230 = vmatpush2.bf16.msra.mxu0 %v1157
      %1231 = vmatprep.subr.bf16.mxu0 %v1155
      %1232 = vmatpush2.bf16.msra.mxu0 %v1154
      %1233 = vmatprep.subr.bf16.mxu0 %v1152
      %1234 = vmatpush2.bf16.msra.mxu0 %v1151
      %1235 = vmatprep.subr.bf16.mxu0 %v1149
      %1236 = vmatpush2.bf16.msra.mxu0 %v1148
      %1237 = vmatprep.subr.bf16.mxu0 %v1146
      %1238 = vmatpush2.bf16.msra.mxu0 %v1145
      %1239 = vmatprep.subr.bf16.mxu0 %v1143
      %1240 = vmatpush2.bf16.msra.mxu0 %v1142
      %1241 = vmatprep.subr.bf16.mxu0 %v1140
      %1242 = vmatpush2.bf16.msra.mxu0 %v1139
      %1243 = vmatprep.mubr.bf16.mxu0 %v335
      %1244 = vmatmul.mubr.bf16.gmra.mxu0 %v334
      %v1245 = vpop.f32.mrf.mxu0
      %v1246 = vadd.f32 %v943, %v1245
      %v1247 = vpop.f32.mrf.mxu0
      %v1248 = vadd.f32 %v947, %v1247
      %v1249 = vpop.f32.mrf.mxu0
      %v1250 = vpop.f32.mrf.mxu0
      %1251 = vdwg.mxu0
      %1252 = vmatprep.subr.bf16.mxu0 0
      %1253 = vmatpush1.bf16.msra.mxu0 %v1138
      %1254 = vmatprep.subr.bf16.mxu0 0
      %1255 = vmatpush1.bf16.msra.mxu0 %v1135
      %1256 = vmatprep.subr.bf16.mxu0 0
      %1257 = vmatpush1.bf16.msra.mxu0 %v1132
      %1258 = vmatprep.subr.bf16.mxu0 0
      %1259 = vmatpush1.bf16.msra.mxu0 %v1129
      %1260 = vmatprep.subr.bf16.mxu0 0
      %1261 = vmatpush1.bf16.msra.mxu0 %v1126
      %1262 = vmatprep.subr.bf16.mxu0 0
      %1263 = vmatpush1.bf16.msra.mxu0 %v1123
      %1264 = vmatprep.subr.bf16.mxu0 0
      %1265 = vmatpush1.bf16.msra.mxu0 %v1120
      %1266 = vmatprep.subr.bf16.mxu0 0
      %1267 = vmatpush1.bf16.msra.mxu0 %v1117
      %1268 = vmatprep.subr.bf16.mxu0 0
      %1269 = vmatpush2.bf16.msra.mxu0 %v1162
      %1270 = vmatprep.subr.bf16.mxu0 0
      %1271 = vmatpush2.bf16.msra.mxu0 %v1159
      %1272 = vmatprep.subr.bf16.mxu0 0
      %1273 = vmatpush2.bf16.msra.mxu0 %v1156
      %1274 = vmatprep.subr.bf16.mxu0 0
      %1275 = vmatpush2.bf16.msra.mxu0 %v1153
      %1276 = vmatprep.subr.bf16.mxu0 0
      %1277 = vmatpush2.bf16.msra.mxu0 %v1150
      %1278 = vmatprep.subr.bf16.mxu0 0
      %1279 = vmatpush2.bf16.msra.mxu0 %v1147
      %1280 = vmatprep.subr.bf16.mxu0 0
      %1281 = vmatpush2.bf16.msra.mxu0 %v1144
      %1282 = vmatprep.subr.bf16.mxu0 0
      %1283 = vmatpush2.bf16.msra.mxu0 %v1141
      %1284 = vmatprep.mubr.bf16.mxu0 %v335
      %1285 = vmatmul.mubr.bf16.gmra.mxu0 %v334
      %v1286 = vpop.f32.mrf.mxu0
      %v1287 = vadd.f32 %v951, %v1286
      %v1288 = vpop.f32.mrf.mxu0
      %v1289 = vpop.f32.mrf.mxu0
      %v1290 = vpop.f32.mrf.mxu0
      %1291 = vdwg.mxu0
      %v1292 = vpack.c.bf16 %v938, %v938
      %v1294 = vlaneseq
      %v1295 = vshrl.u32 %v1294, 7
      %v1296 = vsub.s32 0, %v1295
      %v1297 = vrot.slane %v294, %v1296
      %v1298 = vlaneseq
      %v1299 = vshrl.u32 %v1298, 7
      %v1300 = vsub.s32 1, %v1299
      %v1301 = vrot.slane %v294, %v1300
      %v1302 = vlaneseq
      %v1303 = vshrl.u32 %v1302, 7
      %v1304 = vsub.s32 2, %v1303
      %v1305 = vrot.slane %v294, %v1304
      %v1341 = vunpack.c.l.b16 %v260
      %v1342 = vunpack.c.h.b16 %v260
      %v1343 = vunpack.c.l.b16 %v261
      %v1344 = vunpack.c.l.b16 %v262
      %v1345 = vunpack.c.h.b16 %v262
      %v1346 = vunpack.c.l.b16 %v263
      %v1347 = vunpack.c.l.b16 %v264
      %v1348 = vunpack.c.h.b16 %v264
      %v1349 = vunpack.c.l.b16 %v265
      %v1350 = vunpack.c.l.b16 %v266
      %v1351 = vunpack.c.h.b16 %v266
      %v1352 = vunpack.c.l.b16 %v267
      %v1353 = vunpack.c.l.b16 %v268
      %v1354 = vunpack.c.h.b16 %v268
      %v1355 = vunpack.c.l.b16 %v269
      %v1356 = vunpack.c.l.b16 %v270
      %v1357 = vunpack.c.h.b16 %v270
      %v1358 = vunpack.c.l.b16 %v271
      %v1359 = vunpack.c.l.b16 %v272
      %v1360 = vunpack.c.h.b16 %v272
      %v1361 = vunpack.c.l.b16 %v273
      %v1362 = vunpack.c.l.b16 %v274
      %v1363 = vunpack.c.h.b16 %v274
      %v1364 = vunpack.c.l.b16 %v275
      %v1365 = vunpack.c.l.b16 %v276
      %v1366 = vunpack.c.h.b16 %v276
      %v1367 = vunpack.c.l.b16 %v277
      %v1368 = vunpack.c.l.b16 %v278
      %v1369 = vunpack.c.h.b16 %v278
      %v1370 = vunpack.c.l.b16 %v279
      %v1371 = vunpack.c.l.b16 %v280
      %v1372 = vunpack.c.h.b16 %v280
      %v1373 = vunpack.c.l.b16 %v281
      %v1374 = vunpack.c.l.b16 %v282
      %v1375 = vunpack.c.h.b16 %v282
      %v1376 = vunpack.c.l.b16 %v283
      %v1377 = vunpack.c.l.b16 %v284
      %v1378 = vunpack.c.h.b16 %v284
      %v1379 = vunpack.c.l.b16 %v285
      %v1380 = vunpack.c.l.b16 %v286
      %v1381 = vunpack.c.h.b16 %v286
      %v1382 = vunpack.c.l.b16 %v287
      %v1383 = vunpack.c.l.b16 %v288
      %v1384 = vunpack.c.h.b16 %v288
      %v1385 = vunpack.c.l.b16 %v289
      %v1386 = vunpack.c.l.b16 %v290
      %v1387 = vunpack.c.h.b16 %v290
      %v1388 = vunpack.c.l.b16 %v291
      %v1389 = vpack.c.b16 %v1344, %v1341
      %v1390 = vpack.c.b16 %v1345, %v1342
      %v1391 = vpack.c.b16 %v1346, %v1343
      %v1392 = vpack.c.b16 %v1350, %v1347
      %v1393 = vpack.c.b16 %v1351, %v1348
      %v1394 = vpack.c.b16 %v1352, %v1349
      %v1395 = vpack.c.b16 %v1356, %v1353
      %v1396 = vpack.c.b16 %v1357, %v1354
      %v1397 = vpack.c.b16 %v1358, %v1355
      %v1398 = vpack.c.b16 %v1362, %v1359
      %v1399 = vpack.c.b16 %v1363, %v1360
      %v1400 = vpack.c.b16 %v1364, %v1361
      %v1401 = vpack.c.b16 %v1368, %v1365
      %v1402 = vpack.c.b16 %v1369, %v1366
      %v1403 = vpack.c.b16 %v1370, %v1367
      %v1404 = vpack.c.b16 %v1374, %v1371
      %v1405 = vpack.c.b16 %v1375, %v1372
      %v1406 = vpack.c.b16 %v1376, %v1373
      %v1407 = vpack.c.b16 %v1380, %v1377
      %v1408 = vpack.c.b16 %v1381, %v1378
      %v1409 = vpack.c.b16 %v1382, %v1379
      %v1410 = vpack.c.b16 %v1386, %v1383
      %v1411 = vpack.c.b16 %v1387, %v1384
      %v1412 = vpack.c.b16 %v1388, %v1385
      %1437 = vmatprep.subr.bf16.mxu0 %v1411
      %1438 = vmatpush1.bf16.msra.mxu0 %v1410
      %1439 = vmatprep.subr.bf16.mxu0 %v1408
      %1440 = vmatpush1.bf16.msra.mxu0 %v1407
      %1441 = vmatprep.subr.bf16.mxu0 %v1405
      %1442 = vmatpush1.bf16.msra.mxu0 %v1404
      %1443 = vmatprep.subr.bf16.mxu0 %v1402
      %1444 = vmatpush1.bf16.msra.mxu0 %v1401
      %1445 = vmatprep.subr.bf16.mxu0 %v1399
      %1446 = vmatpush1.bf16.msra.mxu0 %v1398
      %1447 = vmatprep.subr.bf16.mxu0 %v1396
      %1448 = vmatpush1.bf16.msra.mxu0 %v1395
      %1449 = vmatprep.subr.bf16.mxu0 %v1393
      %1450 = vmatpush1.bf16.msra.mxu0 %v1392
      %1451 = vmatprep.subr.bf16.mxu0 %v1390
      %1452 = vmatpush1.bf16.msra.mxu0 %v1389
      %1453 = vmatprep.subr.bf16.mxu0 0
      %1454 = vmatpush2.bf16.msra.mxu0 0
      %1455 = vmatprep.subr.bf16.mxu0 0
      %1456 = vmatpush2.bf16.msra.mxu0 0
      %1457 = vmatprep.subr.bf16.mxu0 0
      %1458 = vmatpush2.bf16.msra.mxu0 0
      %1459 = vmatprep.subr.bf16.mxu0 0
      %1460 = vmatpush2.bf16.msra.mxu0 0
      %1461 = vmatprep.subr.bf16.mxu0 0
      %1462 = vmatpush2.bf16.msra.mxu0 0
      %1463 = vmatprep.subr.bf16.mxu0 0
      %1464 = vmatpush2.bf16.msra.mxu0 0
      %1465 = vmatprep.subr.bf16.mxu0 0
      %1466 = vmatpush2.bf16.msra.mxu0 0
      %1467 = vmatprep.subr.bf16.mxu0 0
      %1468 = vmatpush2.bf16.msra.mxu0 0
      %1469 = vmatprep.mubr.bf16.mxu0 0
      %1470 = vmatmul.mubr.bf16.gmra.mxu0 %v1292
      %v1471 = vpop.f32.mrf.mxu0
      %v1472 = vadd.f32 %v1297, %v1471
      %v1473 = vpop.f32.mrf.mxu0
      %v1474 = vadd.f32 %v1301, %v1473
      %v1475 = vpop.f32.mrf.mxu0
      %v1476 = vpop.f32.mrf.mxu0
      %1477 = vdwg.mxu0
      %1478 = vmatprep.subr.bf16.mxu0 0
      %1479 = vmatpush1.bf16.msra.mxu0 %v1412
      %1480 = vmatprep.subr.bf16.mxu0 0
      %1481 = vmatpush1.bf16.msra.mxu0 %v1409
      %1482 = vmatprep.subr.bf16.mxu0 0
      %1483 = vmatpush1.bf16.msra.mxu0 %v1406
      %1484 = vmatprep.subr.bf16.mxu0 0
      %1485 = vmatpush1.bf16.msra.mxu0 %v1403
      %1486 = vmatprep.subr.bf16.mxu0 0
      %1487 = vmatpush1.bf16.msra.mxu0 %v1400
      %1488 = vmatprep.subr.bf16.mxu0 0
      %1489 = vmatpush1.bf16.msra.mxu0 %v1397
      %1490 = vmatprep.subr.bf16.mxu0 0
      %1491 = vmatpush1.bf16.msra.mxu0 %v1394
      %1492 = vmatprep.subr.bf16.mxu0 0
      %1493 = vmatpush1.bf16.msra.mxu0 %v1391
      %1494 = vmatprep.subr.bf16.mxu0 0
      %1495 = vmatpush2.bf16.msra.mxu0 0
      %1496 = vmatprep.subr.bf16.mxu0 0
      %1497 = vmatpush2.bf16.msra.mxu0 0
      %1498 = vmatprep.subr.bf16.mxu0 0
      %1499 = vmatpush2.bf16.msra.mxu0 0
      %1500 = vmatprep.subr.bf16.mxu0 0
      %1501 = vmatpush2.bf16.msra.mxu0 0
      %1502 = vmatprep.subr.bf16.mxu0 0
      %1503 = vmatpush2.bf16.msra.mxu0 0
      %1504 = vmatprep.subr.bf16.mxu0 0
      %1505 = vmatpush2.bf16.msra.mxu0 0
      %1506 = vmatprep.subr.bf16.mxu0 0
      %1507 = vmatpush2.bf16.msra.mxu0 0
      %1508 = vmatprep.subr.bf16.mxu0 0
      %1509 = vmatpush2.bf16.msra.mxu0 0
      %1510 = vmatprep.mubr.bf16.mxu0 0
      %1511 = vmatmul.mubr.bf16.gmra.mxu0 %v1292
      %v1512 = vpop.f32.mrf.mxu0
      %v1513 = vadd.f32 %v1305, %v1512
      %v1514 = vpop.f32.mrf.mxu0
      %v1515 = vpop.f32.mrf.mxu0
      %v1516 = vpop.f32.mrf.mxu0
      %1517 = vdwg.mxu0
      %v1518 = vadd.f32 %v1246, %v1472
      %v1519 = vxor.u32 %v1518, 2147483648
      %v1520 = vmul.f32 %v1519, 1.442695
      %v1521 = vpow.pop %v1520
      %v1522 = vadd.f32 %v1521, 1.0
      %v1523 = vrcp.pop %v1522
      %v1524 = vmul.f32 1.0, %v1523
      %v1525 = vadd.f32 %v1248, %v1474
      %v1526 = vxor.u32 %v1525, 2147483648
      %v1527 = vmul.f32 %v1526, 1.442695
      %v1528 = vpow.pop %v1527
      %v1529 = vadd.f32 %v1528, 1.0
      %v1530 = vrcp.pop %v1529
      %v1531 = vmul.f32 1.0, %v1530
      %v1532 = vmul.f32 %v1524, %v1513
      %v1533 = vadd.f32 %v1287, %v1532
      %v1534 = vtanh.pop %v1533
      %v1535 = vsub.f32 1.0, %v1531
      %v1536 = vmul.f32 %v1535, %v1534
      %v1537 = vmul.f32 %v1531, %v938
      %v1538 = vadd.f32 %v1536, %v1537
      %1539 = vst [vmem:[#allocation2] sm:$0x3] %v936
      %1540 = vst [vmem:[%s937] sm:$0x3] %v1538
      %s1541 = scalar_lea.vmem %s6, %s302
      %1542 = vst [vmem:[%s1541] sm:$0x3] %v936
      %s1543 = scalar_lea.vmem %s87, %s319
      %1544 = vst [vmem:[%s1543] sm:$0x3] %v1538
    $region42: #{_lambda_.7} parent=1 // loop_footer
      %s300 = sadd.s32 1, %s296
    $region43: #{_lambda_.7} parent=1 // loop_footer_branch
      %295 = sbr.rel target = $region39
    $region44: #{_lambda_.7} parent=1 // loop_exit
      _
    %s1545 = ssub.s32 0, 0
    %s1546 = smul.u32 8, %s1545
    %p1547 = scmp.lt.s32.totalorder %s1546, 7
    %s1548 = scalar_select %p1547, %s1546, 7
    %s1549 = smul.addr %s1548, 2
    %s1550 = scalar_lea.vmem %s7, %s1549
    // Predicated region
    $region45: #{_lambda_.7} parent=1 // pred_check
      _
    $region46: #{_lambda_.7} parent=1 // pred_check_branch
      %1552 = sbr.rel (0) target = $region48
    $region47: #{_lambda_.7} parent=1 // pred_region
      _
    $region48: #{_lambda_.7} parent=1 // pred_fallthru
      _
    // Predicated region
    $region49: #{_lambda_.7} parent=1 // pred_check
      _
    $region50: #{_lambda_.7} parent=1 // pred_check_branch
      %1554 = sbr.rel (0) target = $region52
    $region51: #{_lambda_.7} parent=1 // pred_region
      %s1555 = ssub.s32 0, 0
      %s1556 = smul.u32 8, %s1555
    $region52: #{_lambda_.7} parent=1 // pred_fallthru
      _
    // Predicated region
    $region53: #{_lambda_.7} parent=1 // pred_check
      _
    $region54: #{_lambda_.7} parent=1 // pred_check_branch
      %1558 = sbr.rel (0) target = $region56
    $region55: #{_lambda_.7} parent=1 // pred_region
      _
    $region56: #{_lambda_.7} parent=1 // pred_fallthru
      _
    // Predicated region
    $region57: #{_lambda_.7} parent=1 // pred_check
      _
    $region58: #{_lambda_.7} parent=1 // pred_check_branch
      %1560 = sbr.rel (0) target = $region60
    $region59: #{_lambda_.7} parent=1 // pred_region
      %s1561 = ssub.s32 0, 0
      %s1562 = smul.u32 8, %s1561
      %p1563 = scmp.lt.s32.totalorder %s1562, 7
      %s1564 = scalar_select %p1563, %s1562, 7
      %s1565 = smul.addr %s1564, 2
      %s1566 = scalar_lea.vmem %s7, %s1565
    $region60: #{_lambda_.7} parent=1 // pred_fallthru
      _
    %1567 = vsyncpa [#allocation4], 1
    %1568 = vsyncpa [#allocation6], 1

</llo_original>
